<compile_context>
chip_gen: v5e
topology: v5e:2x2
jax: 0.10.0
libtpu: 0.0.40
codegen_flags: <defaults>
</compile_context>

<pallas_src>
import functools

import jax
import jax.numpy as jnp
from jax.experimental import pallas as pl
from jax.experimental.pallas import tpu as pltpu


def _leaky_relu(x, slope=0.2):
    return jnp.where(x > 0, x, slope * x)


def disc_kernel(x_ref,
                w1_ref, b1_ref,
                w2_ref, b2_ref,
                w3_ref, b3_ref,
                w4_ref, b4_ref,
                o_ref):
    """One batch tile of the 4-layer MLP discriminator (weights VMEM-resident)."""
    x = x_ref[...]                                            # (TB, K_pad) bf16

    h = jnp.dot(x, w1_ref[...], preferred_element_type=jnp.float32)
    h = _leaky_relu(h + b1_ref[...])                          # (TB, 512) f32

    h = jnp.dot(h.astype(jnp.bfloat16), w2_ref[...],
                preferred_element_type=jnp.float32)
    h = _leaky_relu(h + b2_ref[...])                          # (TB, 256) f32

    h = jnp.dot(h.astype(jnp.bfloat16), w3_ref[...],
                preferred_element_type=jnp.float32)
    h = _leaky_relu(h + b3_ref[...])                          # (TB, 128) f32

    # Final Linear(128, 1): an N=1 MXU matmul wastes the systolic array, so do
    # it on the VPU/XLU and store a lane-dense (1, TB) row instead of a (TB, 1)
    # masked-store column.
    ht = h.T                                                  # (128, TB) f32
    out_row = jnp.sum(ht * w4_ref[...], axis=0, keepdims=True) + b4_ref[...]
    o_ref[...] = out_row.astype(o_ref.dtype)                  # (1, TB)


def init_params(key, im_dim=784, hidden_dim=128):
    """PyTorch nn.Linear-style init; weights stored as (in, out) = W^T."""
    dims = [im_dim, hidden_dim * 4, hidden_dim * 2, hidden_dim, 1]
    params = {}
    for i, (din, dout) in enumerate(zip(dims[:-1], dims[1:]), start=1):
        key, kw, kb = jax.random.split(key, 3)
        bound = 1.0 / jnp.sqrt(jnp.float32(din))
        params[f"w{i}"] = jax.random.uniform(
            kw, (din, dout), jnp.float32, minval=-bound, maxval=bound)
        params[f"b{i}"] = jax.random.uniform(
            kb, (1, dout), jnp.float32, minval=-bound, maxval=bound)
    return params


def prepare_params(params):
    """Pad w1's K axis to a multiple of 128 and cast MXU weights to bf16."""
    k = params["w1"].shape[0]
    k_pad = pl.cdiv(k, 128) * 128
    return {
        "w1": jnp.pad(params["w1"], ((0, k_pad - k), (0, 0))).astype(jnp.bfloat16),
        "w2": params["w2"].astype(jnp.bfloat16),
        "w3": params["w3"].astype(jnp.bfloat16),
        "w4": params["w4"].astype(jnp.float32),   # (128, 1): used on the VPU, keep f32
        "b1": params["b1"].astype(jnp.float32),
        "b2": params["b2"].astype(jnp.float32),
        "b3": params["b3"].astype(jnp.float32),
        "b4": params["b4"].astype(jnp.float32),
    }


@functools.partial(jax.jit, static_argnames=("tb",))
def linear_discriminator(x, prep, *, tb=256):
    """x: (B, im_dim) float32.  prep: output of prepare_params().  Returns (B, 1) f32."""
    B, k = x.shape
    k_pad = prep["w1"].shape[0]
    b_pad = pl.cdiv(B, tb) * tb

    # bf16 input halves HBM traffic; zero-pad batch to the tile and K to 128 lanes.
    xp = jnp.pad(x.astype(jnp.bfloat16), ((0, b_pad - B), (0, k_pad - k)))

    weights = (prep["w1"], prep["b1"], prep["w2"], prep["b2"],
               prep["w3"], prep["b3"], prep["w4"], prep["b4"])

    def resident(a):  # full-array block, constant index -> stays in VMEM across tiles
        return pl.BlockSpec(a.shape, lambda i: (0, 0))

    flops = 2 * b_pad * (k_pad * 512 + 512 * 256 + 256 * 128 + 128 * 1)
    bytes_accessed = (xp.size * 2
                      + sum(int(w.size) * w.dtype.itemsize for w in weights)
                      + b_pad * 4)

    out = pl.pallas_call(
        disc_kernel,
        out_shape=jax.ShapeDtypeStruct((1, b_pad), jnp.float32),
        grid=(b_pad // tb,),
        in_specs=[pl.BlockSpec((tb, k_pad), lambda i: (i, 0))]
                 + [resident(w) for w in weights],
        out_specs=pl.BlockSpec((1, tb), lambda i: (0, i)),
        compiler_params=pltpu.CompilerParams(
            dimension_semantics=("parallel",)),
        cost_estimate=pl.CostEstimate(
            flops=flops, transcendentals=0, bytes_accessed=bytes_accessed),
    )(xp, *weights)

    return out[0, :B, None]


def reference_forward(x, prep):
    """Pure-JAX reference mirroring the kernel's bf16-operand / f32-accum math."""
    k_pad = prep["w1"].shape[0]
    h = jnp.pad(x, ((0, 0), (0, k_pad - x.shape[1]))).astype(jnp.bfloat16)
    for i in (1, 2, 3):
        h = jnp.dot(h, prep[f"w{i}"], preferred_element_type=jnp.float32) + prep[f"b{i}"]
        h = jnp.where(h > 0, h, 0.2 * h)
        if i < 3:
            h = h.astype(jnp.bfloat16)
    return jnp.sum(h * prep["w4"].T, axis=-1, keepdims=True) + prep["b4"]


if __name__ == "__main__":
    key = jax.random.PRNGKey(0)
    key, kx = jax.random.split(key)

    B, IM_DIM, HIDDEN = 8, 784, 128   # MNIST-flattened defaults, small demo batch
    x = jax.random.normal(kx, (B, IM_DIM), jnp.float32)

    params = init_params(key, im_dim=IM_DIM, hidden_dim=HIDDEN)
    prep = prepare_params(params)

    out = jax.block_until_ready(linear_discriminator(x, prep))
    ref = jax.block_until_ready(reference_forward(x, prep))

    assert out.shape == (B, 1), out.shape
    assert jnp.allclose(out, ref, atol=1e-2, rtol=1e-2), (
        f"max abs err = {jnp.max(jnp.abs(out - ref))}")

    print("KERNEL_OK")
</pallas_src>

<mosaic_0001>
module attributes {stable_mosaic.version = 11 : i64} {
  func.func @disc_kernel(%arg0: i32, %arg1: memref<256x896xbf16, #tpu.memory_space<vmem>>, %arg2: memref<896x512xbf16, #tpu.memory_space<vmem>>, %arg3: memref<1x512xf32, #tpu.memory_space<vmem>>, %arg4: memref<512x256xbf16, #tpu.memory_space<vmem>>, %arg5: memref<1x256xf32, #tpu.memory_space<vmem>>, %arg6: memref<256x128xbf16, #tpu.memory_space<vmem>>, %arg7: memref<1x128xf32, #tpu.memory_space<vmem>>, %arg8: memref<128x1xf32, #tpu.memory_space<vmem>>, %arg9: memref<1x1xf32, #tpu.memory_space<vmem>>, %arg10: memref<1x256xf32, #tpu.memory_space<vmem>>) attributes {dimension_semantics = [#tpu.dimension_semantics<parallel>], iteration_bounds = array<i64: 1>, scalar_prefetch = 0 : i64, scratch_operands = 0 : i64, tpu.core_type = #tpu.core_type<tc>, window_params = [{transform_indices = @transform_0, window_bounds = array<i64: 256, 896>}, {pipeline_mode = #tpu.pipeline_mode<synchronous>, transform_indices = @transform_1, window_bounds = array<i64: 896, 512>}, {pipeline_mode = #tpu.pipeline_mode<synchronous>, transform_indices = @transform_2, window_bounds = array<i64: 1, 512>}, {pipeline_mode = #tpu.pipeline_mode<synchronous>, transform_indices = @transform_3, window_bounds = array<i64: 512, 256>}, {pipeline_mode = #tpu.pipeline_mode<synchronous>, transform_indices = @transform_4, window_bounds = array<i64: 1, 256>}, {pipeline_mode = #tpu.pipeline_mode<synchronous>, transform_indices = @transform_5, window_bounds = array<i64: 256, 128>}, {pipeline_mode = #tpu.pipeline_mode<synchronous>, transform_indices = @transform_6, window_bounds = array<i64: 1, 128>}, {pipeline_mode = #tpu.pipeline_mode<synchronous>, transform_indices = @transform_7, window_bounds = array<i64: 128, 1>}, {pipeline_mode = #tpu.pipeline_mode<synchronous>, transform_indices = @transform_8, window_bounds = array<i64: 1, 1>}, {transform_indices = @transform_9, window_bounds = array<i64: 1, 256>}]} {
    %c0 = arith.constant 0 : index
    %c0_0 = arith.constant 0 : index
    %0 = vector.load %arg1[%c0, %c0_0] : memref<256x896xbf16, #tpu.memory_space<vmem>>, vector<256x896xbf16>
    %c0_1 = arith.constant 0 : index
    %c0_2 = arith.constant 0 : index
    %1 = vector.load %arg2[%c0_1, %c0_2] : memref<896x512xbf16, #tpu.memory_space<vmem>>, vector<896x512xbf16>
    %cst = arith.constant dense<0.000000e+00> : vector<256x512xf32>
    %2 = tpu.matmul %0, %1, %cst {dimension_numbers = #tpu.dot_dimension_numbers<[1], [0], [0], [1], [0, 0, 1, 1], [], []>} : vector<256x896xbf16>, vector<896x512xbf16>, vector<256x512xf32> -> vector<256x512xf32>
    %c0_3 = arith.constant 0 : index
    %c0_4 = arith.constant 0 : index
    %3 = vector.load %arg3[%c0_3, %c0_4] : memref<1x512xf32, #tpu.memory_space<vmem>>, vector<1x512xf32>
    %4 = vector.broadcast %3 : vector<1x512xf32> to vector<256x512xf32>
    %5 = arith.addf %2, %4 : vector<256x512xf32>
    %cst_5 = arith.constant 0.000000e+00 : f32
    %6 = vector.broadcast %cst_5 : f32 to vector<256x512xf32>
    %7 = arith.cmpf ogt, %5, %6 : vector<256x512xf32>
    %cst_6 = arith.constant 2.000000e-01 : f32
    %8 = vector.broadcast %cst_6 : f32 to vector<256x512xf32>
    %9 = arith.mulf %8, %5 : vector<256x512xf32>
    %10 = arith.select %7, %5, %9 : vector<256x512xi1>, vector<256x512xf32>
    %11 = arith.truncf %10 : vector<256x512xf32> to vector<256x512xbf16>
    %c0_7 = arith.constant 0 : index
    %c0_8 = arith.constant 0 : index
    %12 = vector.load %arg4[%c0_7, %c0_8] : memref<512x256xbf16, #tpu.memory_space<vmem>>, vector<512x256xbf16>
    %cst_9 = arith.constant dense<0.000000e+00> : vector<256x256xf32>
    %13 = tpu.matmul %11, %12, %cst_9 {dimension_numbers = #tpu.dot_dimension_numbers<[1], [0], [0], [1], [0, 0, 1, 1], [], []>} : vector<256x512xbf16>, vector<512x256xbf16>, vector<256x256xf32> -> vector<256x256xf32>
    %c0_10 = arith.constant 0 : index
    %c0_11 = arith.constant 0 : index
    %14 = vector.load %arg5[%c0_10, %c0_11] : memref<1x256xf32, #tpu.memory_space<vmem>>, vector<1x256xf32>
    %15 = vector.broadcast %14 : vector<1x256xf32> to vector<256x256xf32>
    %16 = arith.addf %13, %15 : vector<256x256xf32>
    %cst_12 = arith.constant 0.000000e+00 : f32
    %17 = vector.broadcast %cst_12 : f32 to vector<256x256xf32>
    %18 = arith.cmpf ogt, %16, %17 : vector<256x256xf32>
    %cst_13 = arith.constant 2.000000e-01 : f32
    %19 = vector.broadcast %cst_13 : f32 to vector<256x256xf32>
    %20 = arith.mulf %19, %16 : vector<256x256xf32>
    %21 = arith.select %18, %16, %20 : vector<256x256xi1>, vector<256x256xf32>
    %22 = arith.truncf %21 : vector<256x256xf32> to vector<256x256xbf16>
    %c0_14 = arith.constant 0 : index
    %c0_15 = arith.constant 0 : index
    %23 = vector.load %arg6[%c0_14, %c0_15] : memref<256x128xbf16, #tpu.memory_space<vmem>>, vector<256x128xbf16>
    %cst_16 = arith.constant dense<0.000000e+00> : vector<256x128xf32>
    %24 = tpu.matmul %22, %23, %cst_16 {dimension_numbers = #tpu.dot_dimension_numbers<[1], [0], [0], [1], [0, 0, 1, 1], [], []>} : vector<256x256xbf16>, vector<256x128xbf16>, vector<256x128xf32> -> vector<256x128xf32>
    %c0_17 = arith.constant 0 : index
    %c0_18 = arith.constant 0 : index
    %25 = vector.load %arg7[%c0_17, %c0_18] : memref<1x128xf32, #tpu.memory_space<vmem>>, vector<1x128xf32>
    %26 = vector.broadcast %25 : vector<1x128xf32> to vector<256x128xf32>
    %27 = arith.addf %24, %26 : vector<256x128xf32>
    %cst_19 = arith.constant 0.000000e+00 : f32
    %28 = vector.broadcast %cst_19 : f32 to vector<256x128xf32>
    %29 = arith.cmpf ogt, %27, %28 : vector<256x128xf32>
    %cst_20 = arith.constant 2.000000e-01 : f32
    %30 = vector.broadcast %cst_20 : f32 to vector<256x128xf32>
    %31 = arith.mulf %30, %27 : vector<256x128xf32>
    %32 = arith.select %29, %27, %31 : vector<256x128xi1>, vector<256x128xf32>
    %33 = tpu.transpose %32, [1, 0] : vector<256x128xf32> -> vector<128x256xf32>
    %c0_21 = arith.constant 0 : index
    %c0_22 = arith.constant 0 : index
    %34 = vector.load %arg8[%c0_21, %c0_22] : memref<128x1xf32, #tpu.memory_space<vmem>>, vector<128x1xf32>
    %35 = vector.broadcast %34 : vector<128x1xf32> to vector<128x256xf32>
    %36 = arith.mulf %33, %35 : vector<128x256xf32>
    %cst_23 = arith.constant dense<0.000000e+00> : vector<256xf32>
    %37 = vector.multi_reduction <add>, %36, %cst_23 [0] : vector<128x256xf32> to vector<256xf32>
    %38 = vector.shape_cast %37 : vector<256xf32> to vector<1x256xf32>
    %c0_24 = arith.constant 0 : index
    %c0_25 = arith.constant 0 : index
    %39 = vector.load %arg9[%c0_24, %c0_25] : memref<1x1xf32, #tpu.memory_space<vmem>>, vector<1x1xf32>
    %40 = vector.broadcast %39 : vector<1x1xf32> to vector<1x256xf32>
    %41 = arith.addf %38, %40 : vector<1x256xf32>
    %c0_26 = arith.constant 0 : index
    %c0_27 = arith.constant 0 : index
    %42 = vector.load %arg10[%c0_26, %c0_27] : memref<1x256xf32, #tpu.memory_space<vmem>>, vector<1x256xf32>
    tpu.vector_store %arg10[%c0_26, %c0_27], %41 {strides = array<i32>} : memref<1x256xf32, #tpu.memory_space<vmem>>, vector<1x256xf32>,
    return
  }
  func.func @transform_0(%arg0: i32) -> (i32, i32) {
    %c0_i32 = arith.constant 0 : i32
    %c0_i32_0 = arith.constant 0 : i32
    return %arg0, %c0_i32 : i32, i32
  }
  func.func @transform_1(%arg0: i32) -> (i32, i32) {
    %c0_i32 = arith.constant 0 : i32
    %c0_i32_0 = arith.constant 0 : i32
    %c0_i32_1 = arith.constant 0 : i32
    return %c0_i32, %c0_i32_0 : i32, i32
  }
  func.func @transform_2(%arg0: i32) -> (i32, i32) {
    %c0_i32 = arith.constant 0 : i32
    %c0_i32_0 = arith.constant 0 : i32
    %c0_i32_1 = arith.constant 0 : i32
    return %c0_i32, %c0_i32_0 : i32, i32
  }
  func.func @transform_3(%arg0: i32) -> (i32, i32) {
    %c0_i32 = arith.constant 0 : i32
    %c0_i32_0 = arith.constant 0 : i32
    %c0_i32_1 = arith.constant 0 : i32
    return %c0_i32, %c0_i32_0 : i32, i32
  }
  func.func @transform_4(%arg0: i32) -> (i32, i32) {
    %c0_i32 = arith.constant 0 : i32
    %c0_i32_0 = arith.constant 0 : i32
    %c0_i32_1 = arith.constant 0 : i32
    return %c0_i32, %c0_i32_0 : i32, i32
  }
  func.func @transform_5(%arg0: i32) -> (i32, i32) {
    %c0_i32 = arith.constant 0 : i32
    %c0_i32_0 = arith.constant 0 : i32
    %c0_i32_1 = arith.constant 0 : i32
    return %c0_i32, %c0_i32_0 : i32, i32
  }
  func.func @transform_6(%arg0: i32) -> (i32, i32) {
    %c0_i32 = arith.constant 0 : i32
    %c0_i32_0 = arith.constant 0 : i32
    %c0_i32_1 = arith.constant 0 : i32
    return %c0_i32, %c0_i32_0 : i32, i32
  }
  func.func @transform_7(%arg0: i32) -> (i32, i32) {
    %c0_i32 = arith.constant 0 : i32
    %c0_i32_0 = arith.constant 0 : i32
    %c0_i32_1 = arith.constant 0 : i32
    return %c0_i32, %c0_i32_0 : i32, i32
  }
  func.func @transform_8(%arg0: i32) -> (i32, i32) {
    %c0_i32 = arith.constant 0 : i32
    %c0_i32_0 = arith.constant 0 : i32
    %c0_i32_1 = arith.constant 0 : i32
    return %c0_i32, %c0_i32_0 : i32, i32
  }
  func.func @transform_9(%arg0: i32) -> (i32, i32) {
    %c0_i32 = arith.constant 0 : i32
    %c0_i32_0 = arith.constant 0 : i32
    return %c0_i32, %arg0 : i32, i32
  }
}

</mosaic_0001>

<llo_original>
// kernel: linear_discriminator.1
$region0: #{linear_discriminator.1}
  #allocation0 [shape = 'u32[]', space=smem, size = 0x4, offset = 0x4, fixed_abs, tag = 'smem constant byte address 0x4 - core index']
  #allocation1 [shape = 'u32[72,128]{1,0:T(1,128)}', space=vmem, size = 0x9000, scoped, tag = 'internal scratch']
  #allocation2 [shape = 'f32[1,1]{1,0:T(1,128)S(1)}', space=vmem, size = 0x200, scoped, tag = 'scoped memory for linear_discriminator.1']
  %s0 = inlined_call_operand.vmem [shape: bf16[256,896], index: 0, kind: input, shape index: {}]
  %s1 = inlined_call_operand.hbm [shape: bf16[896,512], index: 1, kind: input, shape index: {}]
  %s2 = inlined_call_operand.vmem [shape: f32[1,512], index: 2, kind: input, shape index: {}]
  %s3 = inlined_call_operand.vmem [shape: bf16[512,256], index: 3, kind: input, shape index: {}]
  %s4 = inlined_call_operand.vmem [shape: f32[1,256], index: 4, kind: input, shape index: {}]
  %s5 = inlined_call_operand.vmem [shape: bf16[256,128], index: 5, kind: input, shape index: {}]
  %s6 = inlined_call_operand.vmem [shape: f32[1,128], index: 6, kind: input, shape index: {}]
  %s7 = inlined_call_operand.vmem [shape: f32[128,1], index: 7, kind: input, shape index: {}]
  %s8 = inlined_call_operand.<no memory space> [shape: f32[1,1], index: 8, kind: input, shape index: {}]
  %s9 = inlined_call_operand.vmem [shape: f32[1,256], index: 9, kind: output, shape index: {}]
  %s10 = sld [smem:[#allocation0]]
  $region50: #{linear_discriminator.1} parent=0
    _
  %s12 = ssub.s32 1, %s10
  %s13 = scalar_select 0, %s12, %s10
  %v14 = vstv %s8
  %15 = vst [vmem:[#allocation2] sm:$0x1] %v14
  $region1: #{linear_discriminator.1} parent=0
    #allocation3 [shape = 'u8[917504]{0}', space=vmem, size = 0xe0000, scoped, tag = 'input window, operand 1, single buffered']
    #allocation4 [shape = 's32[1]{0}', space=sflag, size = 0x4, scoped, tag = 'scoped memory for linear_discriminator.1']
    %16 = vsyncpa [#allocation4], 0
    // Predicated region
    $region2: #{linear_discriminator.1} parent=1 // pred_check
      _
    $region3: #{linear_discriminator.1} parent=1 // pred_check_branch
      %18 = sbr.rel (0) target = $region5
    $region4: #{linear_discriminator.1} parent=1 // pred_region
      _
    $region5: #{linear_discriminator.1} parent=1 // pred_fallthru
      _
    // Predicated region
    $region6: #{linear_discriminator.1} parent=1 // pred_check
      _
    $region7: #{linear_discriminator.1} parent=1 // pred_check_branch
      %20 = sbr.rel (0) target = $region9
    $region8: #{linear_discriminator.1} parent=1 // pred_region
      %22 = vsyncadd [#allocation4], 0
      %s23 = sshll.u32 %s1, 4
      %s24 = int_to_ptr.hbm [resolvable:$true] %s23
      %s25 = sshll.u32 [#allocation3], 4
      %s26 = int_to_ptr.vmem [resolvable:$true] %s25
      %31 = dma.hbm_to_vmem [thread:$0]  %s24, 28672, %s26, [#allocation4], 256, 256, 16
    $region9: #{linear_discriminator.1} parent=1 // pred_fallthru
      _
    // Predicated region
    $region10: #{linear_discriminator.1} parent=1 // pred_check
      _
    $region11: #{linear_discriminator.1} parent=1 // pred_check_branch
      %33 = sbr.rel (0) target = $region13
    $region12: #{linear_discriminator.1} parent=1 // pred_region
      _
    $region13: #{linear_discriminator.1} parent=1 // pred_fallthru
      _
    // Predicated region
    $region14: #{linear_discriminator.1} parent=1 // pred_check
      _
    $region15: #{linear_discriminator.1} parent=1 // pred_check_branch
      %35 = sbr.rel (0) target = $region17
    $region16: #{linear_discriminator.1} parent=1 // pred_region
      _
    $region17: #{linear_discriminator.1} parent=1 // pred_fallthru
      _
    // Predicated region
    $region18: #{linear_discriminator.1} parent=1 // pred_check
      _
    $region19: #{linear_discriminator.1} parent=1 // pred_check_branch
      %37 = sbr.rel (0) target = $region21
    $region20: #{linear_discriminator.1} parent=1 // pred_region
      _
    $region21: #{linear_discriminator.1} parent=1 // pred_fallthru
      _
    // Predicated region
    $region22: #{linear_discriminator.1} parent=1 // pred_check
      _
    $region23: #{linear_discriminator.1} parent=1 // pred_check_branch
      %39 = sbr.rel (0) target = $region25
    $region24: #{linear_discriminator.1} parent=1 // pred_region
      _
    $region25: #{linear_discriminator.1} parent=1 // pred_fallthru
      _
    // Predicated region
    $region26: #{linear_discriminator.1} parent=1 // pred_check
      _
    $region27: #{linear_discriminator.1} parent=1 // pred_check_branch
      %41 = sbr.rel (0) target = $region29
    $region28: #{linear_discriminator.1} parent=1 // pred_region
      _
    $region29: #{linear_discriminator.1} parent=1 // pred_fallthru
      _
    // Predicated region
    $region30: #{linear_discriminator.1} parent=1 // pred_check
      _
    $region31: #{linear_discriminator.1} parent=1 // pred_check_branch
      %43 = sbr.rel (0) target = $region33
    $region32: #{linear_discriminator.1} parent=1 // pred_region
      _
    $region33: #{linear_discriminator.1} parent=1 // pred_fallthru
      _
    // Predicated region
    $region34: #{linear_discriminator.1} parent=1 // pred_check
      _
    $region35: #{linear_discriminator.1} parent=1 // pred_check_branch
      %45 = sbr.rel (0) target = $region37
    $region36: #{linear_discriminator.1} parent=1 // pred_region
      _
    $region37: #{linear_discriminator.1} parent=1 // pred_fallthru
      _
    // Predicated region
    $region38: #{linear_discriminator.1} parent=1 // pred_check
      _
    $region39: #{linear_discriminator.1} parent=1 // pred_check_branch
      %47 = sbr.rel (0) target = $region41
    $region40: #{linear_discriminator.1} parent=1 // pred_region
      %49 = dma.done [#allocation4], 28672
    $region41: #{linear_discriminator.1} parent=1 // pred_fallthru
      _
    %v50 = vld [vmem:[%s0] sm:$0xff]
    %v51 = vld [vmem:[%s0 + $0x8] sm:$0xff]
    %v52 = vld [vmem:[%s0 + $0x10] sm:$0xff]
    %v53 = vld [vmem:[%s0 + $0x18] sm:$0xf]
    %v54 = vld [vmem:[%s0 + $0x1c] sm:$0xff]
    %v55 = vld [vmem:[%s0 + $0x24] sm:$0xff]
    %v56 = vld [vmem:[%s0 + $0x2c] sm:$0xff]
    %v57 = vld [vmem:[%s0 + $0x34] sm:$0xf]
    %v58 = vld [vmem:[%s0 + $0x38] sm:$0xff]
    %v59 = vld [vmem:[%s0 + $0x40] sm:$0xff]
    %v60 = vld [vmem:[%s0 + $0x48] sm:$0xff]
    %v61 = vld [vmem:[%s0 + $0x50] sm:$0xf]
    %v62 = vld [vmem:[%s0 + $0x54] sm:$0xff]
    %v63 = vld [vmem:[%s0 + $0x5c] sm:$0xff]
    %v64 = vld [vmem:[%s0 + $0x64] sm:$0xff]
    %v65 = vld [vmem:[%s0 + $0x6c] sm:$0xf]
    %v66 = vld [vmem:[%s0 + $0x70] sm:$0xff]
    %v67 = vld [vmem:[%s0 + $0x78] sm:$0xff]
    %v68 = vld [vmem:[%s0 + $0x80] sm:$0xff]
    %v69 = vld [vmem:[%s0 + $0x88] sm:$0xf]
    %v70 = vld [vmem:[%s0 + $0x8c] sm:$0xff]
    %v71 = vld [vmem:[%s0 + $0x94] sm:$0xff]
    %v72 = vld [vmem:[%s0 + $0x9c] sm:$0xff]
    %v73 = vld [vmem:[%s0 + $0xa4] sm:$0xf]
    %v74 = vld [vmem:[%s0 + $0xa8] sm:$0xff]
    %v75 = vld [vmem:[%s0 + $0xb0] sm:$0xff]
    %v76 = vld [vmem:[%s0 + $0xb8] sm:$0xff]
    %v77 = vld [vmem:[%s0 + $0xc0] sm:$0xf]
    %v78 = vld [vmem:[%s0 + $0xc4] sm:$0xff]
    %v79 = vld [vmem:[%s0 + $0xcc] sm:$0xff]
    %v80 = vld [vmem:[%s0 + $0xd4] sm:$0xff]
    %v81 = vld [vmem:[%s0 + $0xdc] sm:$0xf]
    %v82 = vld [vmem:[%s0 + $0xe0] sm:$0xff]
    %v83 = vld [vmem:[%s0 + $0xe8] sm:$0xff]
    %v84 = vld [vmem:[%s0 + $0xf0] sm:$0xff]
    %v85 = vld [vmem:[%s0 + $0xf8] sm:$0xf]
    %v86 = vld [vmem:[%s0 + $0xfc] sm:$0xff]
    %v87 = vld [vmem:[%s0 + $0x104] sm:$0xff]
    %v88 = vld [vmem:[%s0 + $0x10c] sm:$0xff]
    %v89 = vld [vmem:[%s0 + $0x114] sm:$0xf]
    %v90 = vld [vmem:[%s0 + $0x118] sm:$0xff]
    %v91 = vld [vmem:[%s0 + $0x120] sm:$0xff]
    %v92 = vld [vmem:[%s0 + $0x128] sm:$0xff]
    %v93 = vld [vmem:[%s0 + $0x130] sm:$0xf]
    %v94 = vld [vmem:[%s0 + $0x134] sm:$0xff]
    %v95 = vld [vmem:[%s0 + $0x13c] sm:$0xff]
    %v96 = vld [vmem:[%s0 + $0x144] sm:$0xff]
    %v97 = vld [vmem:[%s0 + $0x14c] sm:$0xf]
    %v98 = vld [vmem:[%s0 + $0x150] sm:$0xff]
    %v99 = vld [vmem:[%s0 + $0x158] sm:$0xff]
    %v100 = vld [vmem:[%s0 + $0x160] sm:$0xff]
    %v101 = vld [vmem:[%s0 + $0x168] sm:$0xf]
    %v102 = vld [vmem:[%s0 + $0x16c] sm:$0xff]
    %v103 = vld [vmem:[%s0 + $0x174] sm:$0xff]
    %v104 = vld [vmem:[%s0 + $0x17c] sm:$0xff]
    %v105 = vld [vmem:[%s0 + $0x184] sm:$0xf]
    %v106 = vld [vmem:[%s0 + $0x188] sm:$0xff]
    %v107 = vld [vmem:[%s0 + $0x190] sm:$0xff]
    %v108 = vld [vmem:[%s0 + $0x198] sm:$0xff]
    %v109 = vld [vmem:[%s0 + $0x1a0] sm:$0xf]
    %v110 = vld [vmem:[%s0 + $0x1a4] sm:$0xff]
    %v111 = vld [vmem:[%s0 + $0x1ac] sm:$0xff]
    %v112 = vld [vmem:[%s0 + $0x1b4] sm:$0xff]
    %v113 = vld [vmem:[%s0 + $0x1bc] sm:$0xf]
    %v114 = vld [vmem:[%s0 + $0x1c0] sm:$0xff]
    %v115 = vld [vmem:[%s0 + $0x1c8] sm:$0xff]
    %v116 = vld [vmem:[%s0 + $0x1d0] sm:$0xff]
    %v117 = vld [vmem:[%s0 + $0x1d8] sm:$0xf]
    %v118 = vld [vmem:[%s0 + $0x1dc] sm:$0xff]
    %v119 = vld [vmem:[%s0 + $0x1e4] sm:$0xff]
    %v120 = vld [vmem:[%s0 + $0x1ec] sm:$0xff]
    %v121 = vld [vmem:[%s0 + $0x1f4] sm:$0xf]
    %v122 = vld [vmem:[%s0 + $0x1f8] sm:$0xff]
    %v123 = vld [vmem:[%s0 + $0x200] sm:$0xff]
    %v124 = vld [vmem:[%s0 + $0x208] sm:$0xff]
    %v125 = vld [vmem:[%s0 + $0x210] sm:$0xf]
    %v126 = vld [vmem:[%s0 + $0x214] sm:$0xff]
    %v127 = vld [vmem:[%s0 + $0x21c] sm:$0xff]
    %v128 = vld [vmem:[%s0 + $0x224] sm:$0xff]
    %v129 = vld [vmem:[%s0 + $0x22c] sm:$0xf]
    %v130 = vld [vmem:[%s0 + $0x230] sm:$0xff]
    %v131 = vld [vmem:[%s0 + $0x238] sm:$0xff]
    %v132 = vld [vmem:[%s0 + $0x240] sm:$0xff]
    %v133 = vld [vmem:[%s0 + $0x248] sm:$0xf]
    %v134 = vld [vmem:[%s0 + $0x24c] sm:$0xff]
    %v135 = vld [vmem:[%s0 + $0x254] sm:$0xff]
    %v136 = vld [vmem:[%s0 + $0x25c] sm:$0xff]
    %v137 = vld [vmem:[%s0 + $0x264] sm:$0xf]
    %v138 = vld [vmem:[%s0 + $0x268] sm:$0xff]
    %v139 = vld [vmem:[%s0 + $0x270] sm:$0xff]
    %v140 = vld [vmem:[%s0 + $0x278] sm:$0xff]
    %v141 = vld [vmem:[%s0 + $0x280] sm:$0xf]
    %v142 = vld [vmem:[%s0 + $0x284] sm:$0xff]
    %v143 = vld [vmem:[%s0 + $0x28c] sm:$0xff]
    %v144 = vld [vmem:[%s0 + $0x294] sm:$0xff]
    %v145 = vld [vmem:[%s0 + $0x29c] sm:$0xf]
    %v146 = vld [vmem:[%s0 + $0x2a0] sm:$0xff]
    %v147 = vld [vmem:[%s0 + $0x2a8] sm:$0xff]
    %v148 = vld [vmem:[%s0 + $0x2b0] sm:$0xff]
    %v149 = vld [vmem:[%s0 + $0x2b8] sm:$0xf]
    %v150 = vld [vmem:[%s0 + $0x2bc] sm:$0xff]
    %v151 = vld [vmem:[%s0 + $0x2c4] sm:$0xff]
    %v152 = vld [vmem:[%s0 + $0x2cc] sm:$0xff]
    %v153 = vld [vmem:[%s0 + $0x2d4] sm:$0xf]
    %v154 = vld [vmem:[%s0 + $0x2d8] sm:$0xff]
    %v155 = vld [vmem:[%s0 + $0x2e0] sm:$0xff]
    %v156 = vld [vmem:[%s0 + $0x2e8] sm:$0xff]
    %v157 = vld [vmem:[%s0 + $0x2f0] sm:$0xf]
    %v158 = vld [vmem:[%s0 + $0x2f4] sm:$0xff]
    %v159 = vld [vmem:[%s0 + $0x2fc] sm:$0xff]
    %v160 = vld [vmem:[%s0 + $0x304] sm:$0xff]
    %v161 = vld [vmem:[%s0 + $0x30c] sm:$0xf]
    %v162 = vld [vmem:[%s0 + $0x310] sm:$0xff]
    %v163 = vld [vmem:[%s0 + $0x318] sm:$0xff]
    %v164 = vld [vmem:[%s0 + $0x320] sm:$0xff]
    %v165 = vld [vmem:[%s0 + $0x328] sm:$0xf]
    %v166 = vld [vmem:[%s0 + $0x32c] sm:$0xff]
    %v167 = vld [vmem:[%s0 + $0x334] sm:$0xff]
    %v168 = vld [vmem:[%s0 + $0x33c] sm:$0xff]
    %v169 = vld [vmem:[%s0 + $0x344] sm:$0xf]
    %v170 = vld [vmem:[%s0 + $0x348] sm:$0xff]
    %v171 = vld [vmem:[%s0 + $0x350] sm:$0xff]
    %v172 = vld [vmem:[%s0 + $0x358] sm:$0xff]
    %v173 = vld [vmem:[%s0 + $0x360] sm:$0xf]
    %v174 = vld [vmem:[%s0 + $0x364] sm:$0xff]
    %v175 = vld [vmem:[%s0 + $0x36c] sm:$0xff]
    %v176 = vld [vmem:[%s0 + $0x374] sm:$0xff]
    %v177 = vld [vmem:[%s0 + $0x37c] sm:$0xf]
    %v178 = vld [vmem:[#allocation3] sm:$0xff]
    %v179 = vld [vmem:[#allocation3 + $0x8] sm:$0xff]
    %v180 = vld [vmem:[#allocation3 + $0x10] sm:$0xff]
    %v181 = vld [vmem:[#allocation3 + $0x18] sm:$0xff]
    %v182 = vld [vmem:[#allocation3 + $0x20] sm:$0xff]
    %v183 = vld [vmem:[#allocation3 + $0x28] sm:$0xff]
    %v184 = vld [vmem:[#allocation3 + $0x30] sm:$0xff]
    %v185 = vld [vmem:[#allocation3 + $0x38] sm:$0xff]
    %v186 = vld [vmem:[#allocation3 + $0x40] sm:$0xff]
    %v187 = vld [vmem:[#allocation3 + $0x48] sm:$0xff]
    %v188 = vld [vmem:[#allocation3 + $0x50] sm:$0xff]
    %v189 = vld [vmem:[#allocation3 + $0x58] sm:$0xff]
    %v190 = vld [vmem:[#allocation3 + $0x60] sm:$0xff]
    %v191 = vld [vmem:[#allocation3 + $0x68] sm:$0xff]
    %v192 = vld [vmem:[#allocation3 + $0x70] sm:$0xff]
    %v193 = vld [vmem:[#allocation3 + $0x78] sm:$0xff]
    %v194 = vld [vmem:[#allocation3 + $0x80] sm:$0xff]
    %v195 = vld [vmem:[#allocation3 + $0x88] sm:$0xff]
    %v196 = vld [vmem:[#allocation3 + $0x90] sm:$0xff]
    %v197 = vld [vmem:[#allocation3 + $0x98] sm:$0xff]
    %v198 = vld [vmem:[#allocation3 + $0xa0] sm:$0xff]
    %v199 = vld [vmem:[#allocation3 + $0xa8] sm:$0xff]
    %v200 = vld [vmem:[#allocation3 + $0xb0] sm:$0xff]
    %v201 = vld [vmem:[#allocation3 + $0xb8] sm:$0xff]
    %v202 = vld [vmem:[#allocation3 + $0xc0] sm:$0xff]
    %v203 = vld [vmem:[#allocation3 + $0xc8] sm:$0xff]
    %v204 = vld [vmem:[#allocation3 + $0xd0] sm:$0xff]
    %v205 = vld [vmem:[#allocation3 + $0xd8] sm:$0xff]
    %v206 = vld [vmem:[#allocation3 + $0xe0] sm:$0xff]
    %v207 = vld [vmem:[#allocation3 + $0xe8] sm:$0xff]
    %v208 = vld [vmem:[#allocation3 + $0xf0] sm:$0xff]
    %v209 = vld [vmem:[#allocation3 + $0xf8] sm:$0xff]
    %v210 = vld [vmem:[#allocation3 + $0x100] sm:$0xff]
    %v211 = vld [vmem:[#allocation3 + $0x108] sm:$0xff]
    %v212 = vld [vmem:[#allocation3 + $0x110] sm:$0xff]
    %v213 = vld [vmem:[#allocation3 + $0x118] sm:$0xff]
    %v214 = vld [vmem:[#allocation3 + $0x120] sm:$0xff]
    %v215 = vld [vmem:[#allocation3 + $0x128] sm:$0xff]
    %v216 = vld [vmem:[#allocation3 + $0x130] sm:$0xff]
    %v217 = vld [vmem:[#allocation3 + $0x138] sm:$0xff]
    %v218 = vld [vmem:[#allocation3 + $0x140] sm:$0xff]
    %v219 = vld [vmem:[#allocation3 + $0x148] sm:$0xff]
    %v220 = vld [vmem:[#allocation3 + $0x150] sm:$0xff]
    %v221 = vld [vmem:[#allocation3 + $0x158] sm:$0xff]
    %v222 = vld [vmem:[#allocation3 + $0x160] sm:$0xff]
    %v223 = vld [vmem:[#allocation3 + $0x168] sm:$0xff]
    %v224 = vld [vmem:[#allocation3 + $0x170] sm:$0xff]
    %v225 = vld [vmem:[#allocation3 + $0x178] sm:$0xff]
    %v226 = vld [vmem:[#allocation3 + $0x180] sm:$0xff]
    %v227 = vld [vmem:[#allocation3 + $0x188] sm:$0xff]
    %v228 = vld [vmem:[#allocation3 + $0x190] sm:$0xff]
    %v229 = vld [vmem:[#allocation3 + $0x198] sm:$0xff]
    %v230 = vld [vmem:[#allocation3 + $0x1a0] sm:$0xff]
    %v231 = vld [vmem:[#allocation3 + $0x1a8] sm:$0xff]
    %v232 = vld [vmem:[#allocation3 + $0x1b0] sm:$0xff]
    %v233 = vld [vmem:[#allocation3 + $0x1b8] sm:$0xff]
    %v234 = vld [vmem:[#allocation3 + $0x1c0] sm:$0xff]
    %v235 = vld [vmem:[#allocation3 + $0x1c8] sm:$0xff]
    %v236 = vld [vmem:[#allocation3 + $0x1d0] sm:$0xff]
    %v237 = vld [vmem:[#allocation3 + $0x1d8] sm:$0xff]
    %v238 = vld [vmem:[#allocation3 + $0x1e0] sm:$0xff]
    %v239 = vld [vmem:[#allocation3 + $0x1e8] sm:$0xff]
    %v240 = vld [vmem:[#allocation3 + $0x1f0] sm:$0xff]
    %v241 = vld [vmem:[#allocation3 + $0x1f8] sm:$0xff]
    %v242 = vld [vmem:[#allocation3 + $0x200] sm:$0xff]
    %v243 = vld [vmem:[#allocation3 + $0x208] sm:$0xff]
    %v244 = vld [vmem:[#allocation3 + $0x210] sm:$0xff]
    %v245 = vld [vmem:[#allocation3 + $0x218] sm:$0xff]
    %v246 = vld [vmem:[#allocation3 + $0x220] sm:$0xff]
    %v247 = vld [vmem:[#allocation3 + $0x228] sm:$0xff]
    %v248 = vld [vmem:[#allocation3 + $0x230] sm:$0xff]
    %v249 = vld [vmem:[#allocation3 + $0x238] sm:$0xff]
    %v250 = vld [vmem:[#allocation3 + $0x240] sm:$0xff]
    %v251 = vld [vmem:[#allocation3 + $0x248] sm:$0xff]
    %v252 = vld [vmem:[#allocation3 + $0x250] sm:$0xff]
    %v253 = vld [vmem:[#allocation3 + $0x258] sm:$0xff]
    %v254 = vld [vmem:[#allocation3 + $0x260] sm:$0xff]
    %v255 = vld [vmem:[#allocation3 + $0x268] sm:$0xff]
    %v256 = vld [vmem:[#allocation3 + $0x270] sm:$0xff]
    %v257 = vld [vmem:[#allocation3 + $0x278] sm:$0xff]
    %v258 = vld [vmem:[#allocation3 + $0x280] sm:$0xff]
    %v259 = vld [vmem:[#allocation3 + $0x288] sm:$0xff]
    %v260 = vld [vmem:[#allocation3 + $0x290] sm:$0xff]
    %v261 = vld [vmem:[#allocation3 + $0x298] sm:$0xff]
    %v262 = vld [vmem:[#allocation3 + $0x2a0] sm:$0xff]
    %v263 = vld [vmem:[#allocation3 + $0x2a8] sm:$0xff]
    %v264 = vld [vmem:[#allocation3 + $0x2b0] sm:$0xff]
    %v265 = vld [vmem:[#allocation3 + $0x2b8] sm:$0xff]
    %v266 = vld [vmem:[#allocation3 + $0x2c0] sm:$0xff]
    %v267 = vld [vmem:[#allocation3 + $0x2c8] sm:$0xff]
    %v268 = vld [vmem:[#allocation3 + $0x2d0] sm:$0xff]
    %v269 = vld [vmem:[#allocation3 + $0x2d8] sm:$0xff]
    %v270 = vld [vmem:[#allocation3 + $0x2e0] sm:$0xff]
    %v271 = vld [vmem:[#allocation3 + $0x2e8] sm:$0xff]
    %v272 = vld [vmem:[#allocation3 + $0x2f0] sm:$0xff]
    %v273 = vld [vmem:[#allocation3 + $0x2f8] sm:$0xff]
    %v274 = vld [vmem:[#allocation3 + $0x300] sm:$0xff]
    %v275 = vld [vmem:[#allocation3 + $0x308] sm:$0xff]
    %v276 = vld [vmem:[#allocation3 + $0x310] sm:$0xff]
    %v277 = vld [vmem:[#allocation3 + $0x318] sm:$0xff]
    %v278 = vld [vmem:[#allocation3 + $0x320] sm:$0xff]
    %v279 = vld [vmem:[#allocation3 + $0x328] sm:$0xff]
    %v280 = vld [vmem:[#allocation3 + $0x330] sm:$0xff]
    %v281 = vld [vmem:[#allocation3 + $0x338] sm:$0xff]
    %v282 = vld [vmem:[#allocation3 + $0x340] sm:$0xff]
    %v283 = vld [vmem:[#allocation3 + $0x348] sm:$0xff]
    %v284 = vld [vmem:[#allocation3 + $0x350] sm:$0xff]
    %v285 = vld [vmem:[#allocation3 + $0x358] sm:$0xff]
    %v286 = vld [vmem:[#allocation3 + $0x360] sm:$0xff]
    %v287 = vld [vmem:[#allocation3 + $0x368] sm:$0xff]
    %v288 = vld [vmem:[#allocation3 + $0x370] sm:$0xff]
    %v289 = vld [vmem:[#allocation3 + $0x378] sm:$0xff]
    %v290 = vld [vmem:[#allocation3 + $0x380] sm:$0xff]
    %v291 = vld [vmem:[#allocation3 + $0x388] sm:$0xff]
    %v292 = vld [vmem:[#allocation3 + $0x390] sm:$0xff]
    %v293 = vld [vmem:[#allocation3 + $0x398] sm:$0xff]
    %v294 = vld [vmem:[#allocation3 + $0x3a0] sm:$0xff]
    %v295 = vld [vmem:[#allocation3 + $0x3a8] sm:$0xff]
    %v296 = vld [vmem:[#allocation3 + $0x3b0] sm:$0xff]
    %v297 = vld [vmem:[#allocation3 + $0x3b8] sm:$0xff]
    %v298 = vld [vmem:[#allocation3 + $0x3c0] sm:$0xff]
    %v299 = vld [vmem:[#allocation3 + $0x3c8] sm:$0xff]
    %v300 = vld [vmem:[#allocation3 + $0x3d0] sm:$0xff]
    %v301 = vld [vmem:[#allocation3 + $0x3d8] sm:$0xff]
    %v302 = vld [vmem:[#allocation3 + $0x3e0] sm:$0xff]
    %v303 = vld [vmem:[#allocation3 + $0x3e8] sm:$0xff]
    %v304 = vld [vmem:[#allocation3 + $0x3f0] sm:$0xff]
    %v305 = vld [vmem:[#allocation3 + $0x3f8] sm:$0xff]
    %v306 = vld [vmem:[#allocation3 + $0x400] sm:$0xff]
    %v307 = vld [vmem:[#allocation3 + $0x408] sm:$0xff]
    %v308 = vld [vmem:[#allocation3 + $0x410] sm:$0xff]
    %v309 = vld [vmem:[#allocation3 + $0x418] sm:$0xff]
    %v310 = vld [vmem:[#allocation3 + $0x420] sm:$0xff]
    %v311 = vld [vmem:[#allocation3 + $0x428] sm:$0xff]
    %v312 = vld [vmem:[#allocation3 + $0x430] sm:$0xff]
    %v313 = vld [vmem:[#allocation3 + $0x438] sm:$0xff]
    %v314 = vld [vmem:[#allocation3 + $0x440] sm:$0xff]
    %v315 = vld [vmem:[#allocation3 + $0x448] sm:$0xff]
    %v316 = vld [vmem:[#allocation3 + $0x450] sm:$0xff]
    %v317 = vld [vmem:[#allocation3 + $0x458] sm:$0xff]
    %v318 = vld [vmem:[#allocation3 + $0x460] sm:$0xff]
    %v319 = vld [vmem:[#allocation3 + $0x468] sm:$0xff]
    %v320 = vld [vmem:[#allocation3 + $0x470] sm:$0xff]
    %v321 = vld [vmem:[#allocation3 + $0x478] sm:$0xff]
    %v322 = vld [vmem:[#allocation3 + $0x480] sm:$0xff]
    %v323 = vld [vmem:[#allocation3 + $0x488] sm:$0xff]
    %v324 = vld [vmem:[#allocation3 + $0x490] sm:$0xff]
    %v325 = vld [vmem:[#allocation3 + $0x498] sm:$0xff]
    %v326 = vld [vmem:[#allocation3 + $0x4a0] sm:$0xff]
    %v327 = vld [vmem:[#allocation3 + $0x4a8] sm:$0xff]
    %v328 = vld [vmem:[#allocation3 + $0x4b0] sm:$0xff]
    %v329 = vld [vmem:[#allocation3 + $0x4b8] sm:$0xff]
    %v330 = vld [vmem:[#allocation3 + $0x4c0] sm:$0xff]
    %v331 = vld [vmem:[#allocation3 + $0x4c8] sm:$0xff]
    %v332 = vld [vmem:[#allocation3 + $0x4d0] sm:$0xff]
    %v333 = vld [vmem:[#allocation3 + $0x4d8] sm:$0xff]
    %v334 = vld [vmem:[#allocation3 + $0x4e0] sm:$0xff]
    %v335 = vld [vmem:[#allocation3 + $0x4e8] sm:$0xff]
    %v336 = vld [vmem:[#allocation3 + $0x4f0] sm:$0xff]
    %v337 = vld [vmem:[#allocation3 + $0x4f8] sm:$0xff]
    %v338 = vld [vmem:[#allocation3 + $0x500] sm:$0xff]
    %v339 = vld [vmem:[#allocation3 + $0x508] sm:$0xff]
    %v340 = vld [vmem:[#allocation3 + $0x510] sm:$0xff]
    %v341 = vld [vmem:[#allocation3 + $0x518] sm:$0xff]
    %v342 = vld [vmem:[#allocation3 + $0x520] sm:$0xff]
    %v343 = vld [vmem:[#allocation3 + $0x528] sm:$0xff]
    %v344 = vld [vmem:[#allocation3 + $0x530] sm:$0xff]
    %v345 = vld [vmem:[#allocation3 + $0x538] sm:$0xff]
    %v346 = vld [vmem:[#allocation3 + $0x540] sm:$0xff]
    %v347 = vld [vmem:[#allocation3 + $0x548] sm:$0xff]
    %v348 = vld [vmem:[#allocation3 + $0x550] sm:$0xff]
    %v349 = vld [vmem:[#allocation3 + $0x558] sm:$0xff]
    %v350 = vld [vmem:[#allocation3 + $0x560] sm:$0xff]
    %v351 = vld [vmem:[#allocation3 + $0x568] sm:$0xff]
    %v352 = vld [vmem:[#allocation3 + $0x570] sm:$0xff]
    %v353 = vld [vmem:[#allocation3 + $0x578] sm:$0xff]
    %v354 = vld [vmem:[#allocation3 + $0x580] sm:$0xff]
    %v355 = vld [vmem:[#allocation3 + $0x588] sm:$0xff]
    %v356 = vld [vmem:[#allocation3 + $0x590] sm:$0xff]
    %v357 = vld [vmem:[#allocation3 + $0x598] sm:$0xff]
    %v358 = vld [vmem:[#allocation3 + $0x5a0] sm:$0xff]
    %v359 = vld [vmem:[#allocation3 + $0x5a8] sm:$0xff]
    %v360 = vld [vmem:[#allocation3 + $0x5b0] sm:$0xff]
    %v361 = vld [vmem:[#allocation3 + $0x5b8] sm:$0xff]
    %v362 = vld [vmem:[#allocation3 + $0x5c0] sm:$0xff]
    %v363 = vld [vmem:[#allocation3 + $0x5c8] sm:$0xff]
    %v364 = vld [vmem:[#allocation3 + $0x5d0] sm:$0xff]
    %v365 = vld [vmem:[#allocation3 + $0x5d8] sm:$0xff]
    %v366 = vld [vmem:[#allocation3 + $0x5e0] sm:$0xff]
    %v367 = vld [vmem:[#allocation3 + $0x5e8] sm:$0xff]
    %v368 = vld [vmem:[#allocation3 + $0x5f0] sm:$0xff]
    %v369 = vld [vmem:[#allocation3 + $0x5f8] sm:$0xff]
    %v370 = vld [vmem:[#allocation3 + $0x600] sm:$0xff]
    %v371 = vld [vmem:[#allocation3 + $0x608] sm:$0xff]
    %v372 = vld [vmem:[#allocation3 + $0x610] sm:$0xff]
    %v373 = vld [vmem:[#allocation3 + $0x618] sm:$0xff]
    %v374 = vld [vmem:[#allocation3 + $0x620] sm:$0xff]
    %v375 = vld [vmem:[#allocation3 + $0x628] sm:$0xff]
    %v376 = vld [vmem:[#allocation3 + $0x630] sm:$0xff]
    %v377 = vld [vmem:[#allocation3 + $0x638] sm:$0xff]
    %v378 = vld [vmem:[#allocation3 + $0x640] sm:$0xff]
    %v379 = vld [vmem:[#allocation3 + $0x648] sm:$0xff]
    %v380 = vld [vmem:[#allocation3 + $0x650] sm:$0xff]
    %v381 = vld [vmem:[#allocation3 + $0x658] sm:$0xff]
    %v382 = vld [vmem:[#allocation3 + $0x660] sm:$0xff]
    %v383 = vld [vmem:[#allocation3 + $0x668] sm:$0xff]
    %v384 = vld [vmem:[#allocation3 + $0x670] sm:$0xff]
    %v385 = vld [vmem:[#allocation3 + $0x678] sm:$0xff]
    %v386 = vld [vmem:[#allocation3 + $0x680] sm:$0xff]
    %v387 = vld [vmem:[#allocation3 + $0x688] sm:$0xff]
    %v388 = vld [vmem:[#allocation3 + $0x690] sm:$0xff]
    %v389 = vld [vmem:[#allocation3 + $0x698] sm:$0xff]
    %v390 = vld [vmem:[#allocation3 + $0x6a0] sm:$0xff]
    %v391 = vld [vmem:[#allocation3 + $0x6a8] sm:$0xff]
    %v392 = vld [vmem:[#allocation3 + $0x6b0] sm:$0xff]
    %v393 = vld [vmem:[#allocation3 + $0x6b8] sm:$0xff]
    %v394 = vld [vmem:[#allocation3 + $0x6c0] sm:$0xff]
    %v395 = vld [vmem:[#allocation3 + $0x6c8] sm:$0xff]
    %v396 = vld [vmem:[#allocation3 + $0x6d0] sm:$0xff]
    %v397 = vld [vmem:[#allocation3 + $0x6d8] sm:$0xff]
    %v398 = vld [vmem:[#allocation3 + $0x6e0] sm:$0xff]
    %v399 = vld [vmem:[#allocation3 + $0x6e8] sm:$0xff]
    %v400 = vld [vmem:[#allocation3 + $0x6f0] sm:$0xff]
    %v401 = vld [vmem:[#allocation3 + $0x6f8] sm:$0xff]
    %v402 = vld [vmem:[%s2] sm:$0xf]
    %v404 = vperm.slane %v402, 0
    %v405 = vperm.slane %v402, 1
    %v406 = vperm.slane %v402, 2
    %v407 = vperm.slane %v402, 3
    %v540 = vunpack.c.l.b16 %v50
    %v541 = vunpack.c.h.b16 %v50
    %v542 = vunpack.c.l.b16 %v51
    %v543 = vunpack.c.h.b16 %v51
    %v544 = vunpack.c.l.b16 %v52
    %v545 = vunpack.c.h.b16 %v52
    %v546 = vunpack.c.l.b16 %v53
    %v547 = vunpack.c.l.b16 %v54
    %v548 = vunpack.c.h.b16 %v54
    %v549 = vunpack.c.l.b16 %v55
    %v550 = vunpack.c.h.b16 %v55
    %v551 = vunpack.c.l.b16 %v56
    %v552 = vunpack.c.h.b16 %v56
    %v553 = vunpack.c.l.b16 %v57
    %v554 = vunpack.c.l.b16 %v58
    %v555 = vunpack.c.h.b16 %v58
    %v556 = vunpack.c.l.b16 %v59
    %v557 = vunpack.c.h.b16 %v59
    %v558 = vunpack.c.l.b16 %v60
    %v559 = vunpack.c.h.b16 %v60
    %v560 = vunpack.c.l.b16 %v61
    %v561 = vunpack.c.l.b16 %v62
    %v562 = vunpack.c.h.b16 %v62
    %v563 = vunpack.c.l.b16 %v63
    %v564 = vunpack.c.h.b16 %v63
    %v565 = vunpack.c.l.b16 %v64
    %v566 = vunpack.c.h.b16 %v64
    %v567 = vunpack.c.l.b16 %v65
    %v568 = vunpack.c.l.b16 %v66
    %v569 = vunpack.c.h.b16 %v66
    %v570 = vunpack.c.l.b16 %v67
    %v571 = vunpack.c.h.b16 %v67
    %v572 = vunpack.c.l.b16 %v68
    %v573 = vunpack.c.h.b16 %v68
    %v574 = vunpack.c.l.b16 %v69
    %v575 = vunpack.c.l.b16 %v70
    %v576 = vunpack.c.h.b16 %v70
    %v577 = vunpack.c.l.b16 %v71
    %v578 = vunpack.c.h.b16 %v71
    %v579 = vunpack.c.l.b16 %v72
    %v580 = vunpack.c.h.b16 %v72
    %v581 = vunpack.c.l.b16 %v73
    %v582 = vunpack.c.l.b16 %v74
    %v583 = vunpack.c.h.b16 %v74
    %v584 = vunpack.c.l.b16 %v75
    %v585 = vunpack.c.h.b16 %v75
    %v586 = vunpack.c.l.b16 %v76
    %v587 = vunpack.c.h.b16 %v76
    %v588 = vunpack.c.l.b16 %v77
    %v589 = vunpack.c.l.b16 %v78
    %v590 = vunpack.c.h.b16 %v78
    %v591 = vunpack.c.l.b16 %v79
    %v592 = vunpack.c.h.b16 %v79
    %v593 = vunpack.c.l.b16 %v80
    %v594 = vunpack.c.h.b16 %v80
    %v595 = vunpack.c.l.b16 %v81
    %v596 = vunpack.c.l.b16 %v82
    %v597 = vunpack.c.h.b16 %v82
    %v598 = vunpack.c.l.b16 %v83
    %v599 = vunpack.c.h.b16 %v83
    %v600 = vunpack.c.l.b16 %v84
    %v601 = vunpack.c.h.b16 %v84
    %v602 = vunpack.c.l.b16 %v85
    %v603 = vunpack.c.l.b16 %v86
    %v604 = vunpack.c.h.b16 %v86
    %v605 = vunpack.c.l.b16 %v87
    %v606 = vunpack.c.h.b16 %v87
    %v607 = vunpack.c.l.b16 %v88
    %v608 = vunpack.c.h.b16 %v88
    %v609 = vunpack.c.l.b16 %v89
    %v610 = vunpack.c.l.b16 %v90
    %v611 = vunpack.c.h.b16 %v90
    %v612 = vunpack.c.l.b16 %v91
    %v613 = vunpack.c.h.b16 %v91
    %v614 = vunpack.c.l.b16 %v92
    %v615 = vunpack.c.h.b16 %v92
    %v616 = vunpack.c.l.b16 %v93
    %v617 = vunpack.c.l.b16 %v94
    %v618 = vunpack.c.h.b16 %v94
    %v619 = vunpack.c.l.b16 %v95
    %v620 = vunpack.c.h.b16 %v95
    %v621 = vunpack.c.l.b16 %v96
    %v622 = vunpack.c.h.b16 %v96
    %v623 = vunpack.c.l.b16 %v97
    %v624 = vunpack.c.l.b16 %v98
    %v625 = vunpack.c.h.b16 %v98
    %v626 = vunpack.c.l.b16 %v99
    %v627 = vunpack.c.h.b16 %v99
    %v628 = vunpack.c.l.b16 %v100
    %v629 = vunpack.c.h.b16 %v100
    %v630 = vunpack.c.l.b16 %v101
    %v631 = vunpack.c.l.b16 %v102
    %v632 = vunpack.c.h.b16 %v102
    %v633 = vunpack.c.l.b16 %v103
    %v634 = vunpack.c.h.b16 %v103
    %v635 = vunpack.c.l.b16 %v104
    %v636 = vunpack.c.h.b16 %v104
    %v637 = vunpack.c.l.b16 %v105
    %v638 = vunpack.c.l.b16 %v106
    %v639 = vunpack.c.h.b16 %v106
    %v640 = vunpack.c.l.b16 %v107
    %v641 = vunpack.c.h.b16 %v107
    %v642 = vunpack.c.l.b16 %v108
    %v643 = vunpack.c.h.b16 %v108
    %v644 = vunpack.c.l.b16 %v109
    %v645 = vunpack.c.l.b16 %v110
    %v646 = vunpack.c.h.b16 %v110
    %v647 = vunpack.c.l.b16 %v111
    %v648 = vunpack.c.h.b16 %v111
    %v649 = vunpack.c.l.b16 %v112
    %v650 = vunpack.c.h.b16 %v112
    %v651 = vunpack.c.l.b16 %v113
    %v652 = vunpack.c.l.b16 %v114
    %v653 = vunpack.c.h.b16 %v114
    %v654 = vunpack.c.l.b16 %v115
    %v655 = vunpack.c.h.b16 %v115
    %v656 = vunpack.c.l.b16 %v116
    %v657 = vunpack.c.h.b16 %v116
    %v658 = vunpack.c.l.b16 %v117
    %v659 = vunpack.c.l.b16 %v118
    %v660 = vunpack.c.h.b16 %v118
    %v661 = vunpack.c.l.b16 %v119
    %v662 = vunpack.c.h.b16 %v119
    %v663 = vunpack.c.l.b16 %v120
    %v664 = vunpack.c.h.b16 %v120
    %v665 = vunpack.c.l.b16 %v121
    %v666 = vunpack.c.l.b16 %v122
    %v667 = vunpack.c.h.b16 %v122
    %v668 = vunpack.c.l.b16 %v123
    %v669 = vunpack.c.h.b16 %v123
    %v670 = vunpack.c.l.b16 %v124
    %v671 = vunpack.c.h.b16 %v124
    %v672 = vunpack.c.l.b16 %v125
    %v673 = vunpack.c.l.b16 %v126
    %v674 = vunpack.c.h.b16 %v126
    %v675 = vunpack.c.l.b16 %v127
    %v676 = vunpack.c.h.b16 %v127
    %v677 = vunpack.c.l.b16 %v128
    %v678 = vunpack.c.h.b16 %v128
    %v679 = vunpack.c.l.b16 %v129
    %v680 = vunpack.c.l.b16 %v130
    %v681 = vunpack.c.h.b16 %v130
    %v682 = vunpack.c.l.b16 %v131
    %v683 = vunpack.c.h.b16 %v131
    %v684 = vunpack.c.l.b16 %v132
    %v685 = vunpack.c.h.b16 %v132
    %v686 = vunpack.c.l.b16 %v133
    %v687 = vunpack.c.l.b16 %v134
    %v688 = vunpack.c.h.b16 %v134
    %v689 = vunpack.c.l.b16 %v135
    %v690 = vunpack.c.h.b16 %v135
    %v691 = vunpack.c.l.b16 %v136
    %v692 = vunpack.c.h.b16 %v136
    %v693 = vunpack.c.l.b16 %v137
    %v694 = vunpack.c.l.b16 %v138
    %v695 = vunpack.c.h.b16 %v138
    %v696 = vunpack.c.l.b16 %v139
    %v697 = vunpack.c.h.b16 %v139
    %v698 = vunpack.c.l.b16 %v140
    %v699 = vunpack.c.h.b16 %v140
    %v700 = vunpack.c.l.b16 %v141
    %v701 = vunpack.c.l.b16 %v142
    %v702 = vunpack.c.h.b16 %v142
    %v703 = vunpack.c.l.b16 %v143
    %v704 = vunpack.c.h.b16 %v143
    %v705 = vunpack.c.l.b16 %v144
    %v706 = vunpack.c.h.b16 %v144
    %v707 = vunpack.c.l.b16 %v145
    %v708 = vunpack.c.l.b16 %v146
    %v709 = vunpack.c.h.b16 %v146
    %v710 = vunpack.c.l.b16 %v147
    %v711 = vunpack.c.h.b16 %v147
    %v712 = vunpack.c.l.b16 %v148
    %v713 = vunpack.c.h.b16 %v148
    %v714 = vunpack.c.l.b16 %v149
    %v715 = vunpack.c.l.b16 %v150
    %v716 = vunpack.c.h.b16 %v150
    %v717 = vunpack.c.l.b16 %v151
    %v718 = vunpack.c.h.b16 %v151
    %v719 = vunpack.c.l.b16 %v152
    %v720 = vunpack.c.h.b16 %v152
    %v721 = vunpack.c.l.b16 %v153
    %v722 = vunpack.c.l.b16 %v154
    %v723 = vunpack.c.h.b16 %v154
    %v724 = vunpack.c.l.b16 %v155
    %v725 = vunpack.c.h.b16 %v155
    %v726 = vunpack.c.l.b16 %v156
    %v727 = vunpack.c.h.b16 %v156
    %v728 = vunpack.c.l.b16 %v157
    %v729 = vunpack.c.l.b16 %v158
    %v730 = vunpack.c.h.b16 %v158
    %v731 = vunpack.c.l.b16 %v159
    %v732 = vunpack.c.h.b16 %v159
    %v733 = vunpack.c.l.b16 %v160
    %v734 = vunpack.c.h.b16 %v160
    %v735 = vunpack.c.l.b16 %v161
    %v736 = vunpack.c.l.b16 %v162
    %v737 = vunpack.c.h.b16 %v162
    %v738 = vunpack.c.l.b16 %v163
    %v739 = vunpack.c.h.b16 %v163
    %v740 = vunpack.c.l.b16 %v164
    %v741 = vunpack.c.h.b16 %v164
    %v742 = vunpack.c.l.b16 %v165
    %v743 = vunpack.c.l.b16 %v166
    %v744 = vunpack.c.h.b16 %v166
    %v745 = vunpack.c.l.b16 %v167
    %v746 = vunpack.c.h.b16 %v167
    %v747 = vunpack.c.l.b16 %v168
    %v748 = vunpack.c.h.b16 %v168
    %v749 = vunpack.c.l.b16 %v169
    %v750 = vunpack.c.l.b16 %v170
    %v751 = vunpack.c.h.b16 %v170
    %v752 = vunpack.c.l.b16 %v171
    %v753 = vunpack.c.h.b16 %v171
    %v754 = vunpack.c.l.b16 %v172
    %v755 = vunpack.c.h.b16 %v172
    %v756 = vunpack.c.l.b16 %v173
    %v757 = vunpack.c.l.b16 %v174
    %v758 = vunpack.c.h.b16 %v174
    %v759 = vunpack.c.l.b16 %v175
    %v760 = vunpack.c.h.b16 %v175
    %v761 = vunpack.c.l.b16 %v176
    %v762 = vunpack.c.h.b16 %v176
    %v763 = vunpack.c.l.b16 %v177
    %v764 = vpack.c.b16 %v547, %v540
    %v765 = vpack.c.b16 %v548, %v541
    %v766 = vpack.c.b16 %v549, %v542
    %v767 = vpack.c.b16 %v550, %v543
    %v768 = vpack.c.b16 %v551, %v544
    %v769 = vpack.c.b16 %v552, %v545
    %v770 = vpack.c.b16 %v553, %v546
    %v771 = vpack.c.b16 %v561, %v554
    %v772 = vpack.c.b16 %v562, %v555
    %v773 = vpack.c.b16 %v563, %v556
    %v774 = vpack.c.b16 %v564, %v557
    %v775 = vpack.c.b16 %v565, %v558
    %v776 = vpack.c.b16 %v566, %v559
    %v777 = vpack.c.b16 %v567, %v560
    %v778 = vpack.c.b16 %v575, %v568
    %v779 = vpack.c.b16 %v576, %v569
    %v780 = vpack.c.b16 %v577, %v570
    %v781 = vpack.c.b16 %v578, %v571
    %v782 = vpack.c.b16 %v579, %v572
    %v783 = vpack.c.b16 %v580, %v573
    %v784 = vpack.c.b16 %v581, %v574
    %v785 = vpack.c.b16 %v589, %v582
    %v786 = vpack.c.b16 %v590, %v583
    %v787 = vpack.c.b16 %v591, %v584
    %v788 = vpack.c.b16 %v592, %v585
    %v789 = vpack.c.b16 %v593, %v586
    %v790 = vpack.c.b16 %v594, %v587
    %v791 = vpack.c.b16 %v595, %v588
    %v792 = vpack.c.b16 %v603, %v596
    %v793 = vpack.c.b16 %v604, %v597
    %v794 = vpack.c.b16 %v605, %v598
    %v795 = vpack.c.b16 %v606, %v599
    %v796 = vpack.c.b16 %v607, %v600
    %v797 = vpack.c.b16 %v608, %v601
    %v798 = vpack.c.b16 %v609, %v602
    %v799 = vpack.c.b16 %v617, %v610
    %v800 = vpack.c.b16 %v618, %v611
    %v801 = vpack.c.b16 %v619, %v612
    %v802 = vpack.c.b16 %v620, %v613
    %v803 = vpack.c.b16 %v621, %v614
    %v804 = vpack.c.b16 %v622, %v615
    %v805 = vpack.c.b16 %v623, %v616
    %v806 = vpack.c.b16 %v631, %v624
    %v807 = vpack.c.b16 %v632, %v625
    %v808 = vpack.c.b16 %v633, %v626
    %v809 = vpack.c.b16 %v634, %v627
    %v810 = vpack.c.b16 %v635, %v628
    %v811 = vpack.c.b16 %v636, %v629
    %v812 = vpack.c.b16 %v637, %v630
    %v813 = vpack.c.b16 %v645, %v638
    %v814 = vpack.c.b16 %v646, %v639
    %v815 = vpack.c.b16 %v647, %v640
    %v816 = vpack.c.b16 %v648, %v641
    %v817 = vpack.c.b16 %v649, %v642
    %v818 = vpack.c.b16 %v650, %v643
    %v819 = vpack.c.b16 %v651, %v644
    %v820 = vpack.c.b16 %v659, %v652
    %v821 = vpack.c.b16 %v660, %v653
    %v822 = vpack.c.b16 %v661, %v654
    %v823 = vpack.c.b16 %v662, %v655
    %v824 = vpack.c.b16 %v663, %v656
    %v825 = vpack.c.b16 %v664, %v657
    %v826 = vpack.c.b16 %v665, %v658
    %v827 = vpack.c.b16 %v673, %v666
    %v828 = vpack.c.b16 %v674, %v667
    %v829 = vpack.c.b16 %v675, %v668
    %v830 = vpack.c.b16 %v676, %v669
    %v831 = vpack.c.b16 %v677, %v670
    %v832 = vpack.c.b16 %v678, %v671
    %v833 = vpack.c.b16 %v679, %v672
    %v834 = vpack.c.b16 %v687, %v680
    %v835 = vpack.c.b16 %v688, %v681
    %v836 = vpack.c.b16 %v689, %v682
    %v837 = vpack.c.b16 %v690, %v683
    %v838 = vpack.c.b16 %v691, %v684
    %v839 = vpack.c.b16 %v692, %v685
    %v840 = vpack.c.b16 %v693, %v686
    %v841 = vpack.c.b16 %v701, %v694
    %v842 = vpack.c.b16 %v702, %v695
    %v843 = vpack.c.b16 %v703, %v696
    %v844 = vpack.c.b16 %v704, %v697
    %v845 = vpack.c.b16 %v705, %v698
    %v846 = vpack.c.b16 %v706, %v699
    %v847 = vpack.c.b16 %v707, %v700
    %v848 = vpack.c.b16 %v715, %v708
    %v849 = vpack.c.b16 %v716, %v709
    %v850 = vpack.c.b16 %v717, %v710
    %v851 = vpack.c.b16 %v718, %v711
    %v852 = vpack.c.b16 %v719, %v712
    %v853 = vpack.c.b16 %v720, %v713
    %v854 = vpack.c.b16 %v721, %v714
    %v855 = vpack.c.b16 %v729, %v722
    %v856 = vpack.c.b16 %v730, %v723
    %v857 = vpack.c.b16 %v731, %v724
    %v858 = vpack.c.b16 %v732, %v725
    %v859 = vpack.c.b16 %v733, %v726
    %v860 = vpack.c.b16 %v734, %v727
    %v861 = vpack.c.b16 %v735, %v728
    %v862 = vpack.c.b16 %v743, %v736
    %v863 = vpack.c.b16 %v744, %v737
    %v864 = vpack.c.b16 %v745, %v738
    %v865 = vpack.c.b16 %v746, %v739
    %v866 = vpack.c.b16 %v747, %v740
    %v867 = vpack.c.b16 %v748, %v741
    %v868 = vpack.c.b16 %v749, %v742
    %v869 = vpack.c.b16 %v757, %v750
    %v870 = vpack.c.b16 %v758, %v751
    %v871 = vpack.c.b16 %v759, %v752
    %v872 = vpack.c.b16 %v760, %v753
    %v873 = vpack.c.b16 %v761, %v754
    %v874 = vpack.c.b16 %v762, %v755
    %v875 = vpack.c.b16 %v763, %v756
    %v1212 = vunpack.c.l.b16 %v178
    %v1213 = vunpack.c.h.b16 %v178
    %v1214 = vunpack.c.l.b16 %v179
    %v1215 = vunpack.c.h.b16 %v179
    %v1216 = vunpack.c.l.b16 %v180
    %v1217 = vunpack.c.h.b16 %v180
    %v1218 = vunpack.c.l.b16 %v181
    %v1219 = vunpack.c.h.b16 %v181
    %v1220 = vunpack.c.l.b16 %v182
    %v1221 = vunpack.c.h.b16 %v182
    %v1222 = vunpack.c.l.b16 %v183
    %v1223 = vunpack.c.h.b16 %v183
    %v1224 = vunpack.c.l.b16 %v184
    %v1225 = vunpack.c.h.b16 %v184
    %v1226 = vunpack.c.l.b16 %v185
    %v1227 = vunpack.c.h.b16 %v185
    %v1228 = vunpack.c.l.b16 %v186
    %v1229 = vunpack.c.h.b16 %v186
    %v1230 = vunpack.c.l.b16 %v187
    %v1231 = vunpack.c.h.b16 %v187
    %v1232 = vunpack.c.l.b16 %v188
    %v1233 = vunpack.c.h.b16 %v188
    %v1234 = vunpack.c.l.b16 %v189
    %v1235 = vunpack.c.h.b16 %v189
    %v1236 = vunpack.c.l.b16 %v190
    %v1237 = vunpack.c.h.b16 %v190
    %v1238 = vunpack.c.l.b16 %v191
    %v1239 = vunpack.c.h.b16 %v191
    %v1240 = vunpack.c.l.b16 %v192
    %v1241 = vunpack.c.h.b16 %v192
    %v1242 = vunpack.c.l.b16 %v193
    %v1243 = vunpack.c.h.b16 %v193
    %v1244 = vunpack.c.l.b16 %v194
    %v1245 = vunpack.c.h.b16 %v194
    %v1246 = vunpack.c.l.b16 %v195
    %v1247 = vunpack.c.h.b16 %v195
    %v1248 = vunpack.c.l.b16 %v196
    %v1249 = vunpack.c.h.b16 %v196
    %v1250 = vunpack.c.l.b16 %v197
    %v1251 = vunpack.c.h.b16 %v197
    %v1252 = vunpack.c.l.b16 %v198
    %v1253 = vunpack.c.h.b16 %v198
    %v1254 = vunpack.c.l.b16 %v199
    %v1255 = vunpack.c.h.b16 %v199
    %v1256 = vunpack.c.l.b16 %v200
    %v1257 = vunpack.c.h.b16 %v200
    %v1258 = vunpack.c.l.b16 %v201
    %v1259 = vunpack.c.h.b16 %v201
    %v1260 = vunpack.c.l.b16 %v202
    %v1261 = vunpack.c.h.b16 %v202
    %v1262 = vunpack.c.l.b16 %v203
    %v1263 = vunpack.c.h.b16 %v203
    %v1264 = vunpack.c.l.b16 %v204
    %v1265 = vunpack.c.h.b16 %v204
    %v1266 = vunpack.c.l.b16 %v205
    %v1267 = vunpack.c.h.b16 %v205
    %v1268 = vunpack.c.l.b16 %v206
    %v1269 = vunpack.c.h.b16 %v206
    %v1270 = vunpack.c.l.b16 %v207
    %v1271 = vunpack.c.h.b16 %v207
    %v1272 = vunpack.c.l.b16 %v208
    %v1273 = vunpack.c.h.b16 %v208
    %v1274 = vunpack.c.l.b16 %v209
    %v1275 = vunpack.c.h.b16 %v209
    %v1276 = vunpack.c.l.b16 %v210
    %v1277 = vunpack.c.h.b16 %v210
    %v1278 = vunpack.c.l.b16 %v211
    %v1279 = vunpack.c.h.b16 %v211
    %v1280 = vunpack.c.l.b16 %v212
    %v1281 = vunpack.c.h.b16 %v212
    %v1282 = vunpack.c.l.b16 %v213
    %v1283 = vunpack.c.h.b16 %v213
    %v1284 = vunpack.c.l.b16 %v214
    %v1285 = vunpack.c.h.b16 %v214
    %v1286 = vunpack.c.l.b16 %v215
    %v1287 = vunpack.c.h.b16 %v215
    %v1288 = vunpack.c.l.b16 %v216
    %v1289 = vunpack.c.h.b16 %v216
    %v1290 = vunpack.c.l.b16 %v217
    %v1291 = vunpack.c.h.b16 %v217
    %v1292 = vunpack.c.l.b16 %v218
    %v1293 = vunpack.c.h.b16 %v218
    %v1294 = vunpack.c.l.b16 %v219
    %v1295 = vunpack.c.h.b16 %v219
    %v1296 = vunpack.c.l.b16 %v220
    %v1297 = vunpack.c.h.b16 %v220
    %v1298 = vunpack.c.l.b16 %v221
    %v1299 = vunpack.c.h.b16 %v221
    %v1300 = vunpack.c.l.b16 %v222
    %v1301 = vunpack.c.h.b16 %v222
    %v1302 = vunpack.c.l.b16 %v223
    %v1303 = vunpack.c.h.b16 %v223
    %v1304 = vunpack.c.l.b16 %v224
    %v1305 = vunpack.c.h.b16 %v224
    %v1306 = vunpack.c.l.b16 %v225
    %v1307 = vunpack.c.h.b16 %v225
    %v1308 = vunpack.c.l.b16 %v226
    %v1309 = vunpack.c.h.b16 %v226
    %v1310 = vunpack.c.l.b16 %v227
    %v1311 = vunpack.c.h.b16 %v227
    %v1312 = vunpack.c.l.b16 %v228
    %v1313 = vunpack.c.h.b16 %v228
    %v1314 = vunpack.c.l.b16 %v229
    %v1315 = vunpack.c.h.b16 %v229
    %v1316 = vunpack.c.l.b16 %v230
    %v1317 = vunpack.c.h.b16 %v230
    %v1318 = vunpack.c.l.b16 %v231
    %v1319 = vunpack.c.h.b16 %v231
    %v1320 = vunpack.c.l.b16 %v232
    %v1321 = vunpack.c.h.b16 %v232
    %v1322 = vunpack.c.l.b16 %v233
    %v1323 = vunpack.c.h.b16 %v233
    %v1324 = vunpack.c.l.b16 %v234
    %v1325 = vunpack.c.h.b16 %v234
    %v1326 = vunpack.c.l.b16 %v235
    %v1327 = vunpack.c.h.b16 %v235
    %v1328 = vunpack.c.l.b16 %v236
    %v1329 = vunpack.c.h.b16 %v236
    %v1330 = vunpack.c.l.b16 %v237
    %v1331 = vunpack.c.h.b16 %v237
    %v1332 = vunpack.c.l.b16 %v238
    %v1333 = vunpack.c.h.b16 %v238
    %v1334 = vunpack.c.l.b16 %v239
    %v1335 = vunpack.c.h.b16 %v239
    %v1336 = vunpack.c.l.b16 %v240
    %v1337 = vunpack.c.h.b16 %v240
    %v1338 = vunpack.c.l.b16 %v241
    %v1339 = vunpack.c.h.b16 %v241
    %v1340 = vunpack.c.l.b16 %v242
    %v1341 = vunpack.c.h.b16 %v242
    %v1342 = vunpack.c.l.b16 %v243
    %v1343 = vunpack.c.h.b16 %v243
    %v1344 = vunpack.c.l.b16 %v244
    %v1345 = vunpack.c.h.b16 %v244
    %v1346 = vunpack.c.l.b16 %v245
    %v1347 = vunpack.c.h.b16 %v245
    %v1348 = vunpack.c.l.b16 %v246
    %v1349 = vunpack.c.h.b16 %v246
    %v1350 = vunpack.c.l.b16 %v247
    %v1351 = vunpack.c.h.b16 %v247
    %v1352 = vunpack.c.l.b16 %v248
    %v1353 = vunpack.c.h.b16 %v248
    %v1354 = vunpack.c.l.b16 %v249
    %v1355 = vunpack.c.h.b16 %v249
    %v1356 = vunpack.c.l.b16 %v250
    %v1357 = vunpack.c.h.b16 %v250
    %v1358 = vunpack.c.l.b16 %v251
    %v1359 = vunpack.c.h.b16 %v251
    %v1360 = vunpack.c.l.b16 %v252
    %v1361 = vunpack.c.h.b16 %v252
    %v1362 = vunpack.c.l.b16 %v253
    %v1363 = vunpack.c.h.b16 %v253
    %v1364 = vunpack.c.l.b16 %v254
    %v1365 = vunpack.c.h.b16 %v254
    %v1366 = vunpack.c.l.b16 %v255
    %v1367 = vunpack.c.h.b16 %v255
    %v1368 = vunpack.c.l.b16 %v256
    %v1369 = vunpack.c.h.b16 %v256
    %v1370 = vunpack.c.l.b16 %v257
    %v1371 = vunpack.c.h.b16 %v257
    %v1372 = vunpack.c.l.b16 %v258
    %v1373 = vunpack.c.h.b16 %v258
    %v1374 = vunpack.c.l.b16 %v259
    %v1375 = vunpack.c.h.b16 %v259
    %v1376 = vunpack.c.l.b16 %v260
    %v1377 = vunpack.c.h.b16 %v260
    %v1378 = vunpack.c.l.b16 %v261
    %v1379 = vunpack.c.h.b16 %v261
    %v1380 = vunpack.c.l.b16 %v262
    %v1381 = vunpack.c.h.b16 %v262
    %v1382 = vunpack.c.l.b16 %v263
    %v1383 = vunpack.c.h.b16 %v263
    %v1384 = vunpack.c.l.b16 %v264
    %v1385 = vunpack.c.h.b16 %v264
    %v1386 = vunpack.c.l.b16 %v265
    %v1387 = vunpack.c.h.b16 %v265
    %v1388 = vunpack.c.l.b16 %v266
    %v1389 = vunpack.c.h.b16 %v266
    %v1390 = vunpack.c.l.b16 %v267
    %v1391 = vunpack.c.h.b16 %v267
    %v1392 = vunpack.c.l.b16 %v268
    %v1393 = vunpack.c.h.b16 %v268
    %v1394 = vunpack.c.l.b16 %v269
    %v1395 = vunpack.c.h.b16 %v269
    %v1396 = vunpack.c.l.b16 %v270
    %v1397 = vunpack.c.h.b16 %v270
    %v1398 = vunpack.c.l.b16 %v271
    %v1399 = vunpack.c.h.b16 %v271
    %v1400 = vunpack.c.l.b16 %v272
    %v1401 = vunpack.c.h.b16 %v272
    %v1402 = vunpack.c.l.b16 %v273
    %v1403 = vunpack.c.h.b16 %v273
    %v1404 = vunpack.c.l.b16 %v274
    %v1405 = vunpack.c.h.b16 %v274
    %v1406 = vunpack.c.l.b16 %v275
    %v1407 = vunpack.c.h.b16 %v275
    %v1408 = vunpack.c.l.b16 %v276
    %v1409 = vunpack.c.h.b16 %v276
    %v1410 = vunpack.c.l.b16 %v277
    %v1411 = vunpack.c.h.b16 %v277
    %v1412 = vunpack.c.l.b16 %v278
    %v1413 = vunpack.c.h.b16 %v278
    %v1414 = vunpack.c.l.b16 %v279
    %v1415 = vunpack.c.h.b16 %v279
    %v1416 = vunpack.c.l.b16 %v280
    %v1417 = vunpack.c.h.b16 %v280
    %v1418 = vunpack.c.l.b16 %v281
    %v1419 = vunpack.c.h.b16 %v281
    %v1420 = vunpack.c.l.b16 %v282
    %v1421 = vunpack.c.h.b16 %v282
    %v1422 = vunpack.c.l.b16 %v283
    %v1423 = vunpack.c.h.b16 %v283
    %v1424 = vunpack.c.l.b16 %v284
    %v1425 = vunpack.c.h.b16 %v284
    %v1426 = vunpack.c.l.b16 %v285
    %v1427 = vunpack.c.h.b16 %v285
    %v1428 = vunpack.c.l.b16 %v286
    %v1429 = vunpack.c.h.b16 %v286
    %v1430 = vunpack.c.l.b16 %v287
    %v1431 = vunpack.c.h.b16 %v287
    %v1432 = vunpack.c.l.b16 %v288
    %v1433 = vunpack.c.h.b16 %v288
    %v1434 = vunpack.c.l.b16 %v289
    %v1435 = vunpack.c.h.b16 %v289
    %v1436 = vunpack.c.l.b16 %v290
    %v1437 = vunpack.c.h.b16 %v290
    %v1438 = vunpack.c.l.b16 %v291
    %v1439 = vunpack.c.h.b16 %v291
    %v1440 = vunpack.c.l.b16 %v292
    %v1441 = vunpack.c.h.b16 %v292
    %v1442 = vunpack.c.l.b16 %v293
    %v1443 = vunpack.c.h.b16 %v293
    %v1444 = vunpack.c.l.b16 %v294
    %v1445 = vunpack.c.h.b16 %v294
    %v1446 = vunpack.c.l.b16 %v295
    %v1447 = vunpack.c.h.b16 %v295
    %v1448 = vunpack.c.l.b16 %v296
    %v1449 = vunpack.c.h.b16 %v296
    %v1450 = vunpack.c.l.b16 %v297
    %v1451 = vunpack.c.h.b16 %v297
    %v1452 = vunpack.c.l.b16 %v298
    %v1453 = vunpack.c.h.b16 %v298
    %v1454 = vunpack.c.l.b16 %v299
    %v1455 = vunpack.c.h.b16 %v299
    %v1456 = vunpack.c.l.b16 %v300
    %v1457 = vunpack.c.h.b16 %v300
    %v1458 = vunpack.c.l.b16 %v301
    %v1459 = vunpack.c.h.b16 %v301
    %v1460 = vunpack.c.l.b16 %v302
    %v1461 = vunpack.c.h.b16 %v302
    %v1462 = vunpack.c.l.b16 %v303
    %v1463 = vunpack.c.h.b16 %v303
    %v1464 = vunpack.c.l.b16 %v304
    %v1465 = vunpack.c.h.b16 %v304
    %v1466 = vunpack.c.l.b16 %v305
    %v1467 = vunpack.c.h.b16 %v305
    %v1468 = vunpack.c.l.b16 %v306
    %v1469 = vunpack.c.h.b16 %v306
    %v1470 = vunpack.c.l.b16 %v307
    %v1471 = vunpack.c.h.b16 %v307
    %v1472 = vunpack.c.l.b16 %v308
    %v1473 = vunpack.c.h.b16 %v308
    %v1474 = vunpack.c.l.b16 %v309
    %v1475 = vunpack.c.h.b16 %v309
    %v1476 = vunpack.c.l.b16 %v310
    %v1477 = vunpack.c.h.b16 %v310
    %v1478 = vunpack.c.l.b16 %v311
    %v1479 = vunpack.c.h.b16 %v311
    %v1480 = vunpack.c.l.b16 %v312
    %v1481 = vunpack.c.h.b16 %v312
    %v1482 = vunpack.c.l.b16 %v313
    %v1483 = vunpack.c.h.b16 %v313
    %v1484 = vunpack.c.l.b16 %v314
    %v1485 = vunpack.c.h.b16 %v314
    %v1486 = vunpack.c.l.b16 %v315
    %v1487 = vunpack.c.h.b16 %v315
    %v1488 = vunpack.c.l.b16 %v316
    %v1489 = vunpack.c.h.b16 %v316
    %v1490 = vunpack.c.l.b16 %v317
    %v1491 = vunpack.c.h.b16 %v317
    %v1492 = vunpack.c.l.b16 %v318
    %v1493 = vunpack.c.h.b16 %v318
    %v1494 = vunpack.c.l.b16 %v319
    %v1495 = vunpack.c.h.b16 %v319
    %v1496 = vunpack.c.l.b16 %v320
    %v1497 = vunpack.c.h.b16 %v320
    %v1498 = vunpack.c.l.b16 %v321
    %v1499 = vunpack.c.h.b16 %v321
    %v1500 = vunpack.c.l.b16 %v322
    %v1501 = vunpack.c.h.b16 %v322
    %v1502 = vunpack.c.l.b16 %v323
    %v1503 = vunpack.c.h.b16 %v323
    %v1504 = vunpack.c.l.b16 %v324
    %v1505 = vunpack.c.h.b16 %v324
    %v1506 = vunpack.c.l.b16 %v325
    %v1507 = vunpack.c.h.b16 %v325
    %v1508 = vunpack.c.l.b16 %v326
    %v1509 = vunpack.c.h.b16 %v326
    %v1510 = vunpack.c.l.b16 %v327
    %v1511 = vunpack.c.h.b16 %v327
    %v1512 = vunpack.c.l.b16 %v328
    %v1513 = vunpack.c.h.b16 %v328
    %v1514 = vunpack.c.l.b16 %v329
    %v1515 = vunpack.c.h.b16 %v329
    %v1516 = vunpack.c.l.b16 %v330
    %v1517 = vunpack.c.h.b16 %v330
    %v1518 = vunpack.c.l.b16 %v331
    %v1519 = vunpack.c.h.b16 %v331
    %v1520 = vunpack.c.l.b16 %v332
    %v1521 = vunpack.c.h.b16 %v332
    %v1522 = vunpack.c.l.b16 %v333
    %v1523 = vunpack.c.h.b16 %v333
    %v1524 = vunpack.c.l.b16 %v334
    %v1525 = vunpack.c.h.b16 %v334
    %v1526 = vunpack.c.l.b16 %v335
    %v1527 = vunpack.c.h.b16 %v335
    %v1528 = vunpack.c.l.b16 %v336
    %v1529 = vunpack.c.h.b16 %v336
    %v1530 = vunpack.c.l.b16 %v337
    %v1531 = vunpack.c.h.b16 %v337
    %v1532 = vunpack.c.l.b16 %v338
    %v1533 = vunpack.c.h.b16 %v338
    %v1534 = vunpack.c.l.b16 %v339
    %v1535 = vunpack.c.h.b16 %v339
    %v1536 = vunpack.c.l.b16 %v340
    %v1537 = vunpack.c.h.b16 %v340
    %v1538 = vunpack.c.l.b16 %v341
    %v1539 = vunpack.c.h.b16 %v341
    %v1540 = vunpack.c.l.b16 %v342
    %v1541 = vunpack.c.h.b16 %v342
    %v1542 = vunpack.c.l.b16 %v343
    %v1543 = vunpack.c.h.b16 %v343
    %v1544 = vunpack.c.l.b16 %v344
    %v1545 = vunpack.c.h.b16 %v344
    %v1546 = vunpack.c.l.b16 %v345
    %v1547 = vunpack.c.h.b16 %v345
    %v1548 = vunpack.c.l.b16 %v346
    %v1549 = vunpack.c.h.b16 %v346
    %v1550 = vunpack.c.l.b16 %v347
    %v1551 = vunpack.c.h.b16 %v347
    %v1552 = vunpack.c.l.b16 %v348
    %v1553 = vunpack.c.h.b16 %v348
    %v1554 = vunpack.c.l.b16 %v349
    %v1555 = vunpack.c.h.b16 %v349
    %v1556 = vunpack.c.l.b16 %v350
    %v1557 = vunpack.c.h.b16 %v350
    %v1558 = vunpack.c.l.b16 %v351
    %v1559 = vunpack.c.h.b16 %v351
    %v1560 = vunpack.c.l.b16 %v352
    %v1561 = vunpack.c.h.b16 %v352
    %v1562 = vunpack.c.l.b16 %v353
    %v1563 = vunpack.c.h.b16 %v353
    %v1564 = vunpack.c.l.b16 %v354
    %v1565 = vunpack.c.h.b16 %v354
    %v1566 = vunpack.c.l.b16 %v355
    %v1567 = vunpack.c.h.b16 %v355
    %v1568 = vunpack.c.l.b16 %v356
    %v1569 = vunpack.c.h.b16 %v356
    %v1570 = vunpack.c.l.b16 %v357
    %v1571 = vunpack.c.h.b16 %v357
    %v1572 = vunpack.c.l.b16 %v358
    %v1573 = vunpack.c.h.b16 %v358
    %v1574 = vunpack.c.l.b16 %v359
    %v1575 = vunpack.c.h.b16 %v359
    %v1576 = vunpack.c.l.b16 %v360
    %v1577 = vunpack.c.h.b16 %v360
    %v1578 = vunpack.c.l.b16 %v361
    %v1579 = vunpack.c.h.b16 %v361
    %v1580 = vunpack.c.l.b16 %v362
    %v1581 = vunpack.c.h.b16 %v362
    %v1582 = vunpack.c.l.b16 %v363
    %v1583 = vunpack.c.h.b16 %v363
    %v1584 = vunpack.c.l.b16 %v364
    %v1585 = vunpack.c.h.b16 %v364
    %v1586 = vunpack.c.l.b16 %v365
    %v1587 = vunpack.c.h.b16 %v365
    %v1588 = vunpack.c.l.b16 %v366
    %v1589 = vunpack.c.h.b16 %v366
    %v1590 = vunpack.c.l.b16 %v367
    %v1591 = vunpack.c.h.b16 %v367
    %v1592 = vunpack.c.l.b16 %v368
    %v1593 = vunpack.c.h.b16 %v368
    %v1594 = vunpack.c.l.b16 %v369
    %v1595 = vunpack.c.h.b16 %v369
    %v1596 = vunpack.c.l.b16 %v370
    %v1597 = vunpack.c.h.b16 %v370
    %v1598 = vunpack.c.l.b16 %v371
    %v1599 = vunpack.c.h.b16 %v371
    %v1600 = vunpack.c.l.b16 %v372
    %v1601 = vunpack.c.h.b16 %v372
    %v1602 = vunpack.c.l.b16 %v373
    %v1603 = vunpack.c.h.b16 %v373
    %v1604 = vunpack.c.l.b16 %v374
    %v1605 = vunpack.c.h.b16 %v374
    %v1606 = vunpack.c.l.b16 %v375
    %v1607 = vunpack.c.h.b16 %v375
    %v1608 = vunpack.c.l.b16 %v376
    %v1609 = vunpack.c.h.b16 %v376
    %v1610 = vunpack.c.l.b16 %v377
    %v1611 = vunpack.c.h.b16 %v377
    %v1612 = vunpack.c.l.b16 %v378
    %v1613 = vunpack.c.h.b16 %v378
    %v1614 = vunpack.c.l.b16 %v379
    %v1615 = vunpack.c.h.b16 %v379
    %v1616 = vunpack.c.l.b16 %v380
    %v1617 = vunpack.c.h.b16 %v380
    %v1618 = vunpack.c.l.b16 %v381
    %v1619 = vunpack.c.h.b16 %v381
    %v1620 = vunpack.c.l.b16 %v382
    %v1621 = vunpack.c.h.b16 %v382
    %v1622 = vunpack.c.l.b16 %v383
    %v1623 = vunpack.c.h.b16 %v383
    %v1624 = vunpack.c.l.b16 %v384
    %v1625 = vunpack.c.h.b16 %v384
    %v1626 = vunpack.c.l.b16 %v385
    %v1627 = vunpack.c.h.b16 %v385
    %v1628 = vunpack.c.l.b16 %v386
    %v1629 = vunpack.c.h.b16 %v386
    %v1630 = vunpack.c.l.b16 %v387
    %v1631 = vunpack.c.h.b16 %v387
    %v1632 = vunpack.c.l.b16 %v388
    %v1633 = vunpack.c.h.b16 %v388
    %v1634 = vunpack.c.l.b16 %v389
    %v1635 = vunpack.c.h.b16 %v389
    %v1636 = vunpack.c.l.b16 %v390
    %v1637 = vunpack.c.h.b16 %v390
    %v1638 = vunpack.c.l.b16 %v391
    %v1639 = vunpack.c.h.b16 %v391
    %v1640 = vunpack.c.l.b16 %v392
    %v1641 = vunpack.c.h.b16 %v392
    %v1642 = vunpack.c.l.b16 %v393
    %v1643 = vunpack.c.h.b16 %v393
    %v1644 = vunpack.c.l.b16 %v394
    %v1645 = vunpack.c.h.b16 %v394
    %v1646 = vunpack.c.l.b16 %v395
    %v1647 = vunpack.c.h.b16 %v395
    %v1648 = vunpack.c.l.b16 %v396
    %v1649 = vunpack.c.h.b16 %v396
    %v1650 = vunpack.c.l.b16 %v397
    %v1651 = vunpack.c.h.b16 %v397
    %v1652 = vunpack.c.l.b16 %v398
    %v1653 = vunpack.c.h.b16 %v398
    %v1654 = vunpack.c.l.b16 %v399
    %v1655 = vunpack.c.h.b16 %v399
    %v1656 = vunpack.c.l.b16 %v400
    %v1657 = vunpack.c.h.b16 %v400
    %v1658 = vunpack.c.l.b16 %v401
    %v1659 = vunpack.c.h.b16 %v401
    %v1660 = vpack.c.b16 %v1216, %v1212
    %v1661 = vpack.c.b16 %v1217, %v1213
    %v1662 = vpack.c.b16 %v1218, %v1214
    %v1663 = vpack.c.b16 %v1219, %v1215
    %v1664 = vpack.c.b16 %v1224, %v1220
    %v1665 = vpack.c.b16 %v1225, %v1221
    %v1666 = vpack.c.b16 %v1226, %v1222
    %v1667 = vpack.c.b16 %v1227, %v1223
    %v1668 = vpack.c.b16 %v1232, %v1228
    %v1669 = vpack.c.b16 %v1233, %v1229
    %v1670 = vpack.c.b16 %v1234, %v1230
    %v1671 = vpack.c.b16 %v1235, %v1231
    %v1672 = vpack.c.b16 %v1240, %v1236
    %v1673 = vpack.c.b16 %v1241, %v1237
    %v1674 = vpack.c.b16 %v1242, %v1238
    %v1675 = vpack.c.b16 %v1243, %v1239
    %v1676 = vpack.c.b16 %v1248, %v1244
    %v1677 = vpack.c.b16 %v1249, %v1245
    %v1678 = vpack.c.b16 %v1250, %v1246
    %v1679 = vpack.c.b16 %v1251, %v1247
    %v1680 = vpack.c.b16 %v1256, %v1252
    %v1681 = vpack.c.b16 %v1257, %v1253
    %v1682 = vpack.c.b16 %v1258, %v1254
    %v1683 = vpack.c.b16 %v1259, %v1255
    %v1684 = vpack.c.b16 %v1264, %v1260
    %v1685 = vpack.c.b16 %v1265, %v1261
    %v1686 = vpack.c.b16 %v1266, %v1262
    %v1687 = vpack.c.b16 %v1267, %v1263
    %v1688 = vpack.c.b16 %v1272, %v1268
    %v1689 = vpack.c.b16 %v1273, %v1269
    %v1690 = vpack.c.b16 %v1274, %v1270
    %v1691 = vpack.c.b16 %v1275, %v1271
    %v1692 = vpack.c.b16 %v1280, %v1276
    %v1693 = vpack.c.b16 %v1281, %v1277
    %v1694 = vpack.c.b16 %v1282, %v1278
    %v1695 = vpack.c.b16 %v1283, %v1279
    %v1696 = vpack.c.b16 %v1288, %v1284
    %v1697 = vpack.c.b16 %v1289, %v1285
    %v1698 = vpack.c.b16 %v1290, %v1286
    %v1699 = vpack.c.b16 %v1291, %v1287
    %v1700 = vpack.c.b16 %v1296, %v1292
    %v1701 = vpack.c.b16 %v1297, %v1293
    %v1702 = vpack.c.b16 %v1298, %v1294
    %v1703 = vpack.c.b16 %v1299, %v1295
    %v1704 = vpack.c.b16 %v1304, %v1300
    %v1705 = vpack.c.b16 %v1305, %v1301
    %v1706 = vpack.c.b16 %v1306, %v1302
    %v1707 = vpack.c.b16 %v1307, %v1303
    %v1708 = vpack.c.b16 %v1312, %v1308
    %v1709 = vpack.c.b16 %v1313, %v1309
    %v1710 = vpack.c.b16 %v1314, %v1310
    %v1711 = vpack.c.b16 %v1315, %v1311
    %v1712 = vpack.c.b16 %v1320, %v1316
    %v1713 = vpack.c.b16 %v1321, %v1317
    %v1714 = vpack.c.b16 %v1322, %v1318
    %v1715 = vpack.c.b16 %v1323, %v1319
    %v1716 = vpack.c.b16 %v1328, %v1324
    %v1717 = vpack.c.b16 %v1329, %v1325
    %v1718 = vpack.c.b16 %v1330, %v1326
    %v1719 = vpack.c.b16 %v1331, %v1327
    %v1720 = vpack.c.b16 %v1336, %v1332
    %v1721 = vpack.c.b16 %v1337, %v1333
    %v1722 = vpack.c.b16 %v1338, %v1334
    %v1723 = vpack.c.b16 %v1339, %v1335
    %v1724 = vpack.c.b16 %v1344, %v1340
    %v1725 = vpack.c.b16 %v1345, %v1341
    %v1726 = vpack.c.b16 %v1346, %v1342
    %v1727 = vpack.c.b16 %v1347, %v1343
    %v1728 = vpack.c.b16 %v1352, %v1348
    %v1729 = vpack.c.b16 %v1353, %v1349
    %v1730 = vpack.c.b16 %v1354, %v1350
    %v1731 = vpack.c.b16 %v1355, %v1351
    %v1732 = vpack.c.b16 %v1360, %v1356
    %v1733 = vpack.c.b16 %v1361, %v1357
    %v1734 = vpack.c.b16 %v1362, %v1358
    %v1735 = vpack.c.b16 %v1363, %v1359
    %v1736 = vpack.c.b16 %v1368, %v1364
    %v1737 = vpack.c.b16 %v1369, %v1365
    %v1738 = vpack.c.b16 %v1370, %v1366
    %v1739 = vpack.c.b16 %v1371, %v1367
    %v1740 = vpack.c.b16 %v1376, %v1372
    %v1741 = vpack.c.b16 %v1377, %v1373
    %v1742 = vpack.c.b16 %v1378, %v1374
    %v1743 = vpack.c.b16 %v1379, %v1375
    %v1744 = vpack.c.b16 %v1384, %v1380
    %v1745 = vpack.c.b16 %v1385, %v1381
    %v1746 = vpack.c.b16 %v1386, %v1382
    %v1747 = vpack.c.b16 %v1387, %v1383
    %v1748 = vpack.c.b16 %v1392, %v1388
    %v1749 = vpack.c.b16 %v1393, %v1389
    %v1750 = vpack.c.b16 %v1394, %v1390
    %v1751 = vpack.c.b16 %v1395, %v1391
    %v1752 = vpack.c.b16 %v1400, %v1396
    %v1753 = vpack.c.b16 %v1401, %v1397
    %v1754 = vpack.c.b16 %v1402, %v1398
    %v1755 = vpack.c.b16 %v1403, %v1399
    %v1756 = vpack.c.b16 %v1408, %v1404
    %v1757 = vpack.c.b16 %v1409, %v1405
    %v1758 = vpack.c.b16 %v1410, %v1406
    %v1759 = vpack.c.b16 %v1411, %v1407
    %v1760 = vpack.c.b16 %v1416, %v1412
    %v1761 = vpack.c.b16 %v1417, %v1413
    %v1762 = vpack.c.b16 %v1418, %v1414
    %v1763 = vpack.c.b16 %v1419, %v1415
    %v1764 = vpack.c.b16 %v1424, %v1420
    %v1765 = vpack.c.b16 %v1425, %v1421
    %v1766 = vpack.c.b16 %v1426, %v1422
    %v1767 = vpack.c.b16 %v1427, %v1423
    %v1768 = vpack.c.b16 %v1432, %v1428
    %v1769 = vpack.c.b16 %v1433, %v1429
    %v1770 = vpack.c.b16 %v1434, %v1430
    %v1771 = vpack.c.b16 %v1435, %v1431
    %v1772 = vpack.c.b16 %v1440, %v1436
    %v1773 = vpack.c.b16 %v1441, %v1437
    %v1774 = vpack.c.b16 %v1442, %v1438
    %v1775 = vpack.c.b16 %v1443, %v1439
    %v1776 = vpack.c.b16 %v1448, %v1444
    %v1777 = vpack.c.b16 %v1449, %v1445
    %v1778 = vpack.c.b16 %v1450, %v1446
    %v1779 = vpack.c.b16 %v1451, %v1447
    %v1780 = vpack.c.b16 %v1456, %v1452
    %v1781 = vpack.c.b16 %v1457, %v1453
    %v1782 = vpack.c.b16 %v1458, %v1454
    %v1783 = vpack.c.b16 %v1459, %v1455
    %v1784 = vpack.c.b16 %v1464, %v1460
    %v1785 = vpack.c.b16 %v1465, %v1461
    %v1786 = vpack.c.b16 %v1466, %v1462
    %v1787 = vpack.c.b16 %v1467, %v1463
    %v1788 = vpack.c.b16 %v1472, %v1468
    %v1789 = vpack.c.b16 %v1473, %v1469
    %v1790 = vpack.c.b16 %v1474, %v1470
    %v1791 = vpack.c.b16 %v1475, %v1471
    %v1792 = vpack.c.b16 %v1480, %v1476
    %v1793 = vpack.c.b16 %v1481, %v1477
    %v1794 = vpack.c.b16 %v1482, %v1478
    %v1795 = vpack.c.b16 %v1483, %v1479
    %v1796 = vpack.c.b16 %v1488, %v1484
    %v1797 = vpack.c.b16 %v1489, %v1485
    %v1798 = vpack.c.b16 %v1490, %v1486
    %v1799 = vpack.c.b16 %v1491, %v1487
    %v1800 = vpack.c.b16 %v1496, %v1492
    %v1801 = vpack.c.b16 %v1497, %v1493
    %v1802 = vpack.c.b16 %v1498, %v1494
    %v1803 = vpack.c.b16 %v1499, %v1495
    %v1804 = vpack.c.b16 %v1504, %v1500
    %v1805 = vpack.c.b16 %v1505, %v1501
    %v1806 = vpack.c.b16 %v1506, %v1502
    %v1807 = vpack.c.b16 %v1507, %v1503
    %v1808 = vpack.c.b16 %v1512, %v1508
    %v1809 = vpack.c.b16 %v1513, %v1509
    %v1810 = vpack.c.b16 %v1514, %v1510
    %v1811 = vpack.c.b16 %v1515, %v1511
    %v1812 = vpack.c.b16 %v1520, %v1516
    %v1813 = vpack.c.b16 %v1521, %v1517
    %v1814 = vpack.c.b16 %v1522, %v1518
    %v1815 = vpack.c.b16 %v1523, %v1519
    %v1816 = vpack.c.b16 %v1528, %v1524
    %v1817 = vpack.c.b16 %v1529, %v1525
    %v1818 = vpack.c.b16 %v1530, %v1526
    %v1819 = vpack.c.b16 %v1531, %v1527
    %v1820 = vpack.c.b16 %v1536, %v1532
    %v1821 = vpack.c.b16 %v1537, %v1533
    %v1822 = vpack.c.b16 %v1538, %v1534
    %v1823 = vpack.c.b16 %v1539, %v1535
    %v1824 = vpack.c.b16 %v1544, %v1540
    %v1825 = vpack.c.b16 %v1545, %v1541
    %v1826 = vpack.c.b16 %v1546, %v1542
    %v1827 = vpack.c.b16 %v1547, %v1543
    %v1828 = vpack.c.b16 %v1552, %v1548
    %v1829 = vpack.c.b16 %v1553, %v1549
    %v1830 = vpack.c.b16 %v1554, %v1550
    %v1831 = vpack.c.b16 %v1555, %v1551
    %v1832 = vpack.c.b16 %v1560, %v1556
    %v1833 = vpack.c.b16 %v1561, %v1557
    %v1834 = vpack.c.b16 %v1562, %v1558
    %v1835 = vpack.c.b16 %v1563, %v1559
    %v1836 = vpack.c.b16 %v1568, %v1564
    %v1837 = vpack.c.b16 %v1569, %v1565
    %v1838 = vpack.c.b16 %v1570, %v1566
    %v1839 = vpack.c.b16 %v1571, %v1567
    %v1840 = vpack.c.b16 %v1576, %v1572
    %v1841 = vpack.c.b16 %v1577, %v1573
    %v1842 = vpack.c.b16 %v1578, %v1574
    %v1843 = vpack.c.b16 %v1579, %v1575
    %v1844 = vpack.c.b16 %v1584, %v1580
    %v1845 = vpack.c.b16 %v1585, %v1581
    %v1846 = vpack.c.b16 %v1586, %v1582
    %v1847 = vpack.c.b16 %v1587, %v1583
    %v1848 = vpack.c.b16 %v1592, %v1588
    %v1849 = vpack.c.b16 %v1593, %v1589
    %v1850 = vpack.c.b16 %v1594, %v1590
    %v1851 = vpack.c.b16 %v1595, %v1591
    %v1852 = vpack.c.b16 %v1600, %v1596
    %v1853 = vpack.c.b16 %v1601, %v1597
    %v1854 = vpack.c.b16 %v1602, %v1598
    %v1855 = vpack.c.b16 %v1603, %v1599
    %v1856 = vpack.c.b16 %v1608, %v1604
    %v1857 = vpack.c.b16 %v1609, %v1605
    %v1858 = vpack.c.b16 %v1610, %v1606
    %v1859 = vpack.c.b16 %v1611, %v1607
    %v1860 = vpack.c.b16 %v1616, %v1612
    %v1861 = vpack.c.b16 %v1617, %v1613
    %v1862 = vpack.c.b16 %v1618, %v1614
    %v1863 = vpack.c.b16 %v1619, %v1615
    %v1864 = vpack.c.b16 %v1624, %v1620
    %v1865 = vpack.c.b16 %v1625, %v1621
    %v1866 = vpack.c.b16 %v1626, %v1622
    %v1867 = vpack.c.b16 %v1627, %v1623
    %v1868 = vpack.c.b16 %v1632, %v1628
    %v1869 = vpack.c.b16 %v1633, %v1629
    %v1870 = vpack.c.b16 %v1634, %v1630
    %v1871 = vpack.c.b16 %v1635, %v1631
    %v1872 = vpack.c.b16 %v1640, %v1636
    %v1873 = vpack.c.b16 %v1641, %v1637
    %v1874 = vpack.c.b16 %v1642, %v1638
    %v1875 = vpack.c.b16 %v1643, %v1639
    %v1876 = vpack.c.b16 %v1648, %v1644
    %v1877 = vpack.c.b16 %v1649, %v1645
    %v1878 = vpack.c.b16 %v1650, %v1646
    %v1879 = vpack.c.b16 %v1651, %v1647
    %v1880 = vpack.c.b16 %v1656, %v1652
    %v1881 = vpack.c.b16 %v1657, %v1653
    %v1882 = vpack.c.b16 %v1658, %v1654
    %v1883 = vpack.c.b16 %v1659, %v1655
    %2108 = vmatpush.bf16.msra.mxu0 %v1688
    %2109 = vmatpush.bf16.msra.mxu0 %v1684
    %2110 = vmatpush.bf16.msra.mxu0 %v1680
    %2111 = vmatpush.bf16.msra.mxu0 %v1676
    %2112 = vmatpush.bf16.msra.mxu0 %v1672
    %2113 = vmatpush.bf16.msra.mxu0 %v1668
    %2114 = vmatpush.bf16.msra.mxu0 %v1664
    %2115 = vmatpush.bf16.msra.mxu0 %v1660
    %2116 = vmatmul.bf16.gmra.mxu0 %v764
    %v2117 = vpop.f32.mrf.mxu0
    %v2118 = vadd.f32 %v404, %v2117
    %v2119 = vpop.f32.mrf.mxu0
    %v2120 = vadd.f32 %v404, %v2119
    %2121 = vmatmul.bf16.gmra.mxu0 %v771
    %v2122 = vpop.f32.mrf.mxu0
    %v2123 = vadd.f32 %v404, %v2122
    %v2124 = vpop.f32.mrf.mxu0
    %v2125 = vadd.f32 %v404, %v2124
    %2126 = vmatmul.bf16.gmra.mxu0 %v778
    %v2127 = vpop.f32.mrf.mxu0
    %v2128 = vadd.f32 %v404, %v2127
    %v2129 = vpop.f32.mrf.mxu0
    %v2130 = vadd.f32 %v404, %v2129
    %2131 = vmatmul.bf16.gmra.mxu0 %v785
    %v2132 = vpop.f32.mrf.mxu0
    %v2133 = vadd.f32 %v404, %v2132
    %v2134 = vpop.f32.mrf.mxu0
    %v2135 = vadd.f32 %v404, %v2134
    %2136 = vmatmul.bf16.gmra.mxu0 %v792
    %v2137 = vpop.f32.mrf.mxu0
    %v2138 = vadd.f32 %v404, %v2137
    %v2139 = vpop.f32.mrf.mxu0
    %v2140 = vadd.f32 %v404, %v2139
    %2141 = vmatmul.bf16.gmra.mxu0 %v799
    %v2142 = vpop.f32.mrf.mxu0
    %v2143 = vadd.f32 %v404, %v2142
    %v2144 = vpop.f32.mrf.mxu0
    %v2145 = vadd.f32 %v404, %v2144
    %2146 = vmatmul.bf16.gmra.mxu0 %v806
    %v2147 = vpop.f32.mrf.mxu0
    %v2148 = vadd.f32 %v404, %v2147
    %v2149 = vpop.f32.mrf.mxu0
    %v2150 = vadd.f32 %v404, %v2149
    %2151 = vmatmul.bf16.gmra.mxu0 %v813
    %v2152 = vpop.f32.mrf.mxu0
    %v2153 = vadd.f32 %v404, %v2152
    %v2154 = vpop.f32.mrf.mxu0
    %v2155 = vadd.f32 %v404, %v2154
    %2156 = vmatmul.bf16.gmra.mxu0 %v820
    %v2157 = vpop.f32.mrf.mxu0
    %v2158 = vadd.f32 %v404, %v2157
    %v2159 = vpop.f32.mrf.mxu0
    %v2160 = vadd.f32 %v404, %v2159
    %2161 = vmatmul.bf16.gmra.mxu0 %v827
    %v2162 = vpop.f32.mrf.mxu0
    %v2163 = vadd.f32 %v404, %v2162
    %v2164 = vpop.f32.mrf.mxu0
    %v2165 = vadd.f32 %v404, %v2164
    %2166 = vmatmul.bf16.gmra.mxu0 %v834
    %v2167 = vpop.f32.mrf.mxu0
    %v2168 = vadd.f32 %v404, %v2167
    %v2169 = vpop.f32.mrf.mxu0
    %v2170 = vadd.f32 %v404, %v2169
    %2171 = vmatmul.bf16.gmra.mxu0 %v841
    %v2172 = vpop.f32.mrf.mxu0
    %v2173 = vadd.f32 %v404, %v2172
    %v2174 = vpop.f32.mrf.mxu0
    %v2175 = vadd.f32 %v404, %v2174
    %2176 = vmatmul.bf16.gmra.mxu0 %v848
    %v2177 = vpop.f32.mrf.mxu0
    %v2178 = vadd.f32 %v404, %v2177
    %v2179 = vpop.f32.mrf.mxu0
    %v2180 = vadd.f32 %v404, %v2179
    %2181 = vmatmul.bf16.gmra.mxu0 %v855
    %v2182 = vpop.f32.mrf.mxu0
    %v2183 = vadd.f32 %v404, %v2182
    %v2184 = vpop.f32.mrf.mxu0
    %v2185 = vadd.f32 %v404, %v2184
    %2186 = vmatmul.bf16.gmra.mxu0 %v862
    %v2187 = vpop.f32.mrf.mxu0
    %v2188 = vadd.f32 %v404, %v2187
    %v2189 = vpop.f32.mrf.mxu0
    %v2190 = vadd.f32 %v404, %v2189
    %2191 = vmatmul.bf16.gmra.mxu0 %v869
    %v2192 = vpop.f32.mrf.mxu0
    %v2193 = vadd.f32 %v404, %v2192
    %v2194 = vpop.f32.mrf.mxu0
    %v2195 = vadd.f32 %v404, %v2194
    %2196 = vdwg.mxu0
    %2197 = vmatpush.bf16.msra.mxu0 %v1720
    %2198 = vmatpush.bf16.msra.mxu0 %v1716
    %2199 = vmatpush.bf16.msra.mxu0 %v1712
    %2200 = vmatpush.bf16.msra.mxu0 %v1708
    %2201 = vmatpush.bf16.msra.mxu0 %v1704
    %2202 = vmatpush.bf16.msra.mxu0 %v1700
    %2203 = vmatpush.bf16.msra.mxu0 %v1696
    %2204 = vmatpush.bf16.msra.mxu0 %v1692
    %2205 = vmatmul.bf16.gmra.mxu0 %v765
    %v2206 = vpop.f32.mrf.mxu0
    %v2207 = vadd.f32 %v2118, %v2206
    %v2208 = vpop.f32.mrf.mxu0
    %v2209 = vadd.f32 %v2120, %v2208
    %2210 = vmatmul.bf16.gmra.mxu0 %v772
    %v2211 = vpop.f32.mrf.mxu0
    %v2212 = vadd.f32 %v2123, %v2211
    %v2213 = vpop.f32.mrf.mxu0
    %v2214 = vadd.f32 %v2125, %v2213
    %2215 = vmatmul.bf16.gmra.mxu0 %v779
    %v2216 = vpop.f32.mrf.mxu0
    %v2217 = vadd.f32 %v2128, %v2216
    %v2218 = vpop.f32.mrf.mxu0
    %v2219 = vadd.f32 %v2130, %v2218
    %2220 = vmatmul.bf16.gmra.mxu0 %v786
    %v2221 = vpop.f32.mrf.mxu0
    %v2222 = vadd.f32 %v2133, %v2221
    %v2223 = vpop.f32.mrf.mxu0
    %v2224 = vadd.f32 %v2135, %v2223
    %2225 = vmatmul.bf16.gmra.mxu0 %v793
    %v2226 = vpop.f32.mrf.mxu0
    %v2227 = vadd.f32 %v2138, %v2226
    %v2228 = vpop.f32.mrf.mxu0
    %v2229 = vadd.f32 %v2140, %v2228
    %2230 = vmatmul.bf16.gmra.mxu0 %v800
    %v2231 = vpop.f32.mrf.mxu0
    %v2232 = vadd.f32 %v2143, %v2231
    %v2233 = vpop.f32.mrf.mxu0
    %v2234 = vadd.f32 %v2145, %v2233
    %2235 = vmatmul.bf16.gmra.mxu0 %v807
    %v2236 = vpop.f32.mrf.mxu0
    %v2237 = vadd.f32 %v2148, %v2236
    %v2238 = vpop.f32.mrf.mxu0
    %v2239 = vadd.f32 %v2150, %v2238
    %2240 = vmatmul.bf16.gmra.mxu0 %v814
    %v2241 = vpop.f32.mrf.mxu0
    %v2242 = vadd.f32 %v2153, %v2241
    %v2243 = vpop.f32.mrf.mxu0
    %v2244 = vadd.f32 %v2155, %v2243
    %2245 = vmatmul.bf16.gmra.mxu0 %v821
    %v2246 = vpop.f32.mrf.mxu0
    %v2247 = vadd.f32 %v2158, %v2246
    %v2248 = vpop.f32.mrf.mxu0
    %v2249 = vadd.f32 %v2160, %v2248
    %2250 = vmatmul.bf16.gmra.mxu0 %v828
    %v2251 = vpop.f32.mrf.mxu0
    %v2252 = vadd.f32 %v2163, %v2251
    %v2253 = vpop.f32.mrf.mxu0
    %v2254 = vadd.f32 %v2165, %v2253
    %2255 = vmatmul.bf16.gmra.mxu0 %v835
    %v2256 = vpop.f32.mrf.mxu0
    %v2257 = vadd.f32 %v2168, %v2256
    %v2258 = vpop.f32.mrf.mxu0
    %v2259 = vadd.f32 %v2170, %v2258
    %2260 = vmatmul.bf16.gmra.mxu0 %v842
    %v2261 = vpop.f32.mrf.mxu0
    %v2262 = vadd.f32 %v2173, %v2261
    %v2263 = vpop.f32.mrf.mxu0
    %v2264 = vadd.f32 %v2175, %v2263
    %2265 = vmatmul.bf16.gmra.mxu0 %v849
    %v2266 = vpop.f32.mrf.mxu0
    %v2267 = vadd.f32 %v2178, %v2266
    %v2268 = vpop.f32.mrf.mxu0
    %v2269 = vadd.f32 %v2180, %v2268
    %2270 = vmatmul.bf16.gmra.mxu0 %v856
    %v2271 = vpop.f32.mrf.mxu0
    %v2272 = vadd.f32 %v2183, %v2271
    %v2273 = vpop.f32.mrf.mxu0
    %v2274 = vadd.f32 %v2185, %v2273
    %2275 = vmatmul.bf16.gmra.mxu0 %v863
    %v2276 = vpop.f32.mrf.mxu0
    %v2277 = vadd.f32 %v2188, %v2276
    %v2278 = vpop.f32.mrf.mxu0
    %v2279 = vadd.f32 %v2190, %v2278
    %2280 = vmatmul.bf16.gmra.mxu0 %v870
    %v2281 = vpop.f32.mrf.mxu0
    %v2282 = vadd.f32 %v2193, %v2281
    %v2283 = vpop.f32.mrf.mxu0
    %v2284 = vadd.f32 %v2195, %v2283
    %2285 = vdwg.mxu0
    %2286 = vmatpush.bf16.msra.mxu0 %v1752
    %2287 = vmatpush.bf16.msra.mxu0 %v1748
    %2288 = vmatpush.bf16.msra.mxu0 %v1744
    %2289 = vmatpush.bf16.msra.mxu0 %v1740
    %2290 = vmatpush.bf16.msra.mxu0 %v1736
    %2291 = vmatpush.bf16.msra.mxu0 %v1732
    %2292 = vmatpush.bf16.msra.mxu0 %v1728
    %2293 = vmatpush.bf16.msra.mxu0 %v1724
    %2294 = vmatmul.bf16.gmra.mxu0 %v766
    %v2295 = vpop.f32.mrf.mxu0
    %v2296 = vadd.f32 %v2207, %v2295
    %v2297 = vpop.f32.mrf.mxu0
    %v2298 = vadd.f32 %v2209, %v2297
    %2299 = vmatmul.bf16.gmra.mxu0 %v773
    %v2300 = vpop.f32.mrf.mxu0
    %v2301 = vadd.f32 %v2212, %v2300
    %v2302 = vpop.f32.mrf.mxu0
    %v2303 = vadd.f32 %v2214, %v2302
    %2304 = vmatmul.bf16.gmra.mxu0 %v780
    %v2305 = vpop.f32.mrf.mxu0
    %v2306 = vadd.f32 %v2217, %v2305
    %v2307 = vpop.f32.mrf.mxu0
    %v2308 = vadd.f32 %v2219, %v2307
    %2309 = vmatmul.bf16.gmra.mxu0 %v787
    %v2310 = vpop.f32.mrf.mxu0
    %v2311 = vadd.f32 %v2222, %v2310
    %v2312 = vpop.f32.mrf.mxu0
    %v2313 = vadd.f32 %v2224, %v2312
    %2314 = vmatmul.bf16.gmra.mxu0 %v794
    %v2315 = vpop.f32.mrf.mxu0
    %v2316 = vadd.f32 %v2227, %v2315
    %v2317 = vpop.f32.mrf.mxu0
    %v2318 = vadd.f32 %v2229, %v2317
    %2319 = vmatmul.bf16.gmra.mxu0 %v801
    %v2320 = vpop.f32.mrf.mxu0
    %v2321 = vadd.f32 %v2232, %v2320
    %v2322 = vpop.f32.mrf.mxu0
    %v2323 = vadd.f32 %v2234, %v2322
    %2324 = vmatmul.bf16.gmra.mxu0 %v808
    %v2325 = vpop.f32.mrf.mxu0
    %v2326 = vadd.f32 %v2237, %v2325
    %v2327 = vpop.f32.mrf.mxu0
    %v2328 = vadd.f32 %v2239, %v2327
    %2329 = vmatmul.bf16.gmra.mxu0 %v815
    %v2330 = vpop.f32.mrf.mxu0
    %v2331 = vadd.f32 %v2242, %v2330
    %v2332 = vpop.f32.mrf.mxu0
    %v2333 = vadd.f32 %v2244, %v2332
    %2334 = vmatmul.bf16.gmra.mxu0 %v822
    %v2335 = vpop.f32.mrf.mxu0
    %v2336 = vadd.f32 %v2247, %v2335
    %v2337 = vpop.f32.mrf.mxu0
    %v2338 = vadd.f32 %v2249, %v2337
    %2339 = vmatmul.bf16.gmra.mxu0 %v829
    %v2340 = vpop.f32.mrf.mxu0
    %v2341 = vadd.f32 %v2252, %v2340
    %v2342 = vpop.f32.mrf.mxu0
    %v2343 = vadd.f32 %v2254, %v2342
    %2344 = vmatmul.bf16.gmra.mxu0 %v836
    %v2345 = vpop.f32.mrf.mxu0
    %v2346 = vadd.f32 %v2257, %v2345
    %v2347 = vpop.f32.mrf.mxu0
    %v2348 = vadd.f32 %v2259, %v2347
    %2349 = vmatmul.bf16.gmra.mxu0 %v843
    %v2350 = vpop.f32.mrf.mxu0
    %v2351 = vadd.f32 %v2262, %v2350
    %v2352 = vpop.f32.mrf.mxu0
    %v2353 = vadd.f32 %v2264, %v2352
    %2354 = vmatmul.bf16.gmra.mxu0 %v850
    %v2355 = vpop.f32.mrf.mxu0
    %v2356 = vadd.f32 %v2267, %v2355
    %v2357 = vpop.f32.mrf.mxu0
    %v2358 = vadd.f32 %v2269, %v2357
    %2359 = vmatmul.bf16.gmra.mxu0 %v857
    %v2360 = vpop.f32.mrf.mxu0
    %v2361 = vadd.f32 %v2272, %v2360
    %v2362 = vpop.f32.mrf.mxu0
    %v2363 = vadd.f32 %v2274, %v2362
    %2364 = vmatmul.bf16.gmra.mxu0 %v864
    %v2365 = vpop.f32.mrf.mxu0
    %v2366 = vadd.f32 %v2277, %v2365
    %v2367 = vpop.f32.mrf.mxu0
    %v2368 = vadd.f32 %v2279, %v2367
    %2369 = vmatmul.bf16.gmra.mxu0 %v871
    %v2370 = vpop.f32.mrf.mxu0
    %v2371 = vadd.f32 %v2282, %v2370
    %v2372 = vpop.f32.mrf.mxu0
    %v2373 = vadd.f32 %v2284, %v2372
    %2374 = vdwg.mxu0
    %2375 = vmatpush.bf16.msra.mxu0 %v1784
    %2376 = vmatpush.bf16.msra.mxu0 %v1780
    %2377 = vmatpush.bf16.msra.mxu0 %v1776
    %2378 = vmatpush.bf16.msra.mxu0 %v1772
    %2379 = vmatpush.bf16.msra.mxu0 %v1768
    %2380 = vmatpush.bf16.msra.mxu0 %v1764
    %2381 = vmatpush.bf16.msra.mxu0 %v1760
    %2382 = vmatpush.bf16.msra.mxu0 %v1756
    %2383 = vmatmul.bf16.gmra.mxu0 %v767
    %v2384 = vpop.f32.mrf.mxu0
    %v2385 = vadd.f32 %v2296, %v2384
    %v2386 = vpop.f32.mrf.mxu0
    %v2387 = vadd.f32 %v2298, %v2386
    %2388 = vmatmul.bf16.gmra.mxu0 %v774
    %v2389 = vpop.f32.mrf.mxu0
    %v2390 = vadd.f32 %v2301, %v2389
    %v2391 = vpop.f32.mrf.mxu0
    %v2392 = vadd.f32 %v2303, %v2391
    %2393 = vmatmul.bf16.gmra.mxu0 %v781
    %v2394 = vpop.f32.mrf.mxu0
    %v2395 = vadd.f32 %v2306, %v2394
    %v2396 = vpop.f32.mrf.mxu0
    %v2397 = vadd.f32 %v2308, %v2396
    %2398 = vmatmul.bf16.gmra.mxu0 %v788
    %v2399 = vpop.f32.mrf.mxu0
    %v2400 = vadd.f32 %v2311, %v2399
    %v2401 = vpop.f32.mrf.mxu0
    %v2402 = vadd.f32 %v2313, %v2401
    %2403 = vmatmul.bf16.gmra.mxu0 %v795
    %v2404 = vpop.f32.mrf.mxu0
    %v2405 = vadd.f32 %v2316, %v2404
    %v2406 = vpop.f32.mrf.mxu0
    %v2407 = vadd.f32 %v2318, %v2406
    %2408 = vmatmul.bf16.gmra.mxu0 %v802
    %v2409 = vpop.f32.mrf.mxu0
    %v2410 = vadd.f32 %v2321, %v2409
    %v2411 = vpop.f32.mrf.mxu0
    %v2412 = vadd.f32 %v2323, %v2411
    %2413 = vmatmul.bf16.gmra.mxu0 %v809
    %v2414 = vpop.f32.mrf.mxu0
    %v2415 = vadd.f32 %v2326, %v2414
    %v2416 = vpop.f32.mrf.mxu0
    %v2417 = vadd.f32 %v2328, %v2416
    %2418 = vmatmul.bf16.gmra.mxu0 %v816
    %v2419 = vpop.f32.mrf.mxu0
    %v2420 = vadd.f32 %v2331, %v2419
    %v2421 = vpop.f32.mrf.mxu0
    %v2422 = vadd.f32 %v2333, %v2421
    %2423 = vmatmul.bf16.gmra.mxu0 %v823
    %v2424 = vpop.f32.mrf.mxu0
    %v2425 = vadd.f32 %v2336, %v2424
    %v2426 = vpop.f32.mrf.mxu0
    %v2427 = vadd.f32 %v2338, %v2426
    %2428 = vmatmul.bf16.gmra.mxu0 %v830
    %v2429 = vpop.f32.mrf.mxu0
    %v2430 = vadd.f32 %v2341, %v2429
    %v2431 = vpop.f32.mrf.mxu0
    %v2432 = vadd.f32 %v2343, %v2431
    %2433 = vmatmul.bf16.gmra.mxu0 %v837
    %v2434 = vpop.f32.mrf.mxu0
    %v2435 = vadd.f32 %v2346, %v2434
    %v2436 = vpop.f32.mrf.mxu0
    %v2437 = vadd.f32 %v2348, %v2436
    %2438 = vmatmul.bf16.gmra.mxu0 %v844
    %v2439 = vpop.f32.mrf.mxu0
    %v2440 = vadd.f32 %v2351, %v2439
    %v2441 = vpop.f32.mrf.mxu0
    %v2442 = vadd.f32 %v2353, %v2441
    %2443 = vmatmul.bf16.gmra.mxu0 %v851
    %v2444 = vpop.f32.mrf.mxu0
    %v2445 = vadd.f32 %v2356, %v2444
    %v2446 = vpop.f32.mrf.mxu0
    %v2447 = vadd.f32 %v2358, %v2446
    %2448 = vmatmul.bf16.gmra.mxu0 %v858
    %v2449 = vpop.f32.mrf.mxu0
    %v2450 = vadd.f32 %v2361, %v2449
    %v2451 = vpop.f32.mrf.mxu0
    %v2452 = vadd.f32 %v2363, %v2451
    %2453 = vmatmul.bf16.gmra.mxu0 %v865
    %v2454 = vpop.f32.mrf.mxu0
    %v2455 = vadd.f32 %v2366, %v2454
    %v2456 = vpop.f32.mrf.mxu0
    %v2457 = vadd.f32 %v2368, %v2456
    %2458 = vmatmul.bf16.gmra.mxu0 %v872
    %v2459 = vpop.f32.mrf.mxu0
    %v2460 = vadd.f32 %v2371, %v2459
    %v2461 = vpop.f32.mrf.mxu0
    %v2462 = vadd.f32 %v2373, %v2461
    %2463 = vdwg.mxu0
    %2464 = vmatpush.bf16.msra.mxu0 %v1816
    %2465 = vmatpush.bf16.msra.mxu0 %v1812
    %2466 = vmatpush.bf16.msra.mxu0 %v1808
    %2467 = vmatpush.bf16.msra.mxu0 %v1804
    %2468 = vmatpush.bf16.msra.mxu0 %v1800
    %2469 = vmatpush.bf16.msra.mxu0 %v1796
    %2470 = vmatpush.bf16.msra.mxu0 %v1792
    %2471 = vmatpush.bf16.msra.mxu0 %v1788
    %2472 = vmatmul.bf16.gmra.mxu0 %v768
    %v2473 = vpop.f32.mrf.mxu0
    %v2474 = vadd.f32 %v2385, %v2473
    %v2475 = vpop.f32.mrf.mxu0
    %v2476 = vadd.f32 %v2387, %v2475
    %2477 = vmatmul.bf16.gmra.mxu0 %v775
    %v2478 = vpop.f32.mrf.mxu0
    %v2479 = vadd.f32 %v2390, %v2478
    %v2480 = vpop.f32.mrf.mxu0
    %v2481 = vadd.f32 %v2392, %v2480
    %2482 = vmatmul.bf16.gmra.mxu0 %v782
    %v2483 = vpop.f32.mrf.mxu0
    %v2484 = vadd.f32 %v2395, %v2483
    %v2485 = vpop.f32.mrf.mxu0
    %v2486 = vadd.f32 %v2397, %v2485
    %2487 = vmatmul.bf16.gmra.mxu0 %v789
    %v2488 = vpop.f32.mrf.mxu0
    %v2489 = vadd.f32 %v2400, %v2488
    %v2490 = vpop.f32.mrf.mxu0
    %v2491 = vadd.f32 %v2402, %v2490
    %2492 = vmatmul.bf16.gmra.mxu0 %v796
    %v2493 = vpop.f32.mrf.mxu0
    %v2494 = vadd.f32 %v2405, %v2493
    %v2495 = vpop.f32.mrf.mxu0
    %v2496 = vadd.f32 %v2407, %v2495
    %2497 = vmatmul.bf16.gmra.mxu0 %v803
    %v2498 = vpop.f32.mrf.mxu0
    %v2499 = vadd.f32 %v2410, %v2498
    %v2500 = vpop.f32.mrf.mxu0
    %v2501 = vadd.f32 %v2412, %v2500
    %2502 = vmatmul.bf16.gmra.mxu0 %v810
    %v2503 = vpop.f32.mrf.mxu0
    %v2504 = vadd.f32 %v2415, %v2503
    %v2505 = vpop.f32.mrf.mxu0
    %v2506 = vadd.f32 %v2417, %v2505
    %2507 = vmatmul.bf16.gmra.mxu0 %v817
    %v2508 = vpop.f32.mrf.mxu0
    %v2509 = vadd.f32 %v2420, %v2508
    %v2510 = vpop.f32.mrf.mxu0
    %v2511 = vadd.f32 %v2422, %v2510
    %2512 = vmatmul.bf16.gmra.mxu0 %v824
    %v2513 = vpop.f32.mrf.mxu0
    %v2514 = vadd.f32 %v2425, %v2513
    %v2515 = vpop.f32.mrf.mxu0
    %v2516 = vadd.f32 %v2427, %v2515
    %2517 = vmatmul.bf16.gmra.mxu0 %v831
    %v2518 = vpop.f32.mrf.mxu0
    %v2519 = vadd.f32 %v2430, %v2518
    %v2520 = vpop.f32.mrf.mxu0
    %v2521 = vadd.f32 %v2432, %v2520
    %2522 = vmatmul.bf16.gmra.mxu0 %v838
    %v2523 = vpop.f32.mrf.mxu0
    %v2524 = vadd.f32 %v2435, %v2523
    %v2525 = vpop.f32.mrf.mxu0
    %v2526 = vadd.f32 %v2437, %v2525
    %2527 = vmatmul.bf16.gmra.mxu0 %v845
    %v2528 = vpop.f32.mrf.mxu0
    %v2529 = vadd.f32 %v2440, %v2528
    %v2530 = vpop.f32.mrf.mxu0
    %v2531 = vadd.f32 %v2442, %v2530
    %2532 = vmatmul.bf16.gmra.mxu0 %v852
    %v2533 = vpop.f32.mrf.mxu0
    %v2534 = vadd.f32 %v2445, %v2533
    %v2535 = vpop.f32.mrf.mxu0
    %v2536 = vadd.f32 %v2447, %v2535
    %2537 = vmatmul.bf16.gmra.mxu0 %v859
    %v2538 = vpop.f32.mrf.mxu0
    %v2539 = vadd.f32 %v2450, %v2538
    %v2540 = vpop.f32.mrf.mxu0
    %v2541 = vadd.f32 %v2452, %v2540
    %2542 = vmatmul.bf16.gmra.mxu0 %v866
    %v2543 = vpop.f32.mrf.mxu0
    %v2544 = vadd.f32 %v2455, %v2543
    %v2545 = vpop.f32.mrf.mxu0
    %v2546 = vadd.f32 %v2457, %v2545
    %2547 = vmatmul.bf16.gmra.mxu0 %v873
    %v2548 = vpop.f32.mrf.mxu0
    %v2549 = vadd.f32 %v2460, %v2548
    %v2550 = vpop.f32.mrf.mxu0
    %v2551 = vadd.f32 %v2462, %v2550
    %2552 = vdwg.mxu0
    %2553 = vmatpush.bf16.msra.mxu0 %v1848
    %2554 = vmatpush.bf16.msra.mxu0 %v1844
    %2555 = vmatpush.bf16.msra.mxu0 %v1840
    %2556 = vmatpush.bf16.msra.mxu0 %v1836
    %2557 = vmatpush.bf16.msra.mxu0 %v1832
    %2558 = vmatpush.bf16.msra.mxu0 %v1828
    %2559 = vmatpush.bf16.msra.mxu0 %v1824
    %2560 = vmatpush.bf16.msra.mxu0 %v1820
    %2561 = vmatmul.bf16.gmra.mxu0 %v769
    %v2562 = vpop.f32.mrf.mxu0
    %v2563 = vadd.f32 %v2474, %v2562
    %v2564 = vpop.f32.mrf.mxu0
    %v2565 = vadd.f32 %v2476, %v2564
    %2566 = vmatmul.bf16.gmra.mxu0 %v776
    %v2567 = vpop.f32.mrf.mxu0
    %v2568 = vadd.f32 %v2479, %v2567
    %v2569 = vpop.f32.mrf.mxu0
    %v2570 = vadd.f32 %v2481, %v2569
    %2571 = vmatmul.bf16.gmra.mxu0 %v783
    %v2572 = vpop.f32.mrf.mxu0
    %v2573 = vadd.f32 %v2484, %v2572
    %v2574 = vpop.f32.mrf.mxu0
    %v2575 = vadd.f32 %v2486, %v2574
    %2576 = vmatmul.bf16.gmra.mxu0 %v790
    %v2577 = vpop.f32.mrf.mxu0
    %v2578 = vadd.f32 %v2489, %v2577
    %v2579 = vpop.f32.mrf.mxu0
    %v2580 = vadd.f32 %v2491, %v2579
    %2581 = vmatmul.bf16.gmra.mxu0 %v797
    %v2582 = vpop.f32.mrf.mxu0
    %v2583 = vadd.f32 %v2494, %v2582
    %v2584 = vpop.f32.mrf.mxu0
    %v2585 = vadd.f32 %v2496, %v2584
    %2586 = vmatmul.bf16.gmra.mxu0 %v804
    %v2587 = vpop.f32.mrf.mxu0
    %v2588 = vadd.f32 %v2499, %v2587
    %v2589 = vpop.f32.mrf.mxu0
    %v2590 = vadd.f32 %v2501, %v2589
    %2591 = vmatmul.bf16.gmra.mxu0 %v811
    %v2592 = vpop.f32.mrf.mxu0
    %v2593 = vadd.f32 %v2504, %v2592
    %v2594 = vpop.f32.mrf.mxu0
    %v2595 = vadd.f32 %v2506, %v2594
    %2596 = vmatmul.bf16.gmra.mxu0 %v818
    %v2597 = vpop.f32.mrf.mxu0
    %v2598 = vadd.f32 %v2509, %v2597
    %v2599 = vpop.f32.mrf.mxu0
    %v2600 = vadd.f32 %v2511, %v2599
    %2601 = vmatmul.bf16.gmra.mxu0 %v825
    %v2602 = vpop.f32.mrf.mxu0
    %v2603 = vadd.f32 %v2514, %v2602
    %v2604 = vpop.f32.mrf.mxu0
    %v2605 = vadd.f32 %v2516, %v2604
    %2606 = vmatmul.bf16.gmra.mxu0 %v832
    %v2607 = vpop.f32.mrf.mxu0
    %v2608 = vadd.f32 %v2519, %v2607
    %v2609 = vpop.f32.mrf.mxu0
    %v2610 = vadd.f32 %v2521, %v2609
    %2611 = vmatmul.bf16.gmra.mxu0 %v839
    %v2612 = vpop.f32.mrf.mxu0
    %v2613 = vadd.f32 %v2524, %v2612
    %v2614 = vpop.f32.mrf.mxu0
    %v2615 = vadd.f32 %v2526, %v2614
    %2616 = vmatmul.bf16.gmra.mxu0 %v846
    %v2617 = vpop.f32.mrf.mxu0
    %v2618 = vadd.f32 %v2529, %v2617
    %v2619 = vpop.f32.mrf.mxu0
    %v2620 = vadd.f32 %v2531, %v2619
    %2621 = vmatmul.bf16.gmra.mxu0 %v853
    %v2622 = vpop.f32.mrf.mxu0
    %v2623 = vadd.f32 %v2534, %v2622
    %v2624 = vpop.f32.mrf.mxu0
    %v2625 = vadd.f32 %v2536, %v2624
    %2626 = vmatmul.bf16.gmra.mxu0 %v860
    %v2627 = vpop.f32.mrf.mxu0
    %v2628 = vadd.f32 %v2539, %v2627
    %v2629 = vpop.f32.mrf.mxu0
    %v2630 = vadd.f32 %v2541, %v2629
    %2631 = vmatmul.bf16.gmra.mxu0 %v867
    %v2632 = vpop.f32.mrf.mxu0
    %v2633 = vadd.f32 %v2544, %v2632
    %v2634 = vpop.f32.mrf.mxu0
    %v2635 = vadd.f32 %v2546, %v2634
    %2636 = vmatmul.bf16.gmra.mxu0 %v874
    %v2637 = vpop.f32.mrf.mxu0
    %v2638 = vadd.f32 %v2549, %v2637
    %v2639 = vpop.f32.mrf.mxu0
    %v2640 = vadd.f32 %v2551, %v2639
    %2641 = vdwg.mxu0
    %2642 = vmatpush.bf16.msra.mxu0 %v1880
    %2643 = vmatpush.bf16.msra.mxu0 %v1876
    %2644 = vmatpush.bf16.msra.mxu0 %v1872
    %2645 = vmatpush.bf16.msra.mxu0 %v1868
    %2646 = vmatpush.bf16.msra.mxu0 %v1864
    %2647 = vmatpush.bf16.msra.mxu0 %v1860
    %2648 = vmatpush.bf16.msra.mxu0 %v1856
    %2649 = vmatpush.bf16.msra.mxu0 %v1852
    %2650 = vmatmul.bf16.gmra.mxu0 %v770
    %v2651 = vpop.f32.mrf.mxu0
    %v2652 = vadd.f32 %v2563, %v2651
    %v2653 = vpop.f32.mrf.mxu0
    %v2654 = vadd.f32 %v2565, %v2653
    %2655 = vmatmul.bf16.gmra.mxu0 %v777
    %v2656 = vpop.f32.mrf.mxu0
    %v2657 = vadd.f32 %v2568, %v2656
    %v2658 = vpop.f32.mrf.mxu0
    %v2659 = vadd.f32 %v2570, %v2658
    %2660 = vmatmul.bf16.gmra.mxu0 %v784
    %v2661 = vpop.f32.mrf.mxu0
    %v2662 = vadd.f32 %v2573, %v2661
    %v2663 = vpop.f32.mrf.mxu0
    %v2664 = vadd.f32 %v2575, %v2663
    %2665 = vmatmul.bf16.gmra.mxu0 %v791
    %v2666 = vpop.f32.mrf.mxu0
    %v2667 = vadd.f32 %v2578, %v2666
    %v2668 = vpop.f32.mrf.mxu0
    %v2669 = vadd.f32 %v2580, %v2668
    %2670 = vmatmul.bf16.gmra.mxu0 %v798
    %v2671 = vpop.f32.mrf.mxu0
    %v2672 = vadd.f32 %v2583, %v2671
    %v2673 = vpop.f32.mrf.mxu0
    %v2674 = vadd.f32 %v2585, %v2673
    %2675 = vmatmul.bf16.gmra.mxu0 %v805
    %v2676 = vpop.f32.mrf.mxu0
    %v2677 = vadd.f32 %v2588, %v2676
    %v2678 = vpop.f32.mrf.mxu0
    %v2679 = vadd.f32 %v2590, %v2678
    %2680 = vmatmul.bf16.gmra.mxu0 %v812
    %v2681 = vpop.f32.mrf.mxu0
    %v2682 = vadd.f32 %v2593, %v2681
    %v2683 = vpop.f32.mrf.mxu0
    %v2684 = vadd.f32 %v2595, %v2683
    %2685 = vmatmul.bf16.gmra.mxu0 %v819
    %v2686 = vpop.f32.mrf.mxu0
    %v2687 = vadd.f32 %v2598, %v2686
    %v2688 = vpop.f32.mrf.mxu0
    %v2689 = vadd.f32 %v2600, %v2688
    %2690 = vmatmul.bf16.gmra.mxu0 %v826
    %v2691 = vpop.f32.mrf.mxu0
    %v2692 = vadd.f32 %v2603, %v2691
    %v2693 = vpop.f32.mrf.mxu0
    %v2694 = vadd.f32 %v2605, %v2693
    %2695 = vmatmul.bf16.gmra.mxu0 %v833
    %v2696 = vpop.f32.mrf.mxu0
    %v2697 = vadd.f32 %v2608, %v2696
    %v2698 = vpop.f32.mrf.mxu0
    %v2699 = vadd.f32 %v2610, %v2698
    %2700 = vmatmul.bf16.gmra.mxu0 %v840
    %v2701 = vpop.f32.mrf.mxu0
    %v2702 = vadd.f32 %v2613, %v2701
    %v2703 = vpop.f32.mrf.mxu0
    %v2704 = vadd.f32 %v2615, %v2703
    %2705 = vmatmul.bf16.gmra.mxu0 %v847
    %v2706 = vpop.f32.mrf.mxu0
    %v2707 = vadd.f32 %v2618, %v2706
    %v2708 = vpop.f32.mrf.mxu0
    %v2709 = vadd.f32 %v2620, %v2708
    %2710 = vmatmul.bf16.gmra.mxu0 %v854
    %v2711 = vpop.f32.mrf.mxu0
    %v2712 = vadd.f32 %v2623, %v2711
    %v2713 = vpop.f32.mrf.mxu0
    %v2714 = vadd.f32 %v2625, %v2713
    %2715 = vmatmul.bf16.gmra.mxu0 %v861
    %v2716 = vpop.f32.mrf.mxu0
    %v2717 = vadd.f32 %v2628, %v2716
    %v2718 = vpop.f32.mrf.mxu0
    %v2719 = vadd.f32 %v2630, %v2718
    %2720 = vmatmul.bf16.gmra.mxu0 %v868
    %v2721 = vpop.f32.mrf.mxu0
    %v2722 = vadd.f32 %v2633, %v2721
    %v2723 = vpop.f32.mrf.mxu0
    %v2724 = vadd.f32 %v2635, %v2723
    %2725 = vmatmul.bf16.gmra.mxu0 %v875
    %v2726 = vpop.f32.mrf.mxu0
    %v2727 = vadd.f32 %v2638, %v2726
    %v2728 = vpop.f32.mrf.mxu0
    %v2729 = vadd.f32 %v2640, %v2728
    %2730 = vdwg.mxu0
    %2731 = vmatpush.bf16.msra.mxu0 %v1689
    %2732 = vmatpush.bf16.msra.mxu0 %v1685
    %2733 = vmatpush.bf16.msra.mxu0 %v1681
    %2734 = vmatpush.bf16.msra.mxu0 %v1677
    %2735 = vmatpush.bf16.msra.mxu0 %v1673
    %2736 = vmatpush.bf16.msra.mxu0 %v1669
    %2737 = vmatpush.bf16.msra.mxu0 %v1665
    %2738 = vmatpush.bf16.msra.mxu0 %v1661
    %2739 = vmatmul.bf16.gmra.mxu0 %v764
    %v2740 = vpop.f32.mrf.mxu0
    %v2741 = vadd.f32 %v405, %v2740
    %v2742 = vpop.f32.mrf.mxu0
    %v2743 = vadd.f32 %v405, %v2742
    %2744 = vmatmul.bf16.gmra.mxu0 %v771
    %v2745 = vpop.f32.mrf.mxu0
    %v2746 = vadd.f32 %v405, %v2745
    %v2747 = vpop.f32.mrf.mxu0
    %v2748 = vadd.f32 %v405, %v2747
    %2749 = vmatmul.bf16.gmra.mxu0 %v778
    %v2750 = vpop.f32.mrf.mxu0
    %v2751 = vadd.f32 %v405, %v2750
    %v2752 = vpop.f32.mrf.mxu0
    %v2753 = vadd.f32 %v405, %v2752
    %2754 = vmatmul.bf16.gmra.mxu0 %v785
    %v2755 = vpop.f32.mrf.mxu0
    %v2756 = vadd.f32 %v405, %v2755
    %v2757 = vpop.f32.mrf.mxu0
    %v2758 = vadd.f32 %v405, %v2757
    %2759 = vmatmul.bf16.gmra.mxu0 %v792
    %v2760 = vpop.f32.mrf.mxu0
    %v2761 = vadd.f32 %v405, %v2760
    %v2762 = vpop.f32.mrf.mxu0
    %v2763 = vadd.f32 %v405, %v2762
    %2764 = vmatmul.bf16.gmra.mxu0 %v799
    %v2765 = vpop.f32.mrf.mxu0
    %v2766 = vadd.f32 %v405, %v2765
    %v2767 = vpop.f32.mrf.mxu0
    %v2768 = vadd.f32 %v405, %v2767
    %2769 = vmatmul.bf16.gmra.mxu0 %v806
    %v2770 = vpop.f32.mrf.mxu0
    %v2771 = vadd.f32 %v405, %v2770
    %v2772 = vpop.f32.mrf.mxu0
    %v2773 = vadd.f32 %v405, %v2772
    %2774 = vmatmul.bf16.gmra.mxu0 %v813
    %v2775 = vpop.f32.mrf.mxu0
    %v2776 = vadd.f32 %v405, %v2775
    %v2777 = vpop.f32.mrf.mxu0
    %v2778 = vadd.f32 %v405, %v2777
    %2779 = vmatmul.bf16.gmra.mxu0 %v820
    %v2780 = vpop.f32.mrf.mxu0
    %v2781 = vadd.f32 %v405, %v2780
    %v2782 = vpop.f32.mrf.mxu0
    %v2783 = vadd.f32 %v405, %v2782
    %2784 = vmatmul.bf16.gmra.mxu0 %v827
    %v2785 = vpop.f32.mrf.mxu0
    %v2786 = vadd.f32 %v405, %v2785
    %v2787 = vpop.f32.mrf.mxu0
    %v2788 = vadd.f32 %v405, %v2787
    %2789 = vmatmul.bf16.gmra.mxu0 %v834
    %v2790 = vpop.f32.mrf.mxu0
    %v2791 = vadd.f32 %v405, %v2790
    %v2792 = vpop.f32.mrf.mxu0
    %v2793 = vadd.f32 %v405, %v2792
    %2794 = vmatmul.bf16.gmra.mxu0 %v841
    %v2795 = vpop.f32.mrf.mxu0
    %v2796 = vadd.f32 %v405, %v2795
    %v2797 = vpop.f32.mrf.mxu0
    %v2798 = vadd.f32 %v405, %v2797
    %2799 = vmatmul.bf16.gmra.mxu0 %v848
    %v2800 = vpop.f32.mrf.mxu0
    %v2801 = vadd.f32 %v405, %v2800
    %v2802 = vpop.f32.mrf.mxu0
    %v2803 = vadd.f32 %v405, %v2802
    %2804 = vmatmul.bf16.gmra.mxu0 %v855
    %v2805 = vpop.f32.mrf.mxu0
    %v2806 = vadd.f32 %v405, %v2805
    %v2807 = vpop.f32.mrf.mxu0
    %v2808 = vadd.f32 %v405, %v2807
    %2809 = vmatmul.bf16.gmra.mxu0 %v862
    %v2810 = vpop.f32.mrf.mxu0
    %v2811 = vadd.f32 %v405, %v2810
    %v2812 = vpop.f32.mrf.mxu0
    %v2813 = vadd.f32 %v405, %v2812
    %2814 = vmatmul.bf16.gmra.mxu0 %v869
    %v2815 = vpop.f32.mrf.mxu0
    %v2816 = vadd.f32 %v405, %v2815
    %v2817 = vpop.f32.mrf.mxu0
    %v2818 = vadd.f32 %v405, %v2817
    %2819 = vdwg.mxu0
    %2820 = vmatpush.bf16.msra.mxu0 %v1721
    %2821 = vmatpush.bf16.msra.mxu0 %v1717
    %2822 = vmatpush.bf16.msra.mxu0 %v1713
    %2823 = vmatpush.bf16.msra.mxu0 %v1709
    %2824 = vmatpush.bf16.msra.mxu0 %v1705
    %2825 = vmatpush.bf16.msra.mxu0 %v1701
    %2826 = vmatpush.bf16.msra.mxu0 %v1697
    %2827 = vmatpush.bf16.msra.mxu0 %v1693
    %2828 = vmatmul.bf16.gmra.mxu0 %v765
    %v2829 = vpop.f32.mrf.mxu0
    %v2830 = vadd.f32 %v2741, %v2829
    %v2831 = vpop.f32.mrf.mxu0
    %v2832 = vadd.f32 %v2743, %v2831
    %2833 = vmatmul.bf16.gmra.mxu0 %v772
    %v2834 = vpop.f32.mrf.mxu0
    %v2835 = vadd.f32 %v2746, %v2834
    %v2836 = vpop.f32.mrf.mxu0
    %v2837 = vadd.f32 %v2748, %v2836
    %2838 = vmatmul.bf16.gmra.mxu0 %v779
    %v2839 = vpop.f32.mrf.mxu0
    %v2840 = vadd.f32 %v2751, %v2839
    %v2841 = vpop.f32.mrf.mxu0
    %v2842 = vadd.f32 %v2753, %v2841
    %2843 = vmatmul.bf16.gmra.mxu0 %v786
    %v2844 = vpop.f32.mrf.mxu0
    %v2845 = vadd.f32 %v2756, %v2844
    %v2846 = vpop.f32.mrf.mxu0
    %v2847 = vadd.f32 %v2758, %v2846
    %2848 = vmatmul.bf16.gmra.mxu0 %v793
    %v2849 = vpop.f32.mrf.mxu0
    %v2850 = vadd.f32 %v2761, %v2849
    %v2851 = vpop.f32.mrf.mxu0
    %v2852 = vadd.f32 %v2763, %v2851
    %2853 = vmatmul.bf16.gmra.mxu0 %v800
    %v2854 = vpop.f32.mrf.mxu0
    %v2855 = vadd.f32 %v2766, %v2854
    %v2856 = vpop.f32.mrf.mxu0
    %v2857 = vadd.f32 %v2768, %v2856
    %2858 = vmatmul.bf16.gmra.mxu0 %v807
    %v2859 = vpop.f32.mrf.mxu0
    %v2860 = vadd.f32 %v2771, %v2859
    %v2861 = vpop.f32.mrf.mxu0
    %v2862 = vadd.f32 %v2773, %v2861
    %2863 = vmatmul.bf16.gmra.mxu0 %v814
    %v2864 = vpop.f32.mrf.mxu0
    %v2865 = vadd.f32 %v2776, %v2864
    %v2866 = vpop.f32.mrf.mxu0
    %v2867 = vadd.f32 %v2778, %v2866
    %2868 = vmatmul.bf16.gmra.mxu0 %v821
    %v2869 = vpop.f32.mrf.mxu0
    %v2870 = vadd.f32 %v2781, %v2869
    %v2871 = vpop.f32.mrf.mxu0
    %v2872 = vadd.f32 %v2783, %v2871
    %2873 = vmatmul.bf16.gmra.mxu0 %v828
    %v2874 = vpop.f32.mrf.mxu0
    %v2875 = vadd.f32 %v2786, %v2874
    %v2876 = vpop.f32.mrf.mxu0
    %v2877 = vadd.f32 %v2788, %v2876
    %2878 = vmatmul.bf16.gmra.mxu0 %v835
    %v2879 = vpop.f32.mrf.mxu0
    %v2880 = vadd.f32 %v2791, %v2879
    %v2881 = vpop.f32.mrf.mxu0
    %v2882 = vadd.f32 %v2793, %v2881
    %2883 = vmatmul.bf16.gmra.mxu0 %v842
    %v2884 = vpop.f32.mrf.mxu0
    %v2885 = vadd.f32 %v2796, %v2884
    %v2886 = vpop.f32.mrf.mxu0
    %v2887 = vadd.f32 %v2798, %v2886
    %2888 = vmatmul.bf16.gmra.mxu0 %v849
    %v2889 = vpop.f32.mrf.mxu0
    %v2890 = vadd.f32 %v2801, %v2889
    %v2891 = vpop.f32.mrf.mxu0
    %v2892 = vadd.f32 %v2803, %v2891
    %2893 = vmatmul.bf16.gmra.mxu0 %v856
    %v2894 = vpop.f32.mrf.mxu0
    %v2895 = vadd.f32 %v2806, %v2894
    %v2896 = vpop.f32.mrf.mxu0
    %v2897 = vadd.f32 %v2808, %v2896
    %2898 = vmatmul.bf16.gmra.mxu0 %v863
    %v2899 = vpop.f32.mrf.mxu0
    %v2900 = vadd.f32 %v2811, %v2899
    %v2901 = vpop.f32.mrf.mxu0
    %v2902 = vadd.f32 %v2813, %v2901
    %2903 = vmatmul.bf16.gmra.mxu0 %v870
    %v2904 = vpop.f32.mrf.mxu0
    %v2905 = vadd.f32 %v2816, %v2904
    %v2906 = vpop.f32.mrf.mxu0
    %v2907 = vadd.f32 %v2818, %v2906
    %2908 = vdwg.mxu0
    %2909 = vmatpush.bf16.msra.mxu0 %v1753
    %2910 = vmatpush.bf16.msra.mxu0 %v1749
    %2911 = vmatpush.bf16.msra.mxu0 %v1745
    %2912 = vmatpush.bf16.msra.mxu0 %v1741
    %2913 = vmatpush.bf16.msra.mxu0 %v1737
    %2914 = vmatpush.bf16.msra.mxu0 %v1733
    %2915 = vmatpush.bf16.msra.mxu0 %v1729
    %2916 = vmatpush.bf16.msra.mxu0 %v1725
    %2917 = vmatmul.bf16.gmra.mxu0 %v766
    %v2918 = vpop.f32.mrf.mxu0
    %v2919 = vadd.f32 %v2830, %v2918
    %v2920 = vpop.f32.mrf.mxu0
    %v2921 = vadd.f32 %v2832, %v2920
    %2922 = vmatmul.bf16.gmra.mxu0 %v773
    %v2923 = vpop.f32.mrf.mxu0
    %v2924 = vadd.f32 %v2835, %v2923
    %v2925 = vpop.f32.mrf.mxu0
    %v2926 = vadd.f32 %v2837, %v2925
    %2927 = vmatmul.bf16.gmra.mxu0 %v780
    %v2928 = vpop.f32.mrf.mxu0
    %v2929 = vadd.f32 %v2840, %v2928
    %v2930 = vpop.f32.mrf.mxu0
    %v2931 = vadd.f32 %v2842, %v2930
    %2932 = vmatmul.bf16.gmra.mxu0 %v787
    %v2933 = vpop.f32.mrf.mxu0
    %v2934 = vadd.f32 %v2845, %v2933
    %v2935 = vpop.f32.mrf.mxu0
    %v2936 = vadd.f32 %v2847, %v2935
    %2937 = vmatmul.bf16.gmra.mxu0 %v794
    %v2938 = vpop.f32.mrf.mxu0
    %v2939 = vadd.f32 %v2850, %v2938
    %v2940 = vpop.f32.mrf.mxu0
    %v2941 = vadd.f32 %v2852, %v2940
    %2942 = vmatmul.bf16.gmra.mxu0 %v801
    %v2943 = vpop.f32.mrf.mxu0
    %v2944 = vadd.f32 %v2855, %v2943
    %v2945 = vpop.f32.mrf.mxu0
    %v2946 = vadd.f32 %v2857, %v2945
    %2947 = vmatmul.bf16.gmra.mxu0 %v808
    %v2948 = vpop.f32.mrf.mxu0
    %v2949 = vadd.f32 %v2860, %v2948
    %v2950 = vpop.f32.mrf.mxu0
    %v2951 = vadd.f32 %v2862, %v2950
    %2952 = vmatmul.bf16.gmra.mxu0 %v815
    %v2953 = vpop.f32.mrf.mxu0
    %v2954 = vadd.f32 %v2865, %v2953
    %v2955 = vpop.f32.mrf.mxu0
    %v2956 = vadd.f32 %v2867, %v2955
    %2957 = vmatmul.bf16.gmra.mxu0 %v822
    %v2958 = vpop.f32.mrf.mxu0
    %v2959 = vadd.f32 %v2870, %v2958
    %v2960 = vpop.f32.mrf.mxu0
    %v2961 = vadd.f32 %v2872, %v2960
    %2962 = vmatmul.bf16.gmra.mxu0 %v829
    %v2963 = vpop.f32.mrf.mxu0
    %v2964 = vadd.f32 %v2875, %v2963
    %v2965 = vpop.f32.mrf.mxu0
    %v2966 = vadd.f32 %v2877, %v2965
    %2967 = vmatmul.bf16.gmra.mxu0 %v836
    %v2968 = vpop.f32.mrf.mxu0
    %v2969 = vadd.f32 %v2880, %v2968
    %v2970 = vpop.f32.mrf.mxu0
    %v2971 = vadd.f32 %v2882, %v2970
    %2972 = vmatmul.bf16.gmra.mxu0 %v843
    %v2973 = vpop.f32.mrf.mxu0
    %v2974 = vadd.f32 %v2885, %v2973
    %v2975 = vpop.f32.mrf.mxu0
    %v2976 = vadd.f32 %v2887, %v2975
    %2977 = vmatmul.bf16.gmra.mxu0 %v850
    %v2978 = vpop.f32.mrf.mxu0
    %v2979 = vadd.f32 %v2890, %v2978
    %v2980 = vpop.f32.mrf.mxu0
    %v2981 = vadd.f32 %v2892, %v2980
    %2982 = vmatmul.bf16.gmra.mxu0 %v857
    %v2983 = vpop.f32.mrf.mxu0
    %v2984 = vadd.f32 %v2895, %v2983
    %v2985 = vpop.f32.mrf.mxu0
    %v2986 = vadd.f32 %v2897, %v2985
    %2987 = vmatmul.bf16.gmra.mxu0 %v864
    %v2988 = vpop.f32.mrf.mxu0
    %v2989 = vadd.f32 %v2900, %v2988
    %v2990 = vpop.f32.mrf.mxu0
    %v2991 = vadd.f32 %v2902, %v2990
    %2992 = vmatmul.bf16.gmra.mxu0 %v871
    %v2993 = vpop.f32.mrf.mxu0
    %v2994 = vadd.f32 %v2905, %v2993
    %v2995 = vpop.f32.mrf.mxu0
    %v2996 = vadd.f32 %v2907, %v2995
    %2997 = vdwg.mxu0
    %2998 = vmatpush.bf16.msra.mxu0 %v1785
    %2999 = vmatpush.bf16.msra.mxu0 %v1781
    %3000 = vmatpush.bf16.msra.mxu0 %v1777
    %3001 = vmatpush.bf16.msra.mxu0 %v1773
    %3002 = vmatpush.bf16.msra.mxu0 %v1769
    %3003 = vmatpush.bf16.msra.mxu0 %v1765
    %3004 = vmatpush.bf16.msra.mxu0 %v1761
    %3005 = vmatpush.bf16.msra.mxu0 %v1757
    %3006 = vmatmul.bf16.gmra.mxu0 %v767
    %v3007 = vpop.f32.mrf.mxu0
    %v3008 = vadd.f32 %v2919, %v3007
    %v3009 = vpop.f32.mrf.mxu0
    %v3010 = vadd.f32 %v2921, %v3009
    %3011 = vmatmul.bf16.gmra.mxu0 %v774
    %v3012 = vpop.f32.mrf.mxu0
    %v3013 = vadd.f32 %v2924, %v3012
    %v3014 = vpop.f32.mrf.mxu0
    %v3015 = vadd.f32 %v2926, %v3014
    %3016 = vmatmul.bf16.gmra.mxu0 %v781
    %v3017 = vpop.f32.mrf.mxu0
    %v3018 = vadd.f32 %v2929, %v3017
    %v3019 = vpop.f32.mrf.mxu0
    %v3020 = vadd.f32 %v2931, %v3019
    %3021 = vmatmul.bf16.gmra.mxu0 %v788
    %v3022 = vpop.f32.mrf.mxu0
    %v3023 = vadd.f32 %v2934, %v3022
    %v3024 = vpop.f32.mrf.mxu0
    %v3025 = vadd.f32 %v2936, %v3024
    %3026 = vmatmul.bf16.gmra.mxu0 %v795
    %v3027 = vpop.f32.mrf.mxu0
    %v3028 = vadd.f32 %v2939, %v3027
    %v3029 = vpop.f32.mrf.mxu0
    %v3030 = vadd.f32 %v2941, %v3029
    %3031 = vmatmul.bf16.gmra.mxu0 %v802
    %v3032 = vpop.f32.mrf.mxu0
    %v3033 = vadd.f32 %v2944, %v3032
    %v3034 = vpop.f32.mrf.mxu0
    %v3035 = vadd.f32 %v2946, %v3034
    %3036 = vmatmul.bf16.gmra.mxu0 %v809
    %v3037 = vpop.f32.mrf.mxu0
    %v3038 = vadd.f32 %v2949, %v3037
    %v3039 = vpop.f32.mrf.mxu0
    %v3040 = vadd.f32 %v2951, %v3039
    %3041 = vmatmul.bf16.gmra.mxu0 %v816
    %v3042 = vpop.f32.mrf.mxu0
    %v3043 = vadd.f32 %v2954, %v3042
    %v3044 = vpop.f32.mrf.mxu0
    %v3045 = vadd.f32 %v2956, %v3044
    %3046 = vmatmul.bf16.gmra.mxu0 %v823
    %v3047 = vpop.f32.mrf.mxu0
    %v3048 = vadd.f32 %v2959, %v3047
    %v3049 = vpop.f32.mrf.mxu0
    %v3050 = vadd.f32 %v2961, %v3049
    %3051 = vmatmul.bf16.gmra.mxu0 %v830
    %v3052 = vpop.f32.mrf.mxu0
    %v3053 = vadd.f32 %v2964, %v3052
    %v3054 = vpop.f32.mrf.mxu0
    %v3055 = vadd.f32 %v2966, %v3054
    %3056 = vmatmul.bf16.gmra.mxu0 %v837
    %v3057 = vpop.f32.mrf.mxu0
    %v3058 = vadd.f32 %v2969, %v3057
    %v3059 = vpop.f32.mrf.mxu0
    %v3060 = vadd.f32 %v2971, %v3059
    %3061 = vmatmul.bf16.gmra.mxu0 %v844
    %v3062 = vpop.f32.mrf.mxu0
    %v3063 = vadd.f32 %v2974, %v3062
    %v3064 = vpop.f32.mrf.mxu0
    %v3065 = vadd.f32 %v2976, %v3064
    %3066 = vmatmul.bf16.gmra.mxu0 %v851
    %v3067 = vpop.f32.mrf.mxu0
    %v3068 = vadd.f32 %v2979, %v3067
    %v3069 = vpop.f32.mrf.mxu0
    %v3070 = vadd.f32 %v2981, %v3069
    %3071 = vmatmul.bf16.gmra.mxu0 %v858
    %v3072 = vpop.f32.mrf.mxu0
    %v3073 = vadd.f32 %v2984, %v3072
    %v3074 = vpop.f32.mrf.mxu0
    %v3075 = vadd.f32 %v2986, %v3074
    %3076 = vmatmul.bf16.gmra.mxu0 %v865
    %v3077 = vpop.f32.mrf.mxu0
    %v3078 = vadd.f32 %v2989, %v3077
    %v3079 = vpop.f32.mrf.mxu0
    %v3080 = vadd.f32 %v2991, %v3079
    %3081 = vmatmul.bf16.gmra.mxu0 %v872
    %v3082 = vpop.f32.mrf.mxu0
    %v3083 = vadd.f32 %v2994, %v3082
    %v3084 = vpop.f32.mrf.mxu0
    %v3085 = vadd.f32 %v2996, %v3084
    %3086 = vdwg.mxu0
    %3087 = vmatpush.bf16.msra.mxu0 %v1817
    %3088 = vmatpush.bf16.msra.mxu0 %v1813
    %3089 = vmatpush.bf16.msra.mxu0 %v1809
    %3090 = vmatpush.bf16.msra.mxu0 %v1805
    %3091 = vmatpush.bf16.msra.mxu0 %v1801
    %3092 = vmatpush.bf16.msra.mxu0 %v1797
    %3093 = vmatpush.bf16.msra.mxu0 %v1793
    %3094 = vmatpush.bf16.msra.mxu0 %v1789
    %3095 = vmatmul.bf16.gmra.mxu0 %v768
    %v3096 = vpop.f32.mrf.mxu0
    %v3097 = vadd.f32 %v3008, %v3096
    %v3098 = vpop.f32.mrf.mxu0
    %v3099 = vadd.f32 %v3010, %v3098
    %3100 = vmatmul.bf16.gmra.mxu0 %v775
    %v3101 = vpop.f32.mrf.mxu0
    %v3102 = vadd.f32 %v3013, %v3101
    %v3103 = vpop.f32.mrf.mxu0
    %v3104 = vadd.f32 %v3015, %v3103
    %3105 = vmatmul.bf16.gmra.mxu0 %v782
    %v3106 = vpop.f32.mrf.mxu0
    %v3107 = vadd.f32 %v3018, %v3106
    %v3108 = vpop.f32.mrf.mxu0
    %v3109 = vadd.f32 %v3020, %v3108
    %3110 = vmatmul.bf16.gmra.mxu0 %v789
    %v3111 = vpop.f32.mrf.mxu0
    %v3112 = vadd.f32 %v3023, %v3111
    %v3113 = vpop.f32.mrf.mxu0
    %v3114 = vadd.f32 %v3025, %v3113
    %3115 = vmatmul.bf16.gmra.mxu0 %v796
    %v3116 = vpop.f32.mrf.mxu0
    %v3117 = vadd.f32 %v3028, %v3116
    %v3118 = vpop.f32.mrf.mxu0
    %v3119 = vadd.f32 %v3030, %v3118
    %3120 = vmatmul.bf16.gmra.mxu0 %v803
    %v3121 = vpop.f32.mrf.mxu0
    %v3122 = vadd.f32 %v3033, %v3121
    %v3123 = vpop.f32.mrf.mxu0
    %v3124 = vadd.f32 %v3035, %v3123
    %3125 = vmatmul.bf16.gmra.mxu0 %v810
    %v3126 = vpop.f32.mrf.mxu0
    %v3127 = vadd.f32 %v3038, %v3126
    %v3128 = vpop.f32.mrf.mxu0
    %v3129 = vadd.f32 %v3040, %v3128
    %3130 = vmatmul.bf16.gmra.mxu0 %v817
    %v3131 = vpop.f32.mrf.mxu0
    %v3132 = vadd.f32 %v3043, %v3131
    %v3133 = vpop.f32.mrf.mxu0
    %v3134 = vadd.f32 %v3045, %v3133
    %3135 = vmatmul.bf16.gmra.mxu0 %v824
    %v3136 = vpop.f32.mrf.mxu0
    %v3137 = vadd.f32 %v3048, %v3136
    %v3138 = vpop.f32.mrf.mxu0
    %v3139 = vadd.f32 %v3050, %v3138
    %3140 = vmatmul.bf16.gmra.mxu0 %v831
    %v3141 = vpop.f32.mrf.mxu0
    %v3142 = vadd.f32 %v3053, %v3141
    %v3143 = vpop.f32.mrf.mxu0
    %v3144 = vadd.f32 %v3055, %v3143
    %3145 = vmatmul.bf16.gmra.mxu0 %v838
    %v3146 = vpop.f32.mrf.mxu0
    %v3147 = vadd.f32 %v3058, %v3146
    %v3148 = vpop.f32.mrf.mxu0
    %v3149 = vadd.f32 %v3060, %v3148
    %3150 = vmatmul.bf16.gmra.mxu0 %v845
    %v3151 = vpop.f32.mrf.mxu0
    %v3152 = vadd.f32 %v3063, %v3151
    %v3153 = vpop.f32.mrf.mxu0
    %v3154 = vadd.f32 %v3065, %v3153
    %3155 = vmatmul.bf16.gmra.mxu0 %v852
    %v3156 = vpop.f32.mrf.mxu0
    %v3157 = vadd.f32 %v3068, %v3156
    %v3158 = vpop.f32.mrf.mxu0
    %v3159 = vadd.f32 %v3070, %v3158
    %3160 = vmatmul.bf16.gmra.mxu0 %v859
    %v3161 = vpop.f32.mrf.mxu0
    %v3162 = vadd.f32 %v3073, %v3161
    %v3163 = vpop.f32.mrf.mxu0
    %v3164 = vadd.f32 %v3075, %v3163
    %3165 = vmatmul.bf16.gmra.mxu0 %v866
    %v3166 = vpop.f32.mrf.mxu0
    %v3167 = vadd.f32 %v3078, %v3166
    %v3168 = vpop.f32.mrf.mxu0
    %v3169 = vadd.f32 %v3080, %v3168
    %3170 = vmatmul.bf16.gmra.mxu0 %v873
    %v3171 = vpop.f32.mrf.mxu0
    %v3172 = vadd.f32 %v3083, %v3171
    %v3173 = vpop.f32.mrf.mxu0
    %v3174 = vadd.f32 %v3085, %v3173
    %3175 = vdwg.mxu0
    %3176 = vmatpush.bf16.msra.mxu0 %v1849
    %3177 = vmatpush.bf16.msra.mxu0 %v1845
    %3178 = vmatpush.bf16.msra.mxu0 %v1841
    %3179 = vmatpush.bf16.msra.mxu0 %v1837
    %3180 = vmatpush.bf16.msra.mxu0 %v1833
    %3181 = vmatpush.bf16.msra.mxu0 %v1829
    %3182 = vmatpush.bf16.msra.mxu0 %v1825
    %3183 = vmatpush.bf16.msra.mxu0 %v1821
    %3184 = vmatmul.bf16.gmra.mxu0 %v769
    %v3185 = vpop.f32.mrf.mxu0
    %v3186 = vadd.f32 %v3097, %v3185
    %v3187 = vpop.f32.mrf.mxu0
    %v3188 = vadd.f32 %v3099, %v3187
    %3189 = vmatmul.bf16.gmra.mxu0 %v776
    %v3190 = vpop.f32.mrf.mxu0
    %v3191 = vadd.f32 %v3102, %v3190
    %v3192 = vpop.f32.mrf.mxu0
    %v3193 = vadd.f32 %v3104, %v3192
    %3194 = vmatmul.bf16.gmra.mxu0 %v783
    %v3195 = vpop.f32.mrf.mxu0
    %v3196 = vadd.f32 %v3107, %v3195
    %v3197 = vpop.f32.mrf.mxu0
    %v3198 = vadd.f32 %v3109, %v3197
    %3199 = vmatmul.bf16.gmra.mxu0 %v790
    %v3200 = vpop.f32.mrf.mxu0
    %v3201 = vadd.f32 %v3112, %v3200
    %v3202 = vpop.f32.mrf.mxu0
    %v3203 = vadd.f32 %v3114, %v3202
    %3204 = vmatmul.bf16.gmra.mxu0 %v797
    %v3205 = vpop.f32.mrf.mxu0
    %v3206 = vadd.f32 %v3117, %v3205
    %v3207 = vpop.f32.mrf.mxu0
    %v3208 = vadd.f32 %v3119, %v3207
    %3209 = vmatmul.bf16.gmra.mxu0 %v804
    %v3210 = vpop.f32.mrf.mxu0
    %v3211 = vadd.f32 %v3122, %v3210
    %v3212 = vpop.f32.mrf.mxu0
    %v3213 = vadd.f32 %v3124, %v3212
    %3214 = vmatmul.bf16.gmra.mxu0 %v811
    %v3215 = vpop.f32.mrf.mxu0
    %v3216 = vadd.f32 %v3127, %v3215
    %v3217 = vpop.f32.mrf.mxu0
    %v3218 = vadd.f32 %v3129, %v3217
    %3219 = vmatmul.bf16.gmra.mxu0 %v818
    %v3220 = vpop.f32.mrf.mxu0
    %v3221 = vadd.f32 %v3132, %v3220
    %v3222 = vpop.f32.mrf.mxu0
    %v3223 = vadd.f32 %v3134, %v3222
    %3224 = vmatmul.bf16.gmra.mxu0 %v825
    %v3225 = vpop.f32.mrf.mxu0
    %v3226 = vadd.f32 %v3137, %v3225
    %v3227 = vpop.f32.mrf.mxu0
    %v3228 = vadd.f32 %v3139, %v3227
    %3229 = vmatmul.bf16.gmra.mxu0 %v832
    %v3230 = vpop.f32.mrf.mxu0
    %v3231 = vadd.f32 %v3142, %v3230
    %v3232 = vpop.f32.mrf.mxu0
    %v3233 = vadd.f32 %v3144, %v3232
    %3234 = vmatmul.bf16.gmra.mxu0 %v839
    %v3235 = vpop.f32.mrf.mxu0
    %v3236 = vadd.f32 %v3147, %v3235
    %v3237 = vpop.f32.mrf.mxu0
    %v3238 = vadd.f32 %v3149, %v3237
    %3239 = vmatmul.bf16.gmra.mxu0 %v846
    %v3240 = vpop.f32.mrf.mxu0
    %v3241 = vadd.f32 %v3152, %v3240
    %v3242 = vpop.f32.mrf.mxu0
    %v3243 = vadd.f32 %v3154, %v3242
    %3244 = vmatmul.bf16.gmra.mxu0 %v853
    %v3245 = vpop.f32.mrf.mxu0
    %v3246 = vadd.f32 %v3157, %v3245
    %v3247 = vpop.f32.mrf.mxu0
    %v3248 = vadd.f32 %v3159, %v3247
    %3249 = vmatmul.bf16.gmra.mxu0 %v860
    %v3250 = vpop.f32.mrf.mxu0
    %v3251 = vadd.f32 %v3162, %v3250
    %v3252 = vpop.f32.mrf.mxu0
    %v3253 = vadd.f32 %v3164, %v3252
    %3254 = vmatmul.bf16.gmra.mxu0 %v867
    %v3255 = vpop.f32.mrf.mxu0
    %v3256 = vadd.f32 %v3167, %v3255
    %v3257 = vpop.f32.mrf.mxu0
    %v3258 = vadd.f32 %v3169, %v3257
    %3259 = vmatmul.bf16.gmra.mxu0 %v874
    %v3260 = vpop.f32.mrf.mxu0
    %v3261 = vadd.f32 %v3172, %v3260
    %v3262 = vpop.f32.mrf.mxu0
    %v3263 = vadd.f32 %v3174, %v3262
    %3264 = vdwg.mxu0
    %3265 = vmatpush.bf16.msra.mxu0 %v1881
    %3266 = vmatpush.bf16.msra.mxu0 %v1877
    %3267 = vmatpush.bf16.msra.mxu0 %v1873
    %3268 = vmatpush.bf16.msra.mxu0 %v1869
    %3269 = vmatpush.bf16.msra.mxu0 %v1865
    %3270 = vmatpush.bf16.msra.mxu0 %v1861
    %3271 = vmatpush.bf16.msra.mxu0 %v1857
    %3272 = vmatpush.bf16.msra.mxu0 %v1853
    %3273 = vmatmul.bf16.gmra.mxu0 %v770
    %v3274 = vpop.f32.mrf.mxu0
    %v3275 = vadd.f32 %v3186, %v3274
    %v3276 = vpop.f32.mrf.mxu0
    %v3277 = vadd.f32 %v3188, %v3276
    %3278 = vmatmul.bf16.gmra.mxu0 %v777
    %v3279 = vpop.f32.mrf.mxu0
    %v3280 = vadd.f32 %v3191, %v3279
    %v3281 = vpop.f32.mrf.mxu0
    %v3282 = vadd.f32 %v3193, %v3281
    %3283 = vmatmul.bf16.gmra.mxu0 %v784
    %v3284 = vpop.f32.mrf.mxu0
    %v3285 = vadd.f32 %v3196, %v3284
    %v3286 = vpop.f32.mrf.mxu0
    %v3287 = vadd.f32 %v3198, %v3286
    %3288 = vmatmul.bf16.gmra.mxu0 %v791
    %v3289 = vpop.f32.mrf.mxu0
    %v3290 = vadd.f32 %v3201, %v3289
    %v3291 = vpop.f32.mrf.mxu0
    %v3292 = vadd.f32 %v3203, %v3291
    %3293 = vmatmul.bf16.gmra.mxu0 %v798
    %v3294 = vpop.f32.mrf.mxu0
    %v3295 = vadd.f32 %v3206, %v3294
    %v3296 = vpop.f32.mrf.mxu0
    %v3297 = vadd.f32 %v3208, %v3296
    %3298 = vmatmul.bf16.gmra.mxu0 %v805
    %v3299 = vpop.f32.mrf.mxu0
    %v3300 = vadd.f32 %v3211, %v3299
    %v3301 = vpop.f32.mrf.mxu0
    %v3302 = vadd.f32 %v3213, %v3301
    %3303 = vmatmul.bf16.gmra.mxu0 %v812
    %v3304 = vpop.f32.mrf.mxu0
    %v3305 = vadd.f32 %v3216, %v3304
    %v3306 = vpop.f32.mrf.mxu0
    %v3307 = vadd.f32 %v3218, %v3306
    %3308 = vmatmul.bf16.gmra.mxu0 %v819
    %v3309 = vpop.f32.mrf.mxu0
    %v3310 = vadd.f32 %v3221, %v3309
    %v3311 = vpop.f32.mrf.mxu0
    %v3312 = vadd.f32 %v3223, %v3311
    %3313 = vmatmul.bf16.gmra.mxu0 %v826
    %v3314 = vpop.f32.mrf.mxu0
    %v3315 = vadd.f32 %v3226, %v3314
    %v3316 = vpop.f32.mrf.mxu0
    %v3317 = vadd.f32 %v3228, %v3316
    %3318 = vmatmul.bf16.gmra.mxu0 %v833
    %v3319 = vpop.f32.mrf.mxu0
    %v3320 = vadd.f32 %v3231, %v3319
    %v3321 = vpop.f32.mrf.mxu0
    %v3322 = vadd.f32 %v3233, %v3321
    %3323 = vmatmul.bf16.gmra.mxu0 %v840
    %v3324 = vpop.f32.mrf.mxu0
    %v3325 = vadd.f32 %v3236, %v3324
    %v3326 = vpop.f32.mrf.mxu0
    %v3327 = vadd.f32 %v3238, %v3326
    %3328 = vmatmul.bf16.gmra.mxu0 %v847
    %v3329 = vpop.f32.mrf.mxu0
    %v3330 = vadd.f32 %v3241, %v3329
    %v3331 = vpop.f32.mrf.mxu0
    %v3332 = vadd.f32 %v3243, %v3331
    %3333 = vmatmul.bf16.gmra.mxu0 %v854
    %v3334 = vpop.f32.mrf.mxu0
    %v3335 = vadd.f32 %v3246, %v3334
    %v3336 = vpop.f32.mrf.mxu0
    %v3337 = vadd.f32 %v3248, %v3336
    %3338 = vmatmul.bf16.gmra.mxu0 %v861
    %v3339 = vpop.f32.mrf.mxu0
    %v3340 = vadd.f32 %v3251, %v3339
    %v3341 = vpop.f32.mrf.mxu0
    %v3342 = vadd.f32 %v3253, %v3341
    %3343 = vmatmul.bf16.gmra.mxu0 %v868
    %v3344 = vpop.f32.mrf.mxu0
    %v3345 = vadd.f32 %v3256, %v3344
    %v3346 = vpop.f32.mrf.mxu0
    %v3347 = vadd.f32 %v3258, %v3346
    %3348 = vmatmul.bf16.gmra.mxu0 %v875
    %v3349 = vpop.f32.mrf.mxu0
    %v3350 = vadd.f32 %v3261, %v3349
    %v3351 = vpop.f32.mrf.mxu0
    %v3352 = vadd.f32 %v3263, %v3351
    %3353 = vdwg.mxu0
    %3354 = vmatpush.bf16.msra.mxu0 %v1690
    %3355 = vmatpush.bf16.msra.mxu0 %v1686
    %3356 = vmatpush.bf16.msra.mxu0 %v1682
    %3357 = vmatpush.bf16.msra.mxu0 %v1678
    %3358 = vmatpush.bf16.msra.mxu0 %v1674
    %3359 = vmatpush.bf16.msra.mxu0 %v1670
    %3360 = vmatpush.bf16.msra.mxu0 %v1666
    %3361 = vmatpush.bf16.msra.mxu0 %v1662
    %3362 = vmatmul.bf16.gmra.mxu0 %v764
    %v3363 = vpop.f32.mrf.mxu0
    %v3364 = vadd.f32 %v406, %v3363
    %v3365 = vpop.f32.mrf.mxu0
    %v3366 = vadd.f32 %v406, %v3365
    %3367 = vmatmul.bf16.gmra.mxu0 %v771
    %v3368 = vpop.f32.mrf.mxu0
    %v3369 = vadd.f32 %v406, %v3368
    %v3370 = vpop.f32.mrf.mxu0
    %v3371 = vadd.f32 %v406, %v3370
    %3372 = vmatmul.bf16.gmra.mxu0 %v778
    %v3373 = vpop.f32.mrf.mxu0
    %v3374 = vadd.f32 %v406, %v3373
    %v3375 = vpop.f32.mrf.mxu0
    %v3376 = vadd.f32 %v406, %v3375
    %3377 = vmatmul.bf16.gmra.mxu0 %v785
    %v3378 = vpop.f32.mrf.mxu0
    %v3379 = vadd.f32 %v406, %v3378
    %v3380 = vpop.f32.mrf.mxu0
    %v3381 = vadd.f32 %v406, %v3380
    %3382 = vmatmul.bf16.gmra.mxu0 %v792
    %v3383 = vpop.f32.mrf.mxu0
    %v3384 = vadd.f32 %v406, %v3383
    %v3385 = vpop.f32.mrf.mxu0
    %v3386 = vadd.f32 %v406, %v3385
    %3387 = vmatmul.bf16.gmra.mxu0 %v799
    %v3388 = vpop.f32.mrf.mxu0
    %v3389 = vadd.f32 %v406, %v3388
    %v3390 = vpop.f32.mrf.mxu0
    %v3391 = vadd.f32 %v406, %v3390
    %3392 = vmatmul.bf16.gmra.mxu0 %v806
    %v3393 = vpop.f32.mrf.mxu0
    %v3394 = vadd.f32 %v406, %v3393
    %v3395 = vpop.f32.mrf.mxu0
    %v3396 = vadd.f32 %v406, %v3395
    %3397 = vmatmul.bf16.gmra.mxu0 %v813
    %v3398 = vpop.f32.mrf.mxu0
    %v3399 = vadd.f32 %v406, %v3398
    %v3400 = vpop.f32.mrf.mxu0
    %v3401 = vadd.f32 %v406, %v3400
    %3402 = vmatmul.bf16.gmra.mxu0 %v820
    %v3403 = vpop.f32.mrf.mxu0
    %v3404 = vadd.f32 %v406, %v3403
    %v3405 = vpop.f32.mrf.mxu0
    %v3406 = vadd.f32 %v406, %v3405
    %3407 = vmatmul.bf16.gmra.mxu0 %v827
    %v3408 = vpop.f32.mrf.mxu0
    %v3409 = vadd.f32 %v406, %v3408
    %v3410 = vpop.f32.mrf.mxu0
    %v3411 = vadd.f32 %v406, %v3410
    %3412 = vmatmul.bf16.gmra.mxu0 %v834
    %v3413 = vpop.f32.mrf.mxu0
    %v3414 = vadd.f32 %v406, %v3413
    %v3415 = vpop.f32.mrf.mxu0
    %v3416 = vadd.f32 %v406, %v3415
    %3417 = vmatmul.bf16.gmra.mxu0 %v841
    %v3418 = vpop.f32.mrf.mxu0
    %v3419 = vadd.f32 %v406, %v3418
    %v3420 = vpop.f32.mrf.mxu0
    %v3421 = vadd.f32 %v406, %v3420
    %3422 = vmatmul.bf16.gmra.mxu0 %v848
    %v3423 = vpop.f32.mrf.mxu0
    %v3424 = vadd.f32 %v406, %v3423
    %v3425 = vpop.f32.mrf.mxu0
    %v3426 = vadd.f32 %v406, %v3425
    %3427 = vmatmul.bf16.gmra.mxu0 %v855
    %v3428 = vpop.f32.mrf.mxu0
    %v3429 = vadd.f32 %v406, %v3428
    %v3430 = vpop.f32.mrf.mxu0
    %v3431 = vadd.f32 %v406, %v3430
    %3432 = vmatmul.bf16.gmra.mxu0 %v862
    %v3433 = vpop.f32.mrf.mxu0
    %v3434 = vadd.f32 %v406, %v3433
    %v3435 = vpop.f32.mrf.mxu0
    %v3436 = vadd.f32 %v406, %v3435
    %3437 = vmatmul.bf16.gmra.mxu0 %v869
    %v3438 = vpop.f32.mrf.mxu0
    %v3439 = vadd.f32 %v406, %v3438
    %v3440 = vpop.f32.mrf.mxu0
    %v3441 = vadd.f32 %v406, %v3440
    %3442 = vdwg.mxu0
    %3443 = vmatpush.bf16.msra.mxu0 %v1722
    %3444 = vmatpush.bf16.msra.mxu0 %v1718
    %3445 = vmatpush.bf16.msra.mxu0 %v1714
    %3446 = vmatpush.bf16.msra.mxu0 %v1710
    %3447 = vmatpush.bf16.msra.mxu0 %v1706
    %3448 = vmatpush.bf16.msra.mxu0 %v1702
    %3449 = vmatpush.bf16.msra.mxu0 %v1698
    %3450 = vmatpush.bf16.msra.mxu0 %v1694
    %3451 = vmatmul.bf16.gmra.mxu0 %v765
    %v3452 = vpop.f32.mrf.mxu0
    %v3453 = vadd.f32 %v3364, %v3452
    %v3454 = vpop.f32.mrf.mxu0
    %v3455 = vadd.f32 %v3366, %v3454
    %3456 = vmatmul.bf16.gmra.mxu0 %v772
    %v3457 = vpop.f32.mrf.mxu0
    %v3458 = vadd.f32 %v3369, %v3457
    %v3459 = vpop.f32.mrf.mxu0
    %v3460 = vadd.f32 %v3371, %v3459
    %3461 = vmatmul.bf16.gmra.mxu0 %v779
    %v3462 = vpop.f32.mrf.mxu0
    %v3463 = vadd.f32 %v3374, %v3462
    %v3464 = vpop.f32.mrf.mxu0
    %v3465 = vadd.f32 %v3376, %v3464
    %3466 = vmatmul.bf16.gmra.mxu0 %v786
    %v3467 = vpop.f32.mrf.mxu0
    %v3468 = vadd.f32 %v3379, %v3467
    %v3469 = vpop.f32.mrf.mxu0
    %v3470 = vadd.f32 %v3381, %v3469
    %3471 = vmatmul.bf16.gmra.mxu0 %v793
    %v3472 = vpop.f32.mrf.mxu0
    %v3473 = vadd.f32 %v3384, %v3472
    %v3474 = vpop.f32.mrf.mxu0
    %v3475 = vadd.f32 %v3386, %v3474
    %3476 = vmatmul.bf16.gmra.mxu0 %v800
    %v3477 = vpop.f32.mrf.mxu0
    %v3478 = vadd.f32 %v3389, %v3477
    %v3479 = vpop.f32.mrf.mxu0
    %v3480 = vadd.f32 %v3391, %v3479
    %3481 = vmatmul.bf16.gmra.mxu0 %v807
    %v3482 = vpop.f32.mrf.mxu0
    %v3483 = vadd.f32 %v3394, %v3482
    %v3484 = vpop.f32.mrf.mxu0
    %v3485 = vadd.f32 %v3396, %v3484
    %3486 = vmatmul.bf16.gmra.mxu0 %v814
    %v3487 = vpop.f32.mrf.mxu0
    %v3488 = vadd.f32 %v3399, %v3487
    %v3489 = vpop.f32.mrf.mxu0
    %v3490 = vadd.f32 %v3401, %v3489
    %3491 = vmatmul.bf16.gmra.mxu0 %v821
    %v3492 = vpop.f32.mrf.mxu0
    %v3493 = vadd.f32 %v3404, %v3492
    %v3494 = vpop.f32.mrf.mxu0
    %v3495 = vadd.f32 %v3406, %v3494
    %3496 = vmatmul.bf16.gmra.mxu0 %v828
    %v3497 = vpop.f32.mrf.mxu0
    %v3498 = vadd.f32 %v3409, %v3497
    %v3499 = vpop.f32.mrf.mxu0
    %v3500 = vadd.f32 %v3411, %v3499
    %3501 = vmatmul.bf16.gmra.mxu0 %v835
    %v3502 = vpop.f32.mrf.mxu0
    %v3503 = vadd.f32 %v3414, %v3502
    %v3504 = vpop.f32.mrf.mxu0
    %v3505 = vadd.f32 %v3416, %v3504
    %3506 = vmatmul.bf16.gmra.mxu0 %v842
    %v3507 = vpop.f32.mrf.mxu0
    %v3508 = vadd.f32 %v3419, %v3507
    %v3509 = vpop.f32.mrf.mxu0
    %v3510 = vadd.f32 %v3421, %v3509
    %3511 = vmatmul.bf16.gmra.mxu0 %v849
    %v3512 = vpop.f32.mrf.mxu0
    %v3513 = vadd.f32 %v3424, %v3512
    %v3514 = vpop.f32.mrf.mxu0
    %v3515 = vadd.f32 %v3426, %v3514
    %3516 = vmatmul.bf16.gmra.mxu0 %v856
    %v3517 = vpop.f32.mrf.mxu0
    %v3518 = vadd.f32 %v3429, %v3517
    %v3519 = vpop.f32.mrf.mxu0
    %v3520 = vadd.f32 %v3431, %v3519
    %3521 = vmatmul.bf16.gmra.mxu0 %v863
    %v3522 = vpop.f32.mrf.mxu0
    %v3523 = vadd.f32 %v3434, %v3522
    %v3524 = vpop.f32.mrf.mxu0
    %v3525 = vadd.f32 %v3436, %v3524
    %3526 = vmatmul.bf16.gmra.mxu0 %v870
    %v3527 = vpop.f32.mrf.mxu0
    %v3528 = vadd.f32 %v3439, %v3527
    %v3529 = vpop.f32.mrf.mxu0
    %v3530 = vadd.f32 %v3441, %v3529
    %3531 = vdwg.mxu0
    %3532 = vmatpush.bf16.msra.mxu0 %v1754
    %3533 = vmatpush.bf16.msra.mxu0 %v1750
    %3534 = vmatpush.bf16.msra.mxu0 %v1746
    %3535 = vmatpush.bf16.msra.mxu0 %v1742
    %3536 = vmatpush.bf16.msra.mxu0 %v1738
    %3537 = vmatpush.bf16.msra.mxu0 %v1734
    %3538 = vmatpush.bf16.msra.mxu0 %v1730
    %3539 = vmatpush.bf16.msra.mxu0 %v1726
    %3540 = vmatmul.bf16.gmra.mxu0 %v766
    %v3541 = vpop.f32.mrf.mxu0
    %v3542 = vadd.f32 %v3453, %v3541
    %v3543 = vpop.f32.mrf.mxu0
    %v3544 = vadd.f32 %v3455, %v3543
    %3545 = vmatmul.bf16.gmra.mxu0 %v773
    %v3546 = vpop.f32.mrf.mxu0
    %v3547 = vadd.f32 %v3458, %v3546
    %v3548 = vpop.f32.mrf.mxu0
    %v3549 = vadd.f32 %v3460, %v3548
    %3550 = vmatmul.bf16.gmra.mxu0 %v780
    %v3551 = vpop.f32.mrf.mxu0
    %v3552 = vadd.f32 %v3463, %v3551
    %v3553 = vpop.f32.mrf.mxu0
    %v3554 = vadd.f32 %v3465, %v3553
    %3555 = vmatmul.bf16.gmra.mxu0 %v787
    %v3556 = vpop.f32.mrf.mxu0
    %v3557 = vadd.f32 %v3468, %v3556
    %v3558 = vpop.f32.mrf.mxu0
    %v3559 = vadd.f32 %v3470, %v3558
    %3560 = vmatmul.bf16.gmra.mxu0 %v794
    %v3561 = vpop.f32.mrf.mxu0
    %v3562 = vadd.f32 %v3473, %v3561
    %v3563 = vpop.f32.mrf.mxu0
    %v3564 = vadd.f32 %v3475, %v3563
    %3565 = vmatmul.bf16.gmra.mxu0 %v801
    %v3566 = vpop.f32.mrf.mxu0
    %v3567 = vadd.f32 %v3478, %v3566
    %v3568 = vpop.f32.mrf.mxu0
    %v3569 = vadd.f32 %v3480, %v3568
    %3570 = vmatmul.bf16.gmra.mxu0 %v808
    %v3571 = vpop.f32.mrf.mxu0
    %v3572 = vadd.f32 %v3483, %v3571
    %v3573 = vpop.f32.mrf.mxu0
    %v3574 = vadd.f32 %v3485, %v3573
    %3575 = vmatmul.bf16.gmra.mxu0 %v815
    %v3576 = vpop.f32.mrf.mxu0
    %v3577 = vadd.f32 %v3488, %v3576
    %v3578 = vpop.f32.mrf.mxu0
    %v3579 = vadd.f32 %v3490, %v3578
    %3580 = vmatmul.bf16.gmra.mxu0 %v822
    %v3581 = vpop.f32.mrf.mxu0
    %v3582 = vadd.f32 %v3493, %v3581
    %v3583 = vpop.f32.mrf.mxu0
    %v3584 = vadd.f32 %v3495, %v3583
    %3585 = vmatmul.bf16.gmra.mxu0 %v829
    %v3586 = vpop.f32.mrf.mxu0
    %v3587 = vadd.f32 %v3498, %v3586
    %v3588 = vpop.f32.mrf.mxu0
    %v3589 = vadd.f32 %v3500, %v3588
    %3590 = vmatmul.bf16.gmra.mxu0 %v836
    %v3591 = vpop.f32.mrf.mxu0
    %v3592 = vadd.f32 %v3503, %v3591
    %v3593 = vpop.f32.mrf.mxu0
    %v3594 = vadd.f32 %v3505, %v3593
    %3595 = vmatmul.bf16.gmra.mxu0 %v843
    %v3596 = vpop.f32.mrf.mxu0
    %v3597 = vadd.f32 %v3508, %v3596
    %v3598 = vpop.f32.mrf.mxu0
    %v3599 = vadd.f32 %v3510, %v3598
    %3600 = vmatmul.bf16.gmra.mxu0 %v850
    %v3601 = vpop.f32.mrf.mxu0
    %v3602 = vadd.f32 %v3513, %v3601
    %v3603 = vpop.f32.mrf.mxu0
    %v3604 = vadd.f32 %v3515, %v3603
    %3605 = vmatmul.bf16.gmra.mxu0 %v857
    %v3606 = vpop.f32.mrf.mxu0
    %v3607 = vadd.f32 %v3518, %v3606
    %v3608 = vpop.f32.mrf.mxu0
    %v3609 = vadd.f32 %v3520, %v3608
    %3610 = vmatmul.bf16.gmra.mxu0 %v864
    %v3611 = vpop.f32.mrf.mxu0
    %v3612 = vadd.f32 %v3523, %v3611
    %v3613 = vpop.f32.mrf.mxu0
    %v3614 = vadd.f32 %v3525, %v3613
    %3615 = vmatmul.bf16.gmra.mxu0 %v871
    %v3616 = vpop.f32.mrf.mxu0
    %v3617 = vadd.f32 %v3528, %v3616
    %v3618 = vpop.f32.mrf.mxu0
    %v3619 = vadd.f32 %v3530, %v3618
    %3620 = vdwg.mxu0
    %3621 = vmatpush.bf16.msra.mxu0 %v1786
    %3622 = vmatpush.bf16.msra.mxu0 %v1782
    %3623 = vmatpush.bf16.msra.mxu0 %v1778
    %3624 = vmatpush.bf16.msra.mxu0 %v1774
    %3625 = vmatpush.bf16.msra.mxu0 %v1770
    %3626 = vmatpush.bf16.msra.mxu0 %v1766
    %3627 = vmatpush.bf16.msra.mxu0 %v1762
    %3628 = vmatpush.bf16.msra.mxu0 %v1758
    %3629 = vmatmul.bf16.gmra.mxu0 %v767
    %v3630 = vpop.f32.mrf.mxu0
    %v3631 = vadd.f32 %v3542, %v3630
    %v3632 = vpop.f32.mrf.mxu0
    %v3633 = vadd.f32 %v3544, %v3632
    %3634 = vmatmul.bf16.gmra.mxu0 %v774
    %v3635 = vpop.f32.mrf.mxu0
    %v3636 = vadd.f32 %v3547, %v3635
    %v3637 = vpop.f32.mrf.mxu0
    %v3638 = vadd.f32 %v3549, %v3637
    %3639 = vmatmul.bf16.gmra.mxu0 %v781
    %v3640 = vpop.f32.mrf.mxu0
    %v3641 = vadd.f32 %v3552, %v3640
    %v3642 = vpop.f32.mrf.mxu0
    %v3643 = vadd.f32 %v3554, %v3642
    %3644 = vmatmul.bf16.gmra.mxu0 %v788
    %v3645 = vpop.f32.mrf.mxu0
    %v3646 = vadd.f32 %v3557, %v3645
    %v3647 = vpop.f32.mrf.mxu0
    %v3648 = vadd.f32 %v3559, %v3647
    %3649 = vmatmul.bf16.gmra.mxu0 %v795
    %v3650 = vpop.f32.mrf.mxu0
    %v3651 = vadd.f32 %v3562, %v3650
    %v3652 = vpop.f32.mrf.mxu0
    %v3653 = vadd.f32 %v3564, %v3652
    %3654 = vmatmul.bf16.gmra.mxu0 %v802
    %v3655 = vpop.f32.mrf.mxu0
    %v3656 = vadd.f32 %v3567, %v3655
    %v3657 = vpop.f32.mrf.mxu0
    %v3658 = vadd.f32 %v3569, %v3657
    %3659 = vmatmul.bf16.gmra.mxu0 %v809
    %v3660 = vpop.f32.mrf.mxu0
    %v3661 = vadd.f32 %v3572, %v3660
    %v3662 = vpop.f32.mrf.mxu0
    %v3663 = vadd.f32 %v3574, %v3662
    %3664 = vmatmul.bf16.gmra.mxu0 %v816
    %v3665 = vpop.f32.mrf.mxu0
    %v3666 = vadd.f32 %v3577, %v3665
    %v3667 = vpop.f32.mrf.mxu0
    %v3668 = vadd.f32 %v3579, %v3667
    %3669 = vmatmul.bf16.gmra.mxu0 %v823
    %v3670 = vpop.f32.mrf.mxu0
    %v3671 = vadd.f32 %v3582, %v3670
    %v3672 = vpop.f32.mrf.mxu0
    %v3673 = vadd.f32 %v3584, %v3672
    %3674 = vmatmul.bf16.gmra.mxu0 %v830
    %v3675 = vpop.f32.mrf.mxu0
    %v3676 = vadd.f32 %v3587, %v3675
    %v3677 = vpop.f32.mrf.mxu0
    %v3678 = vadd.f32 %v3589, %v3677
    %3679 = vmatmul.bf16.gmra.mxu0 %v837
    %v3680 = vpop.f32.mrf.mxu0
    %v3681 = vadd.f32 %v3592, %v3680
    %v3682 = vpop.f32.mrf.mxu0
    %v3683 = vadd.f32 %v3594, %v3682
    %3684 = vmatmul.bf16.gmra.mxu0 %v844
    %v3685 = vpop.f32.mrf.mxu0
    %v3686 = vadd.f32 %v3597, %v3685
    %v3687 = vpop.f32.mrf.mxu0
    %v3688 = vadd.f32 %v3599, %v3687
    %3689 = vmatmul.bf16.gmra.mxu0 %v851
    %v3690 = vpop.f32.mrf.mxu0
    %v3691 = vadd.f32 %v3602, %v3690
    %v3692 = vpop.f32.mrf.mxu0
    %v3693 = vadd.f32 %v3604, %v3692
    %3694 = vmatmul.bf16.gmra.mxu0 %v858
    %v3695 = vpop.f32.mrf.mxu0
    %v3696 = vadd.f32 %v3607, %v3695
    %v3697 = vpop.f32.mrf.mxu0
    %v3698 = vadd.f32 %v3609, %v3697
    %3699 = vmatmul.bf16.gmra.mxu0 %v865
    %v3700 = vpop.f32.mrf.mxu0
    %v3701 = vadd.f32 %v3612, %v3700
    %v3702 = vpop.f32.mrf.mxu0
    %v3703 = vadd.f32 %v3614, %v3702
    %3704 = vmatmul.bf16.gmra.mxu0 %v872
    %v3705 = vpop.f32.mrf.mxu0
    %v3706 = vadd.f32 %v3617, %v3705
    %v3707 = vpop.f32.mrf.mxu0
    %v3708 = vadd.f32 %v3619, %v3707
    %3709 = vdwg.mxu0
    %3710 = vmatpush.bf16.msra.mxu0 %v1818
    %3711 = vmatpush.bf16.msra.mxu0 %v1814
    %3712 = vmatpush.bf16.msra.mxu0 %v1810
    %3713 = vmatpush.bf16.msra.mxu0 %v1806
    %3714 = vmatpush.bf16.msra.mxu0 %v1802
    %3715 = vmatpush.bf16.msra.mxu0 %v1798
    %3716 = vmatpush.bf16.msra.mxu0 %v1794
    %3717 = vmatpush.bf16.msra.mxu0 %v1790
    %3718 = vmatmul.bf16.gmra.mxu0 %v768
    %v3719 = vpop.f32.mrf.mxu0
    %v3720 = vadd.f32 %v3631, %v3719
    %v3721 = vpop.f32.mrf.mxu0
    %v3722 = vadd.f32 %v3633, %v3721
    %3723 = vmatmul.bf16.gmra.mxu0 %v775
    %v3724 = vpop.f32.mrf.mxu0
    %v3725 = vadd.f32 %v3636, %v3724
    %v3726 = vpop.f32.mrf.mxu0
    %v3727 = vadd.f32 %v3638, %v3726
    %3728 = vmatmul.bf16.gmra.mxu0 %v782
    %v3729 = vpop.f32.mrf.mxu0
    %v3730 = vadd.f32 %v3641, %v3729
    %v3731 = vpop.f32.mrf.mxu0
    %v3732 = vadd.f32 %v3643, %v3731
    %3733 = vmatmul.bf16.gmra.mxu0 %v789
    %v3734 = vpop.f32.mrf.mxu0
    %v3735 = vadd.f32 %v3646, %v3734
    %v3736 = vpop.f32.mrf.mxu0
    %v3737 = vadd.f32 %v3648, %v3736
    %3738 = vmatmul.bf16.gmra.mxu0 %v796
    %v3739 = vpop.f32.mrf.mxu0
    %v3740 = vadd.f32 %v3651, %v3739
    %v3741 = vpop.f32.mrf.mxu0
    %v3742 = vadd.f32 %v3653, %v3741
    %3743 = vmatmul.bf16.gmra.mxu0 %v803
    %v3744 = vpop.f32.mrf.mxu0
    %v3745 = vadd.f32 %v3656, %v3744
    %v3746 = vpop.f32.mrf.mxu0
    %v3747 = vadd.f32 %v3658, %v3746
    %3748 = vmatmul.bf16.gmra.mxu0 %v810
    %v3749 = vpop.f32.mrf.mxu0
    %v3750 = vadd.f32 %v3661, %v3749
    %v3751 = vpop.f32.mrf.mxu0
    %v3752 = vadd.f32 %v3663, %v3751
    %3753 = vmatmul.bf16.gmra.mxu0 %v817
    %v3754 = vpop.f32.mrf.mxu0
    %v3755 = vadd.f32 %v3666, %v3754
    %v3756 = vpop.f32.mrf.mxu0
    %v3757 = vadd.f32 %v3668, %v3756
    %3758 = vmatmul.bf16.gmra.mxu0 %v824
    %v3759 = vpop.f32.mrf.mxu0
    %v3760 = vadd.f32 %v3671, %v3759
    %v3761 = vpop.f32.mrf.mxu0
    %v3762 = vadd.f32 %v3673, %v3761
    %3763 = vmatmul.bf16.gmra.mxu0 %v831
    %v3764 = vpop.f32.mrf.mxu0
    %v3765 = vadd.f32 %v3676, %v3764
    %v3766 = vpop.f32.mrf.mxu0
    %v3767 = vadd.f32 %v3678, %v3766
    %3768 = vmatmul.bf16.gmra.mxu0 %v838
    %v3769 = vpop.f32.mrf.mxu0
    %v3770 = vadd.f32 %v3681, %v3769
    %v3771 = vpop.f32.mrf.mxu0
    %v3772 = vadd.f32 %v3683, %v3771
    %3773 = vmatmul.bf16.gmra.mxu0 %v845
    %v3774 = vpop.f32.mrf.mxu0
    %v3775 = vadd.f32 %v3686, %v3774
    %v3776 = vpop.f32.mrf.mxu0
    %v3777 = vadd.f32 %v3688, %v3776
    %3778 = vmatmul.bf16.gmra.mxu0 %v852
    %v3779 = vpop.f32.mrf.mxu0
    %v3780 = vadd.f32 %v3691, %v3779
    %v3781 = vpop.f32.mrf.mxu0
    %v3782 = vadd.f32 %v3693, %v3781
    %3783 = vmatmul.bf16.gmra.mxu0 %v859
    %v3784 = vpop.f32.mrf.mxu0
    %v3785 = vadd.f32 %v3696, %v3784
    %v3786 = vpop.f32.mrf.mxu0
    %v3787 = vadd.f32 %v3698, %v3786
    %3788 = vmatmul.bf16.gmra.mxu0 %v866
    %v3789 = vpop.f32.mrf.mxu0
    %v3790 = vadd.f32 %v3701, %v3789
    %v3791 = vpop.f32.mrf.mxu0
    %v3792 = vadd.f32 %v3703, %v3791
    %3793 = vmatmul.bf16.gmra.mxu0 %v873
    %v3794 = vpop.f32.mrf.mxu0
    %v3795 = vadd.f32 %v3706, %v3794
    %v3796 = vpop.f32.mrf.mxu0
    %v3797 = vadd.f32 %v3708, %v3796
    %3798 = vdwg.mxu0
    %3799 = vmatpush.bf16.msra.mxu0 %v1850
    %3800 = vmatpush.bf16.msra.mxu0 %v1846
    %3801 = vmatpush.bf16.msra.mxu0 %v1842
    %3802 = vmatpush.bf16.msra.mxu0 %v1838
    %3803 = vmatpush.bf16.msra.mxu0 %v1834
    %3804 = vmatpush.bf16.msra.mxu0 %v1830
    %3805 = vmatpush.bf16.msra.mxu0 %v1826
    %3806 = vmatpush.bf16.msra.mxu0 %v1822
    %3807 = vmatmul.bf16.gmra.mxu0 %v769
    %v3808 = vpop.f32.mrf.mxu0
    %v3809 = vadd.f32 %v3720, %v3808
    %v3810 = vpop.f32.mrf.mxu0
    %v3811 = vadd.f32 %v3722, %v3810
    %3812 = vmatmul.bf16.gmra.mxu0 %v776
    %v3813 = vpop.f32.mrf.mxu0
    %v3814 = vadd.f32 %v3725, %v3813
    %v3815 = vpop.f32.mrf.mxu0
    %v3816 = vadd.f32 %v3727, %v3815
    %3817 = vmatmul.bf16.gmra.mxu0 %v783
    %v3818 = vpop.f32.mrf.mxu0
    %v3819 = vadd.f32 %v3730, %v3818
    %v3820 = vpop.f32.mrf.mxu0
    %v3821 = vadd.f32 %v3732, %v3820
    %3822 = vmatmul.bf16.gmra.mxu0 %v790
    %v3823 = vpop.f32.mrf.mxu0
    %v3824 = vadd.f32 %v3735, %v3823
    %v3825 = vpop.f32.mrf.mxu0
    %v3826 = vadd.f32 %v3737, %v3825
    %3827 = vmatmul.bf16.gmra.mxu0 %v797
    %v3828 = vpop.f32.mrf.mxu0
    %v3829 = vadd.f32 %v3740, %v3828
    %v3830 = vpop.f32.mrf.mxu0
    %v3831 = vadd.f32 %v3742, %v3830
    %3832 = vmatmul.bf16.gmra.mxu0 %v804
    %v3833 = vpop.f32.mrf.mxu0
    %v3834 = vadd.f32 %v3745, %v3833
    %v3835 = vpop.f32.mrf.mxu0
    %v3836 = vadd.f32 %v3747, %v3835
    %3837 = vmatmul.bf16.gmra.mxu0 %v811
    %v3838 = vpop.f32.mrf.mxu0
    %v3839 = vadd.f32 %v3750, %v3838
    %v3840 = vpop.f32.mrf.mxu0
    %v3841 = vadd.f32 %v3752, %v3840
    %3842 = vmatmul.bf16.gmra.mxu0 %v818
    %v3843 = vpop.f32.mrf.mxu0
    %v3844 = vadd.f32 %v3755, %v3843
    %v3845 = vpop.f32.mrf.mxu0
    %v3846 = vadd.f32 %v3757, %v3845
    %3847 = vmatmul.bf16.gmra.mxu0 %v825
    %v3848 = vpop.f32.mrf.mxu0
    %v3849 = vadd.f32 %v3760, %v3848
    %v3850 = vpop.f32.mrf.mxu0
    %v3851 = vadd.f32 %v3762, %v3850
    %3852 = vmatmul.bf16.gmra.mxu0 %v832
    %v3853 = vpop.f32.mrf.mxu0
    %v3854 = vadd.f32 %v3765, %v3853
    %v3855 = vpop.f32.mrf.mxu0
    %v3856 = vadd.f32 %v3767, %v3855
    %3857 = vmatmul.bf16.gmra.mxu0 %v839
    %v3858 = vpop.f32.mrf.mxu0
    %v3859 = vadd.f32 %v3770, %v3858
    %v3860 = vpop.f32.mrf.mxu0
    %v3861 = vadd.f32 %v3772, %v3860
    %3862 = vmatmul.bf16.gmra.mxu0 %v846
    %v3863 = vpop.f32.mrf.mxu0
    %v3864 = vadd.f32 %v3775, %v3863
    %v3865 = vpop.f32.mrf.mxu0
    %v3866 = vadd.f32 %v3777, %v3865
    %3867 = vmatmul.bf16.gmra.mxu0 %v853
    %v3868 = vpop.f32.mrf.mxu0
    %v3869 = vadd.f32 %v3780, %v3868
    %v3870 = vpop.f32.mrf.mxu0
    %v3871 = vadd.f32 %v3782, %v3870
    %3872 = vmatmul.bf16.gmra.mxu0 %v860
    %v3873 = vpop.f32.mrf.mxu0
    %v3874 = vadd.f32 %v3785, %v3873
    %v3875 = vpop.f32.mrf.mxu0
    %v3876 = vadd.f32 %v3787, %v3875
    %3877 = vmatmul.bf16.gmra.mxu0 %v867
    %v3878 = vpop.f32.mrf.mxu0
    %v3879 = vadd.f32 %v3790, %v3878
    %v3880 = vpop.f32.mrf.mxu0
    %v3881 = vadd.f32 %v3792, %v3880
    %3882 = vmatmul.bf16.gmra.mxu0 %v874
    %v3883 = vpop.f32.mrf.mxu0
    %v3884 = vadd.f32 %v3795, %v3883
    %v3885 = vpop.f32.mrf.mxu0
    %v3886 = vadd.f32 %v3797, %v3885
    %3887 = vdwg.mxu0
    %3888 = vmatpush.bf16.msra.mxu0 %v1882
    %3889 = vmatpush.bf16.msra.mxu0 %v1878
    %3890 = vmatpush.bf16.msra.mxu0 %v1874
    %3891 = vmatpush.bf16.msra.mxu0 %v1870
    %3892 = vmatpush.bf16.msra.mxu0 %v1866
    %3893 = vmatpush.bf16.msra.mxu0 %v1862
    %3894 = vmatpush.bf16.msra.mxu0 %v1858
    %3895 = vmatpush.bf16.msra.mxu0 %v1854
    %3896 = vmatmul.bf16.gmra.mxu0 %v770
    %v3897 = vpop.f32.mrf.mxu0
    %v3898 = vadd.f32 %v3809, %v3897
    %v3899 = vpop.f32.mrf.mxu0
    %v3900 = vadd.f32 %v3811, %v3899
    %3901 = vmatmul.bf16.gmra.mxu0 %v777
    %v3902 = vpop.f32.mrf.mxu0
    %v3903 = vadd.f32 %v3814, %v3902
    %v3904 = vpop.f32.mrf.mxu0
    %v3905 = vadd.f32 %v3816, %v3904
    %3906 = vmatmul.bf16.gmra.mxu0 %v784
    %v3907 = vpop.f32.mrf.mxu0
    %v3908 = vadd.f32 %v3819, %v3907
    %v3909 = vpop.f32.mrf.mxu0
    %v3910 = vadd.f32 %v3821, %v3909
    %3911 = vmatmul.bf16.gmra.mxu0 %v791
    %v3912 = vpop.f32.mrf.mxu0
    %v3913 = vadd.f32 %v3824, %v3912
    %v3914 = vpop.f32.mrf.mxu0
    %v3915 = vadd.f32 %v3826, %v3914
    %3916 = vmatmul.bf16.gmra.mxu0 %v798
    %v3917 = vpop.f32.mrf.mxu0
    %v3918 = vadd.f32 %v3829, %v3917
    %v3919 = vpop.f32.mrf.mxu0
    %v3920 = vadd.f32 %v3831, %v3919
    %3921 = vmatmul.bf16.gmra.mxu0 %v805
    %v3922 = vpop.f32.mrf.mxu0
    %v3923 = vadd.f32 %v3834, %v3922
    %v3924 = vpop.f32.mrf.mxu0
    %v3925 = vadd.f32 %v3836, %v3924
    %3926 = vmatmul.bf16.gmra.mxu0 %v812
    %v3927 = vpop.f32.mrf.mxu0
    %v3928 = vadd.f32 %v3839, %v3927
    %v3929 = vpop.f32.mrf.mxu0
    %v3930 = vadd.f32 %v3841, %v3929
    %3931 = vmatmul.bf16.gmra.mxu0 %v819
    %v3932 = vpop.f32.mrf.mxu0
    %v3933 = vadd.f32 %v3844, %v3932
    %v3934 = vpop.f32.mrf.mxu0
    %v3935 = vadd.f32 %v3846, %v3934
    %3936 = vmatmul.bf16.gmra.mxu0 %v826
    %v3937 = vpop.f32.mrf.mxu0
    %v3938 = vadd.f32 %v3849, %v3937
    %v3939 = vpop.f32.mrf.mxu0
    %v3940 = vadd.f32 %v3851, %v3939
    %3941 = vmatmul.bf16.gmra.mxu0 %v833
    %v3942 = vpop.f32.mrf.mxu0
    %v3943 = vadd.f32 %v3854, %v3942
    %v3944 = vpop.f32.mrf.mxu0
    %v3945 = vadd.f32 %v3856, %v3944
    %3946 = vmatmul.bf16.gmra.mxu0 %v840
    %v3947 = vpop.f32.mrf.mxu0
    %v3948 = vadd.f32 %v3859, %v3947
    %v3949 = vpop.f32.mrf.mxu0
    %v3950 = vadd.f32 %v3861, %v3949
    %3951 = vmatmul.bf16.gmra.mxu0 %v847
    %v3952 = vpop.f32.mrf.mxu0
    %v3953 = vadd.f32 %v3864, %v3952
    %v3954 = vpop.f32.mrf.mxu0
    %v3955 = vadd.f32 %v3866, %v3954
    %3956 = vmatmul.bf16.gmra.mxu0 %v854
    %v3957 = vpop.f32.mrf.mxu0
    %v3958 = vadd.f32 %v3869, %v3957
    %v3959 = vpop.f32.mrf.mxu0
    %v3960 = vadd.f32 %v3871, %v3959
    %3961 = vmatmul.bf16.gmra.mxu0 %v861
    %v3962 = vpop.f32.mrf.mxu0
    %v3963 = vadd.f32 %v3874, %v3962
    %v3964 = vpop.f32.mrf.mxu0
    %v3965 = vadd.f32 %v3876, %v3964
    %3966 = vmatmul.bf16.gmra.mxu0 %v868
    %v3967 = vpop.f32.mrf.mxu0
    %v3968 = vadd.f32 %v3879, %v3967
    %v3969 = vpop.f32.mrf.mxu0
    %v3970 = vadd.f32 %v3881, %v3969
    %3971 = vmatmul.bf16.gmra.mxu0 %v875
    %v3972 = vpop.f32.mrf.mxu0
    %v3973 = vadd.f32 %v3884, %v3972
    %v3974 = vpop.f32.mrf.mxu0
    %v3975 = vadd.f32 %v3886, %v3974
    %3976 = vdwg.mxu0
    %3977 = vmatpush.bf16.msra.mxu0 %v1691
    %3978 = vmatpush.bf16.msra.mxu0 %v1687
    %3979 = vmatpush.bf16.msra.mxu0 %v1683
    %3980 = vmatpush.bf16.msra.mxu0 %v1679
    %3981 = vmatpush.bf16.msra.mxu0 %v1675
    %3982 = vmatpush.bf16.msra.mxu0 %v1671
    %3983 = vmatpush.bf16.msra.mxu0 %v1667
    %3984 = vmatpush.bf16.msra.mxu0 %v1663
    %3985 = vmatmul.bf16.gmra.mxu0 %v764
    %v3986 = vpop.f32.mrf.mxu0
    %v3987 = vadd.f32 %v407, %v3986
    %v3988 = vpop.f32.mrf.mxu0
    %v3989 = vadd.f32 %v407, %v3988
    %3990 = vmatmul.bf16.gmra.mxu0 %v771
    %v3991 = vpop.f32.mrf.mxu0
    %v3992 = vadd.f32 %v407, %v3991
    %v3993 = vpop.f32.mrf.mxu0
    %v3994 = vadd.f32 %v407, %v3993
    %3995 = vmatmul.bf16.gmra.mxu0 %v778
    %v3996 = vpop.f32.mrf.mxu0
    %v3997 = vadd.f32 %v407, %v3996
    %v3998 = vpop.f32.mrf.mxu0
    %v3999 = vadd.f32 %v407, %v3998
    %4000 = vmatmul.bf16.gmra.mxu0 %v785
    %v4001 = vpop.f32.mrf.mxu0
    %v4002 = vadd.f32 %v407, %v4001
    %v4003 = vpop.f32.mrf.mxu0
    %v4004 = vadd.f32 %v407, %v4003
    %4005 = vmatmul.bf16.gmra.mxu0 %v792
    %v4006 = vpop.f32.mrf.mxu0
    %v4007 = vadd.f32 %v407, %v4006
    %v4008 = vpop.f32.mrf.mxu0
    %v4009 = vadd.f32 %v407, %v4008
    %4010 = vmatmul.bf16.gmra.mxu0 %v799
    %v4011 = vpop.f32.mrf.mxu0
    %v4012 = vadd.f32 %v407, %v4011
    %v4013 = vpop.f32.mrf.mxu0
    %v4014 = vadd.f32 %v407, %v4013
    %4015 = vmatmul.bf16.gmra.mxu0 %v806
    %v4016 = vpop.f32.mrf.mxu0
    %v4017 = vadd.f32 %v407, %v4016
    %v4018 = vpop.f32.mrf.mxu0
    %v4019 = vadd.f32 %v407, %v4018
    %4020 = vmatmul.bf16.gmra.mxu0 %v813
    %v4021 = vpop.f32.mrf.mxu0
    %v4022 = vadd.f32 %v407, %v4021
    %v4023 = vpop.f32.mrf.mxu0
    %v4024 = vadd.f32 %v407, %v4023
    %4025 = vmatmul.bf16.gmra.mxu0 %v820
    %v4026 = vpop.f32.mrf.mxu0
    %v4027 = vadd.f32 %v407, %v4026
    %v4028 = vpop.f32.mrf.mxu0
    %v4029 = vadd.f32 %v407, %v4028
    %4030 = vmatmul.bf16.gmra.mxu0 %v827
    %v4031 = vpop.f32.mrf.mxu0
    %v4032 = vadd.f32 %v407, %v4031
    %v4033 = vpop.f32.mrf.mxu0
    %v4034 = vadd.f32 %v407, %v4033
    %4035 = vmatmul.bf16.gmra.mxu0 %v834
    %v4036 = vpop.f32.mrf.mxu0
    %v4037 = vadd.f32 %v407, %v4036
    %v4038 = vpop.f32.mrf.mxu0
    %v4039 = vadd.f32 %v407, %v4038
    %4040 = vmatmul.bf16.gmra.mxu0 %v841
    %v4041 = vpop.f32.mrf.mxu0
    %v4042 = vadd.f32 %v407, %v4041
    %v4043 = vpop.f32.mrf.mxu0
    %v4044 = vadd.f32 %v407, %v4043
    %4045 = vmatmul.bf16.gmra.mxu0 %v848
    %v4046 = vpop.f32.mrf.mxu0
    %v4047 = vadd.f32 %v407, %v4046
    %v4048 = vpop.f32.mrf.mxu0
    %v4049 = vadd.f32 %v407, %v4048
    %4050 = vmatmul.bf16.gmra.mxu0 %v855
    %v4051 = vpop.f32.mrf.mxu0
    %v4052 = vadd.f32 %v407, %v4051
    %v4053 = vpop.f32.mrf.mxu0
    %v4054 = vadd.f32 %v407, %v4053
    %4055 = vmatmul.bf16.gmra.mxu0 %v862
    %v4056 = vpop.f32.mrf.mxu0
    %v4057 = vadd.f32 %v407, %v4056
    %v4058 = vpop.f32.mrf.mxu0
    %v4059 = vadd.f32 %v407, %v4058
    %4060 = vmatmul.bf16.gmra.mxu0 %v869
    %v4061 = vpop.f32.mrf.mxu0
    %v4062 = vadd.f32 %v407, %v4061
    %v4063 = vpop.f32.mrf.mxu0
    %v4064 = vadd.f32 %v407, %v4063
    %4065 = vdwg.mxu0
    %4066 = vmatpush.bf16.msra.mxu0 %v1723
    %4067 = vmatpush.bf16.msra.mxu0 %v1719
    %4068 = vmatpush.bf16.msra.mxu0 %v1715
    %4069 = vmatpush.bf16.msra.mxu0 %v1711
    %4070 = vmatpush.bf16.msra.mxu0 %v1707
    %4071 = vmatpush.bf16.msra.mxu0 %v1703
    %4072 = vmatpush.bf16.msra.mxu0 %v1699
    %4073 = vmatpush.bf16.msra.mxu0 %v1695
    %4074 = vmatmul.bf16.gmra.mxu0 %v765
    %v4075 = vpop.f32.mrf.mxu0
    %v4076 = vadd.f32 %v3987, %v4075
    %v4077 = vpop.f32.mrf.mxu0
    %v4078 = vadd.f32 %v3989, %v4077
    %4079 = vmatmul.bf16.gmra.mxu0 %v772
    %v4080 = vpop.f32.mrf.mxu0
    %v4081 = vadd.f32 %v3992, %v4080
    %v4082 = vpop.f32.mrf.mxu0
    %v4083 = vadd.f32 %v3994, %v4082
    %4084 = vmatmul.bf16.gmra.mxu0 %v779
    %v4085 = vpop.f32.mrf.mxu0
    %v4086 = vadd.f32 %v3997, %v4085
    %v4087 = vpop.f32.mrf.mxu0
    %v4088 = vadd.f32 %v3999, %v4087
    %4089 = vmatmul.bf16.gmra.mxu0 %v786
    %v4090 = vpop.f32.mrf.mxu0
    %v4091 = vadd.f32 %v4002, %v4090
    %v4092 = vpop.f32.mrf.mxu0
    %v4093 = vadd.f32 %v4004, %v4092
    %4094 = vmatmul.bf16.gmra.mxu0 %v793
    %v4095 = vpop.f32.mrf.mxu0
    %v4096 = vadd.f32 %v4007, %v4095
    %v4097 = vpop.f32.mrf.mxu0
    %v4098 = vadd.f32 %v4009, %v4097
    %4099 = vmatmul.bf16.gmra.mxu0 %v800
    %v4100 = vpop.f32.mrf.mxu0
    %v4101 = vadd.f32 %v4012, %v4100
    %v4102 = vpop.f32.mrf.mxu0
    %v4103 = vadd.f32 %v4014, %v4102
    %4104 = vmatmul.bf16.gmra.mxu0 %v807
    %v4105 = vpop.f32.mrf.mxu0
    %v4106 = vadd.f32 %v4017, %v4105
    %v4107 = vpop.f32.mrf.mxu0
    %v4108 = vadd.f32 %v4019, %v4107
    %4109 = vmatmul.bf16.gmra.mxu0 %v814
    %v4110 = vpop.f32.mrf.mxu0
    %v4111 = vadd.f32 %v4022, %v4110
    %v4112 = vpop.f32.mrf.mxu0
    %v4113 = vadd.f32 %v4024, %v4112
    %4114 = vmatmul.bf16.gmra.mxu0 %v821
    %v4115 = vpop.f32.mrf.mxu0
    %v4116 = vadd.f32 %v4027, %v4115
    %v4117 = vpop.f32.mrf.mxu0
    %v4118 = vadd.f32 %v4029, %v4117
    %4119 = vmatmul.bf16.gmra.mxu0 %v828
    %v4120 = vpop.f32.mrf.mxu0
    %v4121 = vadd.f32 %v4032, %v4120
    %v4122 = vpop.f32.mrf.mxu0
    %v4123 = vadd.f32 %v4034, %v4122
    %4124 = vmatmul.bf16.gmra.mxu0 %v835
    %v4125 = vpop.f32.mrf.mxu0
    %v4126 = vadd.f32 %v4037, %v4125
    %v4127 = vpop.f32.mrf.mxu0
    %v4128 = vadd.f32 %v4039, %v4127
    %4129 = vmatmul.bf16.gmra.mxu0 %v842
    %v4130 = vpop.f32.mrf.mxu0
    %v4131 = vadd.f32 %v4042, %v4130
    %v4132 = vpop.f32.mrf.mxu0
    %v4133 = vadd.f32 %v4044, %v4132
    %4134 = vmatmul.bf16.gmra.mxu0 %v849
    %v4135 = vpop.f32.mrf.mxu0
    %v4136 = vadd.f32 %v4047, %v4135
    %v4137 = vpop.f32.mrf.mxu0
    %v4138 = vadd.f32 %v4049, %v4137
    %4139 = vmatmul.bf16.gmra.mxu0 %v856
    %v4140 = vpop.f32.mrf.mxu0
    %v4141 = vadd.f32 %v4052, %v4140
    %v4142 = vpop.f32.mrf.mxu0
    %v4143 = vadd.f32 %v4054, %v4142
    %4144 = vmatmul.bf16.gmra.mxu0 %v863
    %v4145 = vpop.f32.mrf.mxu0
    %v4146 = vadd.f32 %v4057, %v4145
    %v4147 = vpop.f32.mrf.mxu0
    %v4148 = vadd.f32 %v4059, %v4147
    %4149 = vmatmul.bf16.gmra.mxu0 %v870
    %v4150 = vpop.f32.mrf.mxu0
    %v4151 = vadd.f32 %v4062, %v4150
    %v4152 = vpop.f32.mrf.mxu0
    %v4153 = vadd.f32 %v4064, %v4152
    %4154 = vdwg.mxu0
    %4155 = vmatpush.bf16.msra.mxu0 %v1755
    %4156 = vmatpush.bf16.msra.mxu0 %v1751
    %4157 = vmatpush.bf16.msra.mxu0 %v1747
    %4158 = vmatpush.bf16.msra.mxu0 %v1743
    %4159 = vmatpush.bf16.msra.mxu0 %v1739
    %4160 = vmatpush.bf16.msra.mxu0 %v1735
    %4161 = vmatpush.bf16.msra.mxu0 %v1731
    %4162 = vmatpush.bf16.msra.mxu0 %v1727
    %4163 = vmatmul.bf16.gmra.mxu0 %v766
    %v4164 = vpop.f32.mrf.mxu0
    %v4165 = vadd.f32 %v4076, %v4164
    %v4166 = vpop.f32.mrf.mxu0
    %v4167 = vadd.f32 %v4078, %v4166
    %4168 = vmatmul.bf16.gmra.mxu0 %v773
    %v4169 = vpop.f32.mrf.mxu0
    %v4170 = vadd.f32 %v4081, %v4169
    %v4171 = vpop.f32.mrf.mxu0
    %v4172 = vadd.f32 %v4083, %v4171
    %4173 = vmatmul.bf16.gmra.mxu0 %v780
    %v4174 = vpop.f32.mrf.mxu0
    %v4175 = vadd.f32 %v4086, %v4174
    %v4176 = vpop.f32.mrf.mxu0
    %v4177 = vadd.f32 %v4088, %v4176
    %4178 = vmatmul.bf16.gmra.mxu0 %v787
    %v4179 = vpop.f32.mrf.mxu0
    %v4180 = vadd.f32 %v4091, %v4179
    %v4181 = vpop.f32.mrf.mxu0
    %v4182 = vadd.f32 %v4093, %v4181
    %4183 = vmatmul.bf16.gmra.mxu0 %v794
    %v4184 = vpop.f32.mrf.mxu0
    %v4185 = vadd.f32 %v4096, %v4184
    %v4186 = vpop.f32.mrf.mxu0
    %v4187 = vadd.f32 %v4098, %v4186
    %4188 = vmatmul.bf16.gmra.mxu0 %v801
    %v4189 = vpop.f32.mrf.mxu0
    %v4190 = vadd.f32 %v4101, %v4189
    %v4191 = vpop.f32.mrf.mxu0
    %v4192 = vadd.f32 %v4103, %v4191
    %4193 = vmatmul.bf16.gmra.mxu0 %v808
    %v4194 = vpop.f32.mrf.mxu0
    %v4195 = vadd.f32 %v4106, %v4194
    %v4196 = vpop.f32.mrf.mxu0
    %v4197 = vadd.f32 %v4108, %v4196
    %4198 = vmatmul.bf16.gmra.mxu0 %v815
    %v4199 = vpop.f32.mrf.mxu0
    %v4200 = vadd.f32 %v4111, %v4199
    %v4201 = vpop.f32.mrf.mxu0
    %v4202 = vadd.f32 %v4113, %v4201
    %4203 = vmatmul.bf16.gmra.mxu0 %v822
    %v4204 = vpop.f32.mrf.mxu0
    %v4205 = vadd.f32 %v4116, %v4204
    %v4206 = vpop.f32.mrf.mxu0
    %v4207 = vadd.f32 %v4118, %v4206
    %4208 = vmatmul.bf16.gmra.mxu0 %v829
    %v4209 = vpop.f32.mrf.mxu0
    %v4210 = vadd.f32 %v4121, %v4209
    %v4211 = vpop.f32.mrf.mxu0
    %v4212 = vadd.f32 %v4123, %v4211
    %4213 = vmatmul.bf16.gmra.mxu0 %v836
    %v4214 = vpop.f32.mrf.mxu0
    %v4215 = vadd.f32 %v4126, %v4214
    %v4216 = vpop.f32.mrf.mxu0
    %v4217 = vadd.f32 %v4128, %v4216
    %4218 = vmatmul.bf16.gmra.mxu0 %v843
    %v4219 = vpop.f32.mrf.mxu0
    %v4220 = vadd.f32 %v4131, %v4219
    %v4221 = vpop.f32.mrf.mxu0
    %v4222 = vadd.f32 %v4133, %v4221
    %4223 = vmatmul.bf16.gmra.mxu0 %v850
    %v4224 = vpop.f32.mrf.mxu0
    %v4225 = vadd.f32 %v4136, %v4224
    %v4226 = vpop.f32.mrf.mxu0
    %v4227 = vadd.f32 %v4138, %v4226
    %4228 = vmatmul.bf16.gmra.mxu0 %v857
    %v4229 = vpop.f32.mrf.mxu0
    %v4230 = vadd.f32 %v4141, %v4229
    %v4231 = vpop.f32.mrf.mxu0
    %v4232 = vadd.f32 %v4143, %v4231
    %4233 = vmatmul.bf16.gmra.mxu0 %v864
    %v4234 = vpop.f32.mrf.mxu0
    %v4235 = vadd.f32 %v4146, %v4234
    %v4236 = vpop.f32.mrf.mxu0
    %v4237 = vadd.f32 %v4148, %v4236
    %4238 = vmatmul.bf16.gmra.mxu0 %v871
    %v4239 = vpop.f32.mrf.mxu0
    %v4240 = vadd.f32 %v4151, %v4239
    %v4241 = vpop.f32.mrf.mxu0
    %v4242 = vadd.f32 %v4153, %v4241
    %4243 = vdwg.mxu0
    %4244 = vmatpush.bf16.msra.mxu0 %v1787
    %4245 = vmatpush.bf16.msra.mxu0 %v1783
    %4246 = vmatpush.bf16.msra.mxu0 %v1779
    %4247 = vmatpush.bf16.msra.mxu0 %v1775
    %4248 = vmatpush.bf16.msra.mxu0 %v1771
    %4249 = vmatpush.bf16.msra.mxu0 %v1767
    %4250 = vmatpush.bf16.msra.mxu0 %v1763
    %4251 = vmatpush.bf16.msra.mxu0 %v1759
    %4252 = vmatmul.bf16.gmra.mxu0 %v767
    %v4253 = vpop.f32.mrf.mxu0
    %v4254 = vadd.f32 %v4165, %v4253
    %v4255 = vpop.f32.mrf.mxu0
    %v4256 = vadd.f32 %v4167, %v4255
    %4257 = vmatmul.bf16.gmra.mxu0 %v774
    %v4258 = vpop.f32.mrf.mxu0
    %v4259 = vadd.f32 %v4170, %v4258
    %v4260 = vpop.f32.mrf.mxu0
    %v4261 = vadd.f32 %v4172, %v4260
    %4262 = vmatmul.bf16.gmra.mxu0 %v781
    %v4263 = vpop.f32.mrf.mxu0
    %v4264 = vadd.f32 %v4175, %v4263
    %v4265 = vpop.f32.mrf.mxu0
    %v4266 = vadd.f32 %v4177, %v4265
    %4267 = vmatmul.bf16.gmra.mxu0 %v788
    %v4268 = vpop.f32.mrf.mxu0
    %v4269 = vadd.f32 %v4180, %v4268
    %v4270 = vpop.f32.mrf.mxu0
    %v4271 = vadd.f32 %v4182, %v4270
    %4272 = vmatmul.bf16.gmra.mxu0 %v795
    %v4273 = vpop.f32.mrf.mxu0
    %v4274 = vadd.f32 %v4185, %v4273
    %v4275 = vpop.f32.mrf.mxu0
    %v4276 = vadd.f32 %v4187, %v4275
    %4277 = vmatmul.bf16.gmra.mxu0 %v802
    %v4278 = vpop.f32.mrf.mxu0
    %v4279 = vadd.f32 %v4190, %v4278
    %v4280 = vpop.f32.mrf.mxu0
    %v4281 = vadd.f32 %v4192, %v4280
    %4282 = vmatmul.bf16.gmra.mxu0 %v809
    %v4283 = vpop.f32.mrf.mxu0
    %v4284 = vadd.f32 %v4195, %v4283
    %v4285 = vpop.f32.mrf.mxu0
    %v4286 = vadd.f32 %v4197, %v4285
    %4287 = vmatmul.bf16.gmra.mxu0 %v816
    %v4288 = vpop.f32.mrf.mxu0
    %v4289 = vadd.f32 %v4200, %v4288
    %v4290 = vpop.f32.mrf.mxu0
    %v4291 = vadd.f32 %v4202, %v4290
    %4292 = vmatmul.bf16.gmra.mxu0 %v823
    %v4293 = vpop.f32.mrf.mxu0
    %v4294 = vadd.f32 %v4205, %v4293
    %v4295 = vpop.f32.mrf.mxu0
    %v4296 = vadd.f32 %v4207, %v4295
    %4297 = vmatmul.bf16.gmra.mxu0 %v830
    %v4298 = vpop.f32.mrf.mxu0
    %v4299 = vadd.f32 %v4210, %v4298
    %v4300 = vpop.f32.mrf.mxu0
    %v4301 = vadd.f32 %v4212, %v4300
    %4302 = vmatmul.bf16.gmra.mxu0 %v837
    %v4303 = vpop.f32.mrf.mxu0
    %v4304 = vadd.f32 %v4215, %v4303
    %v4305 = vpop.f32.mrf.mxu0
    %v4306 = vadd.f32 %v4217, %v4305
    %4307 = vmatmul.bf16.gmra.mxu0 %v844
    %v4308 = vpop.f32.mrf.mxu0
    %v4309 = vadd.f32 %v4220, %v4308
    %v4310 = vpop.f32.mrf.mxu0
    %v4311 = vadd.f32 %v4222, %v4310
    %4312 = vmatmul.bf16.gmra.mxu0 %v851
    %v4313 = vpop.f32.mrf.mxu0
    %v4314 = vadd.f32 %v4225, %v4313
    %v4315 = vpop.f32.mrf.mxu0
    %v4316 = vadd.f32 %v4227, %v4315
    %4317 = vmatmul.bf16.gmra.mxu0 %v858
    %v4318 = vpop.f32.mrf.mxu0
    %v4319 = vadd.f32 %v4230, %v4318
    %v4320 = vpop.f32.mrf.mxu0
    %v4321 = vadd.f32 %v4232, %v4320
    %4322 = vmatmul.bf16.gmra.mxu0 %v865
    %v4323 = vpop.f32.mrf.mxu0
    %v4324 = vadd.f32 %v4235, %v4323
    %v4325 = vpop.f32.mrf.mxu0
    %v4326 = vadd.f32 %v4237, %v4325
    %4327 = vmatmul.bf16.gmra.mxu0 %v872
    %v4328 = vpop.f32.mrf.mxu0
    %v4329 = vadd.f32 %v4240, %v4328
    %v4330 = vpop.f32.mrf.mxu0
    %v4331 = vadd.f32 %v4242, %v4330
    %4332 = vdwg.mxu0
    %4333 = vmatpush.bf16.msra.mxu0 %v1819
    %4334 = vmatpush.bf16.msra.mxu0 %v1815
    %4335 = vmatpush.bf16.msra.mxu0 %v1811
    %4336 = vmatpush.bf16.msra.mxu0 %v1807
    %4337 = vmatpush.bf16.msra.mxu0 %v1803
    %4338 = vmatpush.bf16.msra.mxu0 %v1799
    %4339 = vmatpush.bf16.msra.mxu0 %v1795
    %4340 = vmatpush.bf16.msra.mxu0 %v1791
    %4341 = vmatmul.bf16.gmra.mxu0 %v768
    %v4342 = vpop.f32.mrf.mxu0
    %v4343 = vadd.f32 %v4254, %v4342
    %v4344 = vpop.f32.mrf.mxu0
    %v4345 = vadd.f32 %v4256, %v4344
    %4346 = vmatmul.bf16.gmra.mxu0 %v775
    %v4347 = vpop.f32.mrf.mxu0
    %v4348 = vadd.f32 %v4259, %v4347
    %v4349 = vpop.f32.mrf.mxu0
    %v4350 = vadd.f32 %v4261, %v4349
    %4351 = vmatmul.bf16.gmra.mxu0 %v782
    %v4352 = vpop.f32.mrf.mxu0
    %v4353 = vadd.f32 %v4264, %v4352
    %v4354 = vpop.f32.mrf.mxu0
    %v4355 = vadd.f32 %v4266, %v4354
    %4356 = vmatmul.bf16.gmra.mxu0 %v789
    %v4357 = vpop.f32.mrf.mxu0
    %v4358 = vadd.f32 %v4269, %v4357
    %v4359 = vpop.f32.mrf.mxu0
    %v4360 = vadd.f32 %v4271, %v4359
    %4361 = vmatmul.bf16.gmra.mxu0 %v796
    %v4362 = vpop.f32.mrf.mxu0
    %v4363 = vadd.f32 %v4274, %v4362
    %v4364 = vpop.f32.mrf.mxu0
    %v4365 = vadd.f32 %v4276, %v4364
    %4366 = vmatmul.bf16.gmra.mxu0 %v803
    %v4367 = vpop.f32.mrf.mxu0
    %v4368 = vadd.f32 %v4279, %v4367
    %v4369 = vpop.f32.mrf.mxu0
    %v4370 = vadd.f32 %v4281, %v4369
    %4371 = vmatmul.bf16.gmra.mxu0 %v810
    %v4372 = vpop.f32.mrf.mxu0
    %v4373 = vadd.f32 %v4284, %v4372
    %v4374 = vpop.f32.mrf.mxu0
    %v4375 = vadd.f32 %v4286, %v4374
    %4376 = vmatmul.bf16.gmra.mxu0 %v817
    %v4377 = vpop.f32.mrf.mxu0
    %v4378 = vadd.f32 %v4289, %v4377
    %v4379 = vpop.f32.mrf.mxu0
    %v4380 = vadd.f32 %v4291, %v4379
    %4381 = vmatmul.bf16.gmra.mxu0 %v824
    %v4382 = vpop.f32.mrf.mxu0
    %v4383 = vadd.f32 %v4294, %v4382
    %v4384 = vpop.f32.mrf.mxu0
    %v4385 = vadd.f32 %v4296, %v4384
    %4386 = vmatmul.bf16.gmra.mxu0 %v831
    %v4387 = vpop.f32.mrf.mxu0
    %v4388 = vadd.f32 %v4299, %v4387
    %v4389 = vpop.f32.mrf.mxu0
    %v4390 = vadd.f32 %v4301, %v4389
    %4391 = vmatmul.bf16.gmra.mxu0 %v838
    %v4392 = vpop.f32.mrf.mxu0
    %v4393 = vadd.f32 %v4304, %v4392
    %v4394 = vpop.f32.mrf.mxu0
    %v4395 = vadd.f32 %v4306, %v4394
    %4396 = vmatmul.bf16.gmra.mxu0 %v845
    %v4397 = vpop.f32.mrf.mxu0
    %v4398 = vadd.f32 %v4309, %v4397
    %v4399 = vpop.f32.mrf.mxu0
    %v4400 = vadd.f32 %v4311, %v4399
    %4401 = vmatmul.bf16.gmra.mxu0 %v852
    %v4402 = vpop.f32.mrf.mxu0
    %v4403 = vadd.f32 %v4314, %v4402
    %v4404 = vpop.f32.mrf.mxu0
    %v4405 = vadd.f32 %v4316, %v4404
    %4406 = vmatmul.bf16.gmra.mxu0 %v859
    %v4407 = vpop.f32.mrf.mxu0
    %v4408 = vadd.f32 %v4319, %v4407
    %v4409 = vpop.f32.mrf.mxu0
    %v4410 = vadd.f32 %v4321, %v4409
    %4411 = vmatmul.bf16.gmra.mxu0 %v866
    %v4412 = vpop.f32.mrf.mxu0
    %v4413 = vadd.f32 %v4324, %v4412
    %v4414 = vpop.f32.mrf.mxu0
    %v4415 = vadd.f32 %v4326, %v4414
    %4416 = vmatmul.bf16.gmra.mxu0 %v873
    %v4417 = vpop.f32.mrf.mxu0
    %v4418 = vadd.f32 %v4329, %v4417
    %v4419 = vpop.f32.mrf.mxu0
    %v4420 = vadd.f32 %v4331, %v4419
    %4421 = vdwg.mxu0
    %4422 = vmatpush.bf16.msra.mxu0 %v1851
    %4423 = vmatpush.bf16.msra.mxu0 %v1847
    %4424 = vmatpush.bf16.msra.mxu0 %v1843
    %4425 = vmatpush.bf16.msra.mxu0 %v1839
    %4426 = vmatpush.bf16.msra.mxu0 %v1835
    %4427 = vmatpush.bf16.msra.mxu0 %v1831
    %4428 = vmatpush.bf16.msra.mxu0 %v1827
    %4429 = vmatpush.bf16.msra.mxu0 %v1823
    %4430 = vmatmul.bf16.gmra.mxu0 %v769
    %v4431 = vpop.f32.mrf.mxu0
    %v4432 = vadd.f32 %v4343, %v4431
    %v4433 = vpop.f32.mrf.mxu0
    %v4434 = vadd.f32 %v4345, %v4433
    %4435 = vmatmul.bf16.gmra.mxu0 %v776
    %v4436 = vpop.f32.mrf.mxu0
    %v4437 = vadd.f32 %v4348, %v4436
    %v4438 = vpop.f32.mrf.mxu0
    %v4439 = vadd.f32 %v4350, %v4438
    %4440 = vmatmul.bf16.gmra.mxu0 %v783
    %v4441 = vpop.f32.mrf.mxu0
    %v4442 = vadd.f32 %v4353, %v4441
    %v4443 = vpop.f32.mrf.mxu0
    %v4444 = vadd.f32 %v4355, %v4443
    %4445 = vmatmul.bf16.gmra.mxu0 %v790
    %v4446 = vpop.f32.mrf.mxu0
    %v4447 = vadd.f32 %v4358, %v4446
    %v4448 = vpop.f32.mrf.mxu0
    %v4449 = vadd.f32 %v4360, %v4448
    %4450 = vmatmul.bf16.gmra.mxu0 %v797
    %v4451 = vpop.f32.mrf.mxu0
    %v4452 = vadd.f32 %v4363, %v4451
    %v4453 = vpop.f32.mrf.mxu0
    %v4454 = vadd.f32 %v4365, %v4453
    %4455 = vmatmul.bf16.gmra.mxu0 %v804
    %v4456 = vpop.f32.mrf.mxu0
    %v4457 = vadd.f32 %v4368, %v4456
    %v4458 = vpop.f32.mrf.mxu0
    %v4459 = vadd.f32 %v4370, %v4458
    %4460 = vmatmul.bf16.gmra.mxu0 %v811
    %v4461 = vpop.f32.mrf.mxu0
    %v4462 = vadd.f32 %v4373, %v4461
    %v4463 = vpop.f32.mrf.mxu0
    %v4464 = vadd.f32 %v4375, %v4463
    %4465 = vmatmul.bf16.gmra.mxu0 %v818
    %v4466 = vpop.f32.mrf.mxu0
    %v4467 = vadd.f32 %v4378, %v4466
    %v4468 = vpop.f32.mrf.mxu0
    %v4469 = vadd.f32 %v4380, %v4468
    %4470 = vmatmul.bf16.gmra.mxu0 %v825
    %v4471 = vpop.f32.mrf.mxu0
    %v4472 = vadd.f32 %v4383, %v4471
    %v4473 = vpop.f32.mrf.mxu0
    %v4474 = vadd.f32 %v4385, %v4473
    %4475 = vmatmul.bf16.gmra.mxu0 %v832
    %v4476 = vpop.f32.mrf.mxu0
    %v4477 = vadd.f32 %v4388, %v4476
    %v4478 = vpop.f32.mrf.mxu0
    %v4479 = vadd.f32 %v4390, %v4478
    %4480 = vmatmul.bf16.gmra.mxu0 %v839
    %v4481 = vpop.f32.mrf.mxu0
    %v4482 = vadd.f32 %v4393, %v4481
    %v4483 = vpop.f32.mrf.mxu0
    %v4484 = vadd.f32 %v4395, %v4483
    %4485 = vmatmul.bf16.gmra.mxu0 %v846
    %v4486 = vpop.f32.mrf.mxu0
    %v4487 = vadd.f32 %v4398, %v4486
    %v4488 = vpop.f32.mrf.mxu0
    %v4489 = vadd.f32 %v4400, %v4488
    %4490 = vmatmul.bf16.gmra.mxu0 %v853
    %v4491 = vpop.f32.mrf.mxu0
    %v4492 = vadd.f32 %v4403, %v4491
    %v4493 = vpop.f32.mrf.mxu0
    %v4494 = vadd.f32 %v4405, %v4493
    %4495 = vmatmul.bf16.gmra.mxu0 %v860
    %v4496 = vpop.f32.mrf.mxu0
    %v4497 = vadd.f32 %v4408, %v4496
    %v4498 = vpop.f32.mrf.mxu0
    %v4499 = vadd.f32 %v4410, %v4498
    %4500 = vmatmul.bf16.gmra.mxu0 %v867
    %v4501 = vpop.f32.mrf.mxu0
    %v4502 = vadd.f32 %v4413, %v4501
    %v4503 = vpop.f32.mrf.mxu0
    %v4504 = vadd.f32 %v4415, %v4503
    %4505 = vmatmul.bf16.gmra.mxu0 %v874
    %v4506 = vpop.f32.mrf.mxu0
    %v4507 = vadd.f32 %v4418, %v4506
    %v4508 = vpop.f32.mrf.mxu0
    %v4509 = vadd.f32 %v4420, %v4508
    %4510 = vdwg.mxu0
    %4511 = vmatpush.bf16.msra.mxu0 %v1883
    %4512 = vmatpush.bf16.msra.mxu0 %v1879
    %4513 = vmatpush.bf16.msra.mxu0 %v1875
    %4514 = vmatpush.bf16.msra.mxu0 %v1871
    %4515 = vmatpush.bf16.msra.mxu0 %v1867
    %4516 = vmatpush.bf16.msra.mxu0 %v1863
    %4517 = vmatpush.bf16.msra.mxu0 %v1859
    %4518 = vmatpush.bf16.msra.mxu0 %v1855
    %4519 = vmatmul.bf16.gmra.mxu0 %v770
    %v4520 = vpop.f32.mrf.mxu0
    %v4521 = vadd.f32 %v4432, %v4520
    %v4522 = vpop.f32.mrf.mxu0
    %v4523 = vadd.f32 %v4434, %v4522
    %4524 = vmatmul.bf16.gmra.mxu0 %v777
    %v4525 = vpop.f32.mrf.mxu0
    %v4526 = vadd.f32 %v4437, %v4525
    %v4527 = vpop.f32.mrf.mxu0
    %v4528 = vadd.f32 %v4439, %v4527
    %4529 = vmatmul.bf16.gmra.mxu0 %v784
    %v4530 = vpop.f32.mrf.mxu0
    %v4531 = vadd.f32 %v4442, %v4530
    %v4532 = vpop.f32.mrf.mxu0
    %v4533 = vadd.f32 %v4444, %v4532
    %4534 = vmatmul.bf16.gmra.mxu0 %v791
    %v4535 = vpop.f32.mrf.mxu0
    %v4536 = vadd.f32 %v4447, %v4535
    %v4537 = vpop.f32.mrf.mxu0
    %v4538 = vadd.f32 %v4449, %v4537
    %4539 = vmatmul.bf16.gmra.mxu0 %v798
    %v4540 = vpop.f32.mrf.mxu0
    %v4541 = vadd.f32 %v4452, %v4540
    %v4542 = vpop.f32.mrf.mxu0
    %v4543 = vadd.f32 %v4454, %v4542
    %4544 = vmatmul.bf16.gmra.mxu0 %v805
    %v4545 = vpop.f32.mrf.mxu0
    %v4546 = vadd.f32 %v4457, %v4545
    %v4547 = vpop.f32.mrf.mxu0
    %v4548 = vadd.f32 %v4459, %v4547
    %4549 = vmatmul.bf16.gmra.mxu0 %v812
    %v4550 = vpop.f32.mrf.mxu0
    %v4551 = vadd.f32 %v4462, %v4550
    %v4552 = vpop.f32.mrf.mxu0
    %v4553 = vadd.f32 %v4464, %v4552
    %4554 = vmatmul.bf16.gmra.mxu0 %v819
    %v4555 = vpop.f32.mrf.mxu0
    %v4556 = vadd.f32 %v4467, %v4555
    %v4557 = vpop.f32.mrf.mxu0
    %v4558 = vadd.f32 %v4469, %v4557
    %4559 = vmatmul.bf16.gmra.mxu0 %v826
    %v4560 = vpop.f32.mrf.mxu0
    %v4561 = vadd.f32 %v4472, %v4560
    %v4562 = vpop.f32.mrf.mxu0
    %v4563 = vadd.f32 %v4474, %v4562
    %4564 = vmatmul.bf16.gmra.mxu0 %v833
    %v4565 = vpop.f32.mrf.mxu0
    %v4566 = vadd.f32 %v4477, %v4565
    %v4567 = vpop.f32.mrf.mxu0
    %v4568 = vadd.f32 %v4479, %v4567
    %4569 = vmatmul.bf16.gmra.mxu0 %v840
    %v4570 = vpop.f32.mrf.mxu0
    %v4571 = vadd.f32 %v4482, %v4570
    %v4572 = vpop.f32.mrf.mxu0
    %v4573 = vadd.f32 %v4484, %v4572
    %4574 = vmatmul.bf16.gmra.mxu0 %v847
    %v4575 = vpop.f32.mrf.mxu0
    %v4576 = vadd.f32 %v4487, %v4575
    %v4577 = vpop.f32.mrf.mxu0
    %v4578 = vadd.f32 %v4489, %v4577
    %4579 = vmatmul.bf16.gmra.mxu0 %v854
    %v4580 = vpop.f32.mrf.mxu0
    %v4581 = vadd.f32 %v4492, %v4580
    %v4582 = vpop.f32.mrf.mxu0
    %v4583 = vadd.f32 %v4494, %v4582
    %4584 = vmatmul.bf16.gmra.mxu0 %v861
    %v4585 = vpop.f32.mrf.mxu0
    %v4586 = vadd.f32 %v4497, %v4585
    %v4587 = vpop.f32.mrf.mxu0
    %v4588 = vadd.f32 %v4499, %v4587
    %4589 = vmatmul.bf16.gmra.mxu0 %v868
    %v4590 = vpop.f32.mrf.mxu0
    %v4591 = vadd.f32 %v4502, %v4590
    %v4592 = vpop.f32.mrf.mxu0
    %v4593 = vadd.f32 %v4504, %v4592
    %4594 = vmatmul.bf16.gmra.mxu0 %v875
    %v4595 = vpop.f32.mrf.mxu0
    %v4596 = vadd.f32 %v4507, %v4595
    %v4597 = vpop.f32.mrf.mxu0
    %v4598 = vadd.f32 %v4509, %v4597
    %4599 = vdwg.mxu0
    %vm4600 = vcmp.gt.f32.partialorder %v2652, 0.0
    %vm4601 = vcmp.gt.f32.partialorder %v3275, 0.0
    %vm4602 = vcmp.gt.f32.partialorder %v3898, 0.0
    %vm4603 = vcmp.gt.f32.partialorder %v4521, 0.0
    %vm4604 = vcmp.gt.f32.partialorder %v2654, 0.0
    %vm4605 = vcmp.gt.f32.partialorder %v3277, 0.0
    %vm4606 = vcmp.gt.f32.partialorder %v3900, 0.0
    %vm4607 = vcmp.gt.f32.partialorder %v4523, 0.0
    %vm4608 = vcmp.gt.f32.partialorder %v2657, 0.0
    %vm4609 = vcmp.gt.f32.partialorder %v3280, 0.0
    %vm4610 = vcmp.gt.f32.partialorder %v3903, 0.0
    %vm4611 = vcmp.gt.f32.partialorder %v4526, 0.0
    %vm4612 = vcmp.gt.f32.partialorder %v2659, 0.0
    %vm4613 = vcmp.gt.f32.partialorder %v3282, 0.0
    %vm4614 = vcmp.gt.f32.partialorder %v3905, 0.0
    %vm4615 = vcmp.gt.f32.partialorder %v4528, 0.0
    %vm4616 = vcmp.gt.f32.partialorder %v2662, 0.0
    %vm4617 = vcmp.gt.f32.partialorder %v3285, 0.0
    %vm4618 = vcmp.gt.f32.partialorder %v3908, 0.0
    %vm4619 = vcmp.gt.f32.partialorder %v4531, 0.0
    %vm4620 = vcmp.gt.f32.partialorder %v2664, 0.0
    %vm4621 = vcmp.gt.f32.partialorder %v3287, 0.0
    %vm4622 = vcmp.gt.f32.partialorder %v3910, 0.0
    %vm4623 = vcmp.gt.f32.partialorder %v4533, 0.0
    %vm4624 = vcmp.gt.f32.partialorder %v2667, 0.0
    %vm4625 = vcmp.gt.f32.partialorder %v3290, 0.0
    %vm4626 = vcmp.gt.f32.partialorder %v3913, 0.0
    %vm4627 = vcmp.gt.f32.partialorder %v4536, 0.0
    %vm4628 = vcmp.gt.f32.partialorder %v2669, 0.0
    %vm4629 = vcmp.gt.f32.partialorder %v3292, 0.0
    %vm4630 = vcmp.gt.f32.partialorder %v3915, 0.0
    %vm4631 = vcmp.gt.f32.partialorder %v4538, 0.0
    %vm4632 = vcmp.gt.f32.partialorder %v2672, 0.0
    %vm4633 = vcmp.gt.f32.partialorder %v3295, 0.0
    %vm4634 = vcmp.gt.f32.partialorder %v3918, 0.0
    %vm4635 = vcmp.gt.f32.partialorder %v4541, 0.0
    %vm4636 = vcmp.gt.f32.partialorder %v2674, 0.0
    %vm4637 = vcmp.gt.f32.partialorder %v3297, 0.0
    %vm4638 = vcmp.gt.f32.partialorder %v3920, 0.0
    %vm4639 = vcmp.gt.f32.partialorder %v4543, 0.0
    %vm4640 = vcmp.gt.f32.partialorder %v2677, 0.0
    %vm4641 = vcmp.gt.f32.partialorder %v3300, 0.0
    %vm4642 = vcmp.gt.f32.partialorder %v3923, 0.0
    %vm4643 = vcmp.gt.f32.partialorder %v4546, 0.0
    %vm4644 = vcmp.gt.f32.partialorder %v2679, 0.0
    %vm4645 = vcmp.gt.f32.partialorder %v3302, 0.0
    %vm4646 = vcmp.gt.f32.partialorder %v3925, 0.0
    %vm4647 = vcmp.gt.f32.partialorder %v4548, 0.0
    %vm4648 = vcmp.gt.f32.partialorder %v2682, 0.0
    %vm4649 = vcmp.gt.f32.partialorder %v3305, 0.0
    %vm4650 = vcmp.gt.f32.partialorder %v3928, 0.0
    %vm4651 = vcmp.gt.f32.partialorder %v4551, 0.0
    %vm4652 = vcmp.gt.f32.partialorder %v2684, 0.0
    %vm4653 = vcmp.gt.f32.partialorder %v3307, 0.0
    %vm4654 = vcmp.gt.f32.partialorder %v3930, 0.0
    %vm4655 = vcmp.gt.f32.partialorder %v4553, 0.0
    %vm4656 = vcmp.gt.f32.partialorder %v2687, 0.0
    %vm4657 = vcmp.gt.f32.partialorder %v3310, 0.0
    %vm4658 = vcmp.gt.f32.partialorder %v3933, 0.0
    %vm4659 = vcmp.gt.f32.partialorder %v4556, 0.0
    %vm4660 = vcmp.gt.f32.partialorder %v2689, 0.0
    %vm4661 = vcmp.gt.f32.partialorder %v3312, 0.0
    %vm4662 = vcmp.gt.f32.partialorder %v3935, 0.0
    %vm4663 = vcmp.gt.f32.partialorder %v4558, 0.0
    %vm4664 = vcmp.gt.f32.partialorder %v2692, 0.0
    %vm4665 = vcmp.gt.f32.partialorder %v3315, 0.0
    %vm4666 = vcmp.gt.f32.partialorder %v3938, 0.0
    %vm4667 = vcmp.gt.f32.partialorder %v4561, 0.0
    %vm4668 = vcmp.gt.f32.partialorder %v2694, 0.0
    %vm4669 = vcmp.gt.f32.partialorder %v3317, 0.0
    %vm4670 = vcmp.gt.f32.partialorder %v3940, 0.0
    %vm4671 = vcmp.gt.f32.partialorder %v4563, 0.0
    %vm4672 = vcmp.gt.f32.partialorder %v2697, 0.0
    %vm4673 = vcmp.gt.f32.partialorder %v3320, 0.0
    %vm4674 = vcmp.gt.f32.partialorder %v3943, 0.0
    %vm4675 = vcmp.gt.f32.partialorder %v4566, 0.0
    %vm4676 = vcmp.gt.f32.partialorder %v2699, 0.0
    %vm4677 = vcmp.gt.f32.partialorder %v3322, 0.0
    %vm4678 = vcmp.gt.f32.partialorder %v3945, 0.0
    %vm4679 = vcmp.gt.f32.partialorder %v4568, 0.0
    %vm4680 = vcmp.gt.f32.partialorder %v2702, 0.0
    %vm4681 = vcmp.gt.f32.partialorder %v3325, 0.0
    %vm4682 = vcmp.gt.f32.partialorder %v3948, 0.0
    %vm4683 = vcmp.gt.f32.partialorder %v4571, 0.0
    %vm4684 = vcmp.gt.f32.partialorder %v2704, 0.0
    %vm4685 = vcmp.gt.f32.partialorder %v3327, 0.0
    %vm4686 = vcmp.gt.f32.partialorder %v3950, 0.0
    %vm4687 = vcmp.gt.f32.partialorder %v4573, 0.0
    %vm4688 = vcmp.gt.f32.partialorder %v2707, 0.0
    %vm4689 = vcmp.gt.f32.partialorder %v3330, 0.0
    %vm4690 = vcmp.gt.f32.partialorder %v3953, 0.0
    %vm4691 = vcmp.gt.f32.partialorder %v4576, 0.0
    %vm4692 = vcmp.gt.f32.partialorder %v2709, 0.0
    %vm4693 = vcmp.gt.f32.partialorder %v3332, 0.0
    %vm4694 = vcmp.gt.f32.partialorder %v3955, 0.0
    %vm4695 = vcmp.gt.f32.partialorder %v4578, 0.0
    %vm4696 = vcmp.gt.f32.partialorder %v2712, 0.0
    %vm4697 = vcmp.gt.f32.partialorder %v3335, 0.0
    %vm4698 = vcmp.gt.f32.partialorder %v3958, 0.0
    %vm4699 = vcmp.gt.f32.partialorder %v4581, 0.0
    %vm4700 = vcmp.gt.f32.partialorder %v2714, 0.0
    %vm4701 = vcmp.gt.f32.partialorder %v3337, 0.0
    %vm4702 = vcmp.gt.f32.partialorder %v3960, 0.0
    %vm4703 = vcmp.gt.f32.partialorder %v4583, 0.0
    %vm4704 = vcmp.gt.f32.partialorder %v2717, 0.0
    %vm4705 = vcmp.gt.f32.partialorder %v3340, 0.0
    %vm4706 = vcmp.gt.f32.partialorder %v3963, 0.0
    %vm4707 = vcmp.gt.f32.partialorder %v4586, 0.0
    %vm4708 = vcmp.gt.f32.partialorder %v2719, 0.0
    %vm4709 = vcmp.gt.f32.partialorder %v3342, 0.0
    %vm4710 = vcmp.gt.f32.partialorder %v3965, 0.0
    %vm4711 = vcmp.gt.f32.partialorder %v4588, 0.0
    %vm4712 = vcmp.gt.f32.partialorder %v2722, 0.0
    %vm4713 = vcmp.gt.f32.partialorder %v3345, 0.0
    %vm4714 = vcmp.gt.f32.partialorder %v3968, 0.0
    %vm4715 = vcmp.gt.f32.partialorder %v4591, 0.0
    %vm4716 = vcmp.gt.f32.partialorder %v2724, 0.0
    %vm4717 = vcmp.gt.f32.partialorder %v3347, 0.0
    %vm4718 = vcmp.gt.f32.partialorder %v3970, 0.0
    %vm4719 = vcmp.gt.f32.partialorder %v4593, 0.0
    %vm4720 = vcmp.gt.f32.partialorder %v2727, 0.0
    %vm4721 = vcmp.gt.f32.partialorder %v3350, 0.0
    %vm4722 = vcmp.gt.f32.partialorder %v3973, 0.0
    %vm4723 = vcmp.gt.f32.partialorder %v4596, 0.0
    %vm4724 = vcmp.gt.f32.partialorder %v2729, 0.0
    %vm4725 = vcmp.gt.f32.partialorder %v3352, 0.0
    %vm4726 = vcmp.gt.f32.partialorder %v3975, 0.0
    %vm4727 = vcmp.gt.f32.partialorder %v4598, 0.0
    %v4728 = vmul.f32 %v2652, 0.2
    %v4729 = vmul.f32 %v3275, 0.2
    %v4730 = vmul.f32 %v3898, 0.2
    %v4731 = vmul.f32 %v4521, 0.2
    %v4732 = vmul.f32 %v2654, 0.2
    %v4733 = vmul.f32 %v3277, 0.2
    %v4734 = vmul.f32 %v3900, 0.2
    %v4735 = vmul.f32 %v4523, 0.2
    %v4736 = vmul.f32 %v2657, 0.2
    %v4737 = vmul.f32 %v3280, 0.2
    %v4738 = vmul.f32 %v3903, 0.2
    %v4739 = vmul.f32 %v4526, 0.2
    %v4740 = vmul.f32 %v2659, 0.2
    %v4741 = vmul.f32 %v3282, 0.2
    %v4742 = vmul.f32 %v3905, 0.2
    %v4743 = vmul.f32 %v4528, 0.2
    %v4744 = vmul.f32 %v2662, 0.2
    %v4745 = vmul.f32 %v3285, 0.2
    %v4746 = vmul.f32 %v3908, 0.2
    %v4747 = vmul.f32 %v4531, 0.2
    %v4748 = vmul.f32 %v2664, 0.2
    %v4749 = vmul.f32 %v3287, 0.2
    %v4750 = vmul.f32 %v3910, 0.2
    %v4751 = vmul.f32 %v4533, 0.2
    %v4752 = vmul.f32 %v2667, 0.2
    %v4753 = vmul.f32 %v3290, 0.2
    %v4754 = vmul.f32 %v3913, 0.2
    %v4755 = vmul.f32 %v4536, 0.2
    %v4756 = vmul.f32 %v2669, 0.2
    %v4757 = vmul.f32 %v3292, 0.2
    %v4758 = vmul.f32 %v3915, 0.2
    %v4759 = vmul.f32 %v4538, 0.2
    %v4760 = vmul.f32 %v2672, 0.2
    %v4761 = vmul.f32 %v3295, 0.2
    %v4762 = vmul.f32 %v3918, 0.2
    %v4763 = vmul.f32 %v4541, 0.2
    %v4764 = vmul.f32 %v2674, 0.2
    %v4765 = vmul.f32 %v3297, 0.2
    %v4766 = vmul.f32 %v3920, 0.2
    %v4767 = vmul.f32 %v4543, 0.2
    %v4768 = vmul.f32 %v2677, 0.2
    %v4769 = vmul.f32 %v3300, 0.2
    %v4770 = vmul.f32 %v3923, 0.2
    %v4771 = vmul.f32 %v4546, 0.2
    %v4772 = vmul.f32 %v2679, 0.2
    %v4773 = vmul.f32 %v3302, 0.2
    %v4774 = vmul.f32 %v3925, 0.2
    %v4775 = vmul.f32 %v4548, 0.2
    %v4776 = vmul.f32 %v2682, 0.2
    %v4777 = vmul.f32 %v3305, 0.2
    %v4778 = vmul.f32 %v3928, 0.2
    %v4779 = vmul.f32 %v4551, 0.2
    %v4780 = vmul.f32 %v2684, 0.2
    %v4781 = vmul.f32 %v3307, 0.2
    %v4782 = vmul.f32 %v3930, 0.2
    %v4783 = vmul.f32 %v4553, 0.2
    %v4784 = vmul.f32 %v2687, 0.2
    %v4785 = vmul.f32 %v3310, 0.2
    %v4786 = vmul.f32 %v3933, 0.2
    %v4787 = vmul.f32 %v4556, 0.2
    %v4788 = vmul.f32 %v2689, 0.2
    %v4789 = vmul.f32 %v3312, 0.2
    %v4790 = vmul.f32 %v3935, 0.2
    %v4791 = vmul.f32 %v4558, 0.2
    %v4792 = vmul.f32 %v2692, 0.2
    %v4793 = vmul.f32 %v3315, 0.2
    %v4794 = vmul.f32 %v3938, 0.2
    %v4795 = vmul.f32 %v4561, 0.2
    %v4796 = vmul.f32 %v2694, 0.2
    %v4797 = vmul.f32 %v3317, 0.2
    %v4798 = vmul.f32 %v3940, 0.2
    %v4799 = vmul.f32 %v4563, 0.2
    %v4800 = vmul.f32 %v2697, 0.2
    %v4801 = vmul.f32 %v3320, 0.2
    %v4802 = vmul.f32 %v3943, 0.2
    %v4803 = vmul.f32 %v4566, 0.2
    %v4804 = vmul.f32 %v2699, 0.2
    %v4805 = vmul.f32 %v3322, 0.2
    %v4806 = vmul.f32 %v3945, 0.2
    %v4807 = vmul.f32 %v4568, 0.2
    %v4808 = vmul.f32 %v2702, 0.2
    %v4809 = vmul.f32 %v3325, 0.2
    %v4810 = vmul.f32 %v3948, 0.2
    %v4811 = vmul.f32 %v4571, 0.2
    %v4812 = vmul.f32 %v2704, 0.2
    %v4813 = vmul.f32 %v3327, 0.2
    %v4814 = vmul.f32 %v3950, 0.2
    %v4815 = vmul.f32 %v4573, 0.2
    %v4816 = vmul.f32 %v2707, 0.2
    %v4817 = vmul.f32 %v3330, 0.2
    %v4818 = vmul.f32 %v3953, 0.2
    %v4819 = vmul.f32 %v4576, 0.2
    %v4820 = vmul.f32 %v2709, 0.2
    %v4821 = vmul.f32 %v3332, 0.2
    %v4822 = vmul.f32 %v3955, 0.2
    %v4823 = vmul.f32 %v4578, 0.2
    %v4824 = vmul.f32 %v2712, 0.2
    %v4825 = vmul.f32 %v3335, 0.2
    %v4826 = vmul.f32 %v3958, 0.2
    %v4827 = vmul.f32 %v4581, 0.2
    %v4828 = vmul.f32 %v2714, 0.2
    %v4829 = vmul.f32 %v3337, 0.2
    %v4830 = vmul.f32 %v3960, 0.2
    %v4831 = vmul.f32 %v4583, 0.2
    %v4832 = vmul.f32 %v2717, 0.2
    %v4833 = vmul.f32 %v3340, 0.2
    %v4834 = vmul.f32 %v3963, 0.2
    %v4835 = vmul.f32 %v4586, 0.2
    %v4836 = vmul.f32 %v2719, 0.2
    %v4837 = vmul.f32 %v3342, 0.2
    %v4838 = vmul.f32 %v3965, 0.2
    %v4839 = vmul.f32 %v4588, 0.2
    %v4840 = vmul.f32 %v2722, 0.2
    %v4841 = vmul.f32 %v3345, 0.2
    %v4842 = vmul.f32 %v3968, 0.2
    %v4843 = vmul.f32 %v4591, 0.2
    %v4844 = vmul.f32 %v2724, 0.2
    %v4845 = vmul.f32 %v3347, 0.2
    %v4846 = vmul.f32 %v3970, 0.2
    %v4847 = vmul.f32 %v4593, 0.2
    %v4848 = vmul.f32 %v2727, 0.2
    %v4849 = vmul.f32 %v3350, 0.2
    %v4850 = vmul.f32 %v3973, 0.2
    %v4851 = vmul.f32 %v4596, 0.2
    %v4852 = vmul.f32 %v2729, 0.2
    %v4853 = vmul.f32 %v3352, 0.2
    %v4854 = vmul.f32 %v3975, 0.2
    %v4855 = vmul.f32 %v4598, 0.2
    %v4856 = vsel %vm4600, %v2652, %v4728
    %v4857 = vsel %vm4601, %v3275, %v4729
    %v4858 = vsel %vm4602, %v3898, %v4730
    %v4859 = vsel %vm4603, %v4521, %v4731
    %v4860 = vsel %vm4604, %v2654, %v4732
    %v4861 = vsel %vm4605, %v3277, %v4733
    %v4862 = vsel %vm4606, %v3900, %v4734
    %v4863 = vsel %vm4607, %v4523, %v4735
    %v4864 = vsel %vm4608, %v2657, %v4736
    %v4865 = vsel %vm4609, %v3280, %v4737
    %v4866 = vsel %vm4610, %v3903, %v4738
    %v4867 = vsel %vm4611, %v4526, %v4739
    %v4868 = vsel %vm4612, %v2659, %v4740
    %v4869 = vsel %vm4613, %v3282, %v4741
    %v4870 = vsel %vm4614, %v3905, %v4742
    %v4871 = vsel %vm4615, %v4528, %v4743
    %v4872 = vsel %vm4616, %v2662, %v4744
    %v4873 = vsel %vm4617, %v3285, %v4745
    %v4874 = vsel %vm4618, %v3908, %v4746
    %v4875 = vsel %vm4619, %v4531, %v4747
    %v4876 = vsel %vm4620, %v2664, %v4748
    %v4877 = vsel %vm4621, %v3287, %v4749
    %v4878 = vsel %vm4622, %v3910, %v4750
    %v4879 = vsel %vm4623, %v4533, %v4751
    %v4880 = vsel %vm4624, %v2667, %v4752
    %v4881 = vsel %vm4625, %v3290, %v4753
    %v4882 = vsel %vm4626, %v3913, %v4754
    %v4883 = vsel %vm4627, %v4536, %v4755
    %v4884 = vsel %vm4628, %v2669, %v4756
    %v4885 = vsel %vm4629, %v3292, %v4757
    %v4886 = vsel %vm4630, %v3915, %v4758
    %v4887 = vsel %vm4631, %v4538, %v4759
    %v4888 = vsel %vm4632, %v2672, %v4760
    %v4889 = vsel %vm4633, %v3295, %v4761
    %v4890 = vsel %vm4634, %v3918, %v4762
    %v4891 = vsel %vm4635, %v4541, %v4763
    %v4892 = vsel %vm4636, %v2674, %v4764
    %v4893 = vsel %vm4637, %v3297, %v4765
    %v4894 = vsel %vm4638, %v3920, %v4766
    %v4895 = vsel %vm4639, %v4543, %v4767
    %v4896 = vsel %vm4640, %v2677, %v4768
    %v4897 = vsel %vm4641, %v3300, %v4769
    %v4898 = vsel %vm4642, %v3923, %v4770
    %v4899 = vsel %vm4643, %v4546, %v4771
    %v4900 = vsel %vm4644, %v2679, %v4772
    %v4901 = vsel %vm4645, %v3302, %v4773
    %v4902 = vsel %vm4646, %v3925, %v4774
    %v4903 = vsel %vm4647, %v4548, %v4775
    %v4904 = vsel %vm4648, %v2682, %v4776
    %v4905 = vsel %vm4649, %v3305, %v4777
    %v4906 = vsel %vm4650, %v3928, %v4778
    %v4907 = vsel %vm4651, %v4551, %v4779
    %v4908 = vsel %vm4652, %v2684, %v4780
    %v4909 = vsel %vm4653, %v3307, %v4781
    %v4910 = vsel %vm4654, %v3930, %v4782
    %v4911 = vsel %vm4655, %v4553, %v4783
    %v4912 = vsel %vm4656, %v2687, %v4784
    %v4913 = vsel %vm4657, %v3310, %v4785
    %v4914 = vsel %vm4658, %v3933, %v4786
    %v4915 = vsel %vm4659, %v4556, %v4787
    %v4916 = vsel %vm4660, %v2689, %v4788
    %v4917 = vsel %vm4661, %v3312, %v4789
    %v4918 = vsel %vm4662, %v3935, %v4790
    %v4919 = vsel %vm4663, %v4558, %v4791
    %v4920 = vsel %vm4664, %v2692, %v4792
    %v4921 = vsel %vm4665, %v3315, %v4793
    %v4922 = vsel %vm4666, %v3938, %v4794
    %v4923 = vsel %vm4667, %v4561, %v4795
    %v4924 = vsel %vm4668, %v2694, %v4796
    %v4925 = vsel %vm4669, %v3317, %v4797
    %v4926 = vsel %vm4670, %v3940, %v4798
    %v4927 = vsel %vm4671, %v4563, %v4799
    %v4928 = vsel %vm4672, %v2697, %v4800
    %v4929 = vsel %vm4673, %v3320, %v4801
    %v4930 = vsel %vm4674, %v3943, %v4802
    %v4931 = vsel %vm4675, %v4566, %v4803
    %v4932 = vsel %vm4676, %v2699, %v4804
    %v4933 = vsel %vm4677, %v3322, %v4805
    %v4934 = vsel %vm4678, %v3945, %v4806
    %v4935 = vsel %vm4679, %v4568, %v4807
    %v4936 = vsel %vm4680, %v2702, %v4808
    %v4937 = vsel %vm4681, %v3325, %v4809
    %v4938 = vsel %vm4682, %v3948, %v4810
    %v4939 = vsel %vm4683, %v4571, %v4811
    %v4940 = vsel %vm4684, %v2704, %v4812
    %v4941 = vsel %vm4685, %v3327, %v4813
    %v4942 = vsel %vm4686, %v3950, %v4814
    %v4943 = vsel %vm4687, %v4573, %v4815
    %v4944 = vsel %vm4688, %v2707, %v4816
    %v4945 = vsel %vm4689, %v3330, %v4817
    %v4946 = vsel %vm4690, %v3953, %v4818
    %v4947 = vsel %vm4691, %v4576, %v4819
    %v4948 = vsel %vm4692, %v2709, %v4820
    %v4949 = vsel %vm4693, %v3332, %v4821
    %v4950 = vsel %vm4694, %v3955, %v4822
    %v4951 = vsel %vm4695, %v4578, %v4823
    %v4952 = vsel %vm4696, %v2712, %v4824
    %v4953 = vsel %vm4697, %v3335, %v4825
    %v4954 = vsel %vm4698, %v3958, %v4826
    %v4955 = vsel %vm4699, %v4581, %v4827
    %v4956 = vsel %vm4700, %v2714, %v4828
    %v4957 = vsel %vm4701, %v3337, %v4829
    %v4958 = vsel %vm4702, %v3960, %v4830
    %v4959 = vsel %vm4703, %v4583, %v4831
    %v4960 = vsel %vm4704, %v2717, %v4832
    %v4961 = vsel %vm4705, %v3340, %v4833
    %v4962 = vsel %vm4706, %v3963, %v4834
    %v4963 = vsel %vm4707, %v4586, %v4835
    %v4964 = vsel %vm4708, %v2719, %v4836
    %v4965 = vsel %vm4709, %v3342, %v4837
    %v4966 = vsel %vm4710, %v3965, %v4838
    %v4967 = vsel %vm4711, %v4588, %v4839
    %v4968 = vsel %vm4712, %v2722, %v4840
    %v4969 = vsel %vm4713, %v3345, %v4841
    %v4970 = vsel %vm4714, %v3968, %v4842
    %v4971 = vsel %vm4715, %v4591, %v4843
    %v4972 = vsel %vm4716, %v2724, %v4844
    %v4973 = vsel %vm4717, %v3347, %v4845
    %v4974 = vsel %vm4718, %v3970, %v4846
    %v4975 = vsel %vm4719, %v4593, %v4847
    %v4976 = vsel %vm4720, %v2727, %v4848
    %v4977 = vsel %vm4721, %v3350, %v4849
    %v4978 = vsel %vm4722, %v3973, %v4850
    %v4979 = vsel %vm4723, %v4596, %v4851
    %v4980 = vsel %vm4724, %v2729, %v4852
    %v4981 = vsel %vm4725, %v3352, %v4853
    %v4982 = vsel %vm4726, %v3975, %v4854
    %v4983 = vsel %vm4727, %v4598, %v4855
    %v4984 = vpack.c.bf16 %v4860, %v4856
    %v4985 = vpack.c.bf16 %v4861, %v4857
    %v4986 = vpack.c.bf16 %v4862, %v4858
    %v4987 = vpack.c.bf16 %v4863, %v4859
    %v4988 = vpack.c.bf16 %v4868, %v4864
    %v4989 = vpack.c.bf16 %v4869, %v4865
    %v4990 = vpack.c.bf16 %v4870, %v4866
    %v4991 = vpack.c.bf16 %v4871, %v4867
    %v4992 = vpack.c.bf16 %v4876, %v4872
    %v4993 = vpack.c.bf16 %v4877, %v4873
    %v4994 = vpack.c.bf16 %v4878, %v4874
    %v4995 = vpack.c.bf16 %v4879, %v4875
    %v4996 = vpack.c.bf16 %v4884, %v4880
    %v4997 = vpack.c.bf16 %v4885, %v4881
    %v4998 = vpack.c.bf16 %v4886, %v4882
    %v4999 = vpack.c.bf16 %v4887, %v4883
    %v5000 = vpack.c.bf16 %v4892, %v4888
    %v5001 = vpack.c.bf16 %v4893, %v4889
    %v5002 = vpack.c.bf16 %v4894, %v4890
    %v5003 = vpack.c.bf16 %v4895, %v4891
    %v5004 = vpack.c.bf16 %v4900, %v4896
    %v5005 = vpack.c.bf16 %v4901, %v4897
    %v5006 = vpack.c.bf16 %v4902, %v4898
    %v5007 = vpack.c.bf16 %v4903, %v4899
    %v5008 = vpack.c.bf16 %v4908, %v4904
    %v5009 = vpack.c.bf16 %v4909, %v4905
    %v5010 = vpack.c.bf16 %v4910, %v4906
    %v5011 = vpack.c.bf16 %v4911, %v4907
    %v5012 = vpack.c.bf16 %v4916, %v4912
    %v5013 = vpack.c.bf16 %v4917, %v4913
    %v5014 = vpack.c.bf16 %v4918, %v4914
    %v5015 = vpack.c.bf16 %v4919, %v4915
    %v5016 = vpack.c.bf16 %v4924, %v4920
    %v5017 = vpack.c.bf16 %v4925, %v4921
    %v5018 = vpack.c.bf16 %v4926, %v4922
    %v5019 = vpack.c.bf16 %v4927, %v4923
    %v5020 = vpack.c.bf16 %v4932, %v4928
    %v5021 = vpack.c.bf16 %v4933, %v4929
    %v5022 = vpack.c.bf16 %v4934, %v4930
    %v5023 = vpack.c.bf16 %v4935, %v4931
    %v5024 = vpack.c.bf16 %v4940, %v4936
    %v5025 = vpack.c.bf16 %v4941, %v4937
    %v5026 = vpack.c.bf16 %v4942, %v4938
    %v5027 = vpack.c.bf16 %v4943, %v4939
    %v5028 = vpack.c.bf16 %v4948, %v4944
    %v5029 = vpack.c.bf16 %v4949, %v4945
    %v5030 = vpack.c.bf16 %v4950, %v4946
    %v5031 = vpack.c.bf16 %v4951, %v4947
    %v5032 = vpack.c.bf16 %v4956, %v4952
    %v5033 = vpack.c.bf16 %v4957, %v4953
    %v5034 = vpack.c.bf16 %v4958, %v4954
    %v5035 = vpack.c.bf16 %v4959, %v4955
    %v5036 = vpack.c.bf16 %v4964, %v4960
    %v5037 = vpack.c.bf16 %v4965, %v4961
    %v5038 = vpack.c.bf16 %v4966, %v4962
    %v5039 = vpack.c.bf16 %v4967, %v4963
    %v5040 = vpack.c.bf16 %v4972, %v4968
    %v5041 = vpack.c.bf16 %v4973, %v4969
    %v5042 = vpack.c.bf16 %v4974, %v4970
    %v5043 = vpack.c.bf16 %v4975, %v4971
    %v5044 = vpack.c.bf16 %v4980, %v4976
    %v5045 = vpack.c.bf16 %v4981, %v4977
    %v5046 = vpack.c.bf16 %v4982, %v4978
    %v5047 = vpack.c.bf16 %v4983, %v4979
    %v5048 = vld [vmem:[%s3] sm:$0xff]
    %v5049 = vld [vmem:[%s3 + $0x8] sm:$0xff]
    %v5050 = vld [vmem:[%s3 + $0x10] sm:$0xff]
    %v5051 = vld [vmem:[%s3 + $0x18] sm:$0xff]
    %v5052 = vld [vmem:[%s3 + $0x20] sm:$0xff]
    %v5053 = vld [vmem:[%s3 + $0x28] sm:$0xff]
    %v5054 = vld [vmem:[%s3 + $0x30] sm:$0xff]
    %v5055 = vld [vmem:[%s3 + $0x38] sm:$0xff]
    %v5056 = vld [vmem:[%s3 + $0x40] sm:$0xff]
    %v5057 = vld [vmem:[%s3 + $0x48] sm:$0xff]
    %v5058 = vld [vmem:[%s3 + $0x50] sm:$0xff]
    %v5059 = vld [vmem:[%s3 + $0x58] sm:$0xff]
    %v5060 = vld [vmem:[%s3 + $0x60] sm:$0xff]
    %v5061 = vld [vmem:[%s3 + $0x68] sm:$0xff]
    %v5062 = vld [vmem:[%s3 + $0x70] sm:$0xff]
    %v5063 = vld [vmem:[%s3 + $0x78] sm:$0xff]
    %v5064 = vld [vmem:[%s3 + $0x80] sm:$0xff]
    %v5065 = vld [vmem:[%s3 + $0x88] sm:$0xff]
    %v5066 = vld [vmem:[%s3 + $0x90] sm:$0xff]
    %v5067 = vld [vmem:[%s3 + $0x98] sm:$0xff]
    %v5068 = vld [vmem:[%s3 + $0xa0] sm:$0xff]
    %v5069 = vld [vmem:[%s3 + $0xa8] sm:$0xff]
    %v5070 = vld [vmem:[%s3 + $0xb0] sm:$0xff]
    %v5071 = vld [vmem:[%s3 + $0xb8] sm:$0xff]
    %v5072 = vld [vmem:[%s3 + $0xc0] sm:$0xff]
    %v5073 = vld [vmem:[%s3 + $0xc8] sm:$0xff]
    %v5074 = vld [vmem:[%s3 + $0xd0] sm:$0xff]
    %v5075 = vld [vmem:[%s3 + $0xd8] sm:$0xff]
    %v5076 = vld [vmem:[%s3 + $0xe0] sm:$0xff]
    %v5077 = vld [vmem:[%s3 + $0xe8] sm:$0xff]
    %v5078 = vld [vmem:[%s3 + $0xf0] sm:$0xff]
    %v5079 = vld [vmem:[%s3 + $0xf8] sm:$0xff]
    %v5080 = vld [vmem:[%s3 + $0x100] sm:$0xff]
    %v5081 = vld [vmem:[%s3 + $0x108] sm:$0xff]
    %v5082 = vld [vmem:[%s3 + $0x110] sm:$0xff]
    %v5083 = vld [vmem:[%s3 + $0x118] sm:$0xff]
    %v5084 = vld [vmem:[%s3 + $0x120] sm:$0xff]
    %v5085 = vld [vmem:[%s3 + $0x128] sm:$0xff]
    %v5086 = vld [vmem:[%s3 + $0x130] sm:$0xff]
    %v5087 = vld [vmem:[%s3 + $0x138] sm:$0xff]
    %v5088 = vld [vmem:[%s3 + $0x140] sm:$0xff]
    %v5089 = vld [vmem:[%s3 + $0x148] sm:$0xff]
    %v5090 = vld [vmem:[%s3 + $0x150] sm:$0xff]
    %v5091 = vld [vmem:[%s3 + $0x158] sm:$0xff]
    %v5092 = vld [vmem:[%s3 + $0x160] sm:$0xff]
    %v5093 = vld [vmem:[%s3 + $0x168] sm:$0xff]
    %v5094 = vld [vmem:[%s3 + $0x170] sm:$0xff]
    %v5095 = vld [vmem:[%s3 + $0x178] sm:$0xff]
    %v5096 = vld [vmem:[%s3 + $0x180] sm:$0xff]
    %v5097 = vld [vmem:[%s3 + $0x188] sm:$0xff]
    %v5098 = vld [vmem:[%s3 + $0x190] sm:$0xff]
    %v5099 = vld [vmem:[%s3 + $0x198] sm:$0xff]
    %v5100 = vld [vmem:[%s3 + $0x1a0] sm:$0xff]
    %v5101 = vld [vmem:[%s3 + $0x1a8] sm:$0xff]
    %v5102 = vld [vmem:[%s3 + $0x1b0] sm:$0xff]
    %v5103 = vld [vmem:[%s3 + $0x1b8] sm:$0xff]
    %v5104 = vld [vmem:[%s3 + $0x1c0] sm:$0xff]
    %v5105 = vld [vmem:[%s3 + $0x1c8] sm:$0xff]
    %v5106 = vld [vmem:[%s3 + $0x1d0] sm:$0xff]
    %v5107 = vld [vmem:[%s3 + $0x1d8] sm:$0xff]
    %v5108 = vld [vmem:[%s3 + $0x1e0] sm:$0xff]
    %v5109 = vld [vmem:[%s3 + $0x1e8] sm:$0xff]
    %v5110 = vld [vmem:[%s3 + $0x1f0] sm:$0xff]
    %v5111 = vld [vmem:[%s3 + $0x1f8] sm:$0xff]
    %v5112 = vld [vmem:[%s4] sm:$0x3]
    %v5114 = vperm.slane %v5112, 0
    %v5115 = vperm.slane %v5112, 1
    %v5182 = vunpack.c.l.b16 %v5048
    %v5183 = vunpack.c.h.b16 %v5048
    %v5184 = vunpack.c.l.b16 %v5049
    %v5185 = vunpack.c.h.b16 %v5049
    %v5186 = vunpack.c.l.b16 %v5050
    %v5187 = vunpack.c.h.b16 %v5050
    %v5188 = vunpack.c.l.b16 %v5051
    %v5189 = vunpack.c.h.b16 %v5051
    %v5190 = vunpack.c.l.b16 %v5052
    %v5191 = vunpack.c.h.b16 %v5052
    %v5192 = vunpack.c.l.b16 %v5053
    %v5193 = vunpack.c.h.b16 %v5053
    %v5194 = vunpack.c.l.b16 %v5054
    %v5195 = vunpack.c.h.b16 %v5054
    %v5196 = vunpack.c.l.b16 %v5055
    %v5197 = vunpack.c.h.b16 %v5055
    %v5198 = vunpack.c.l.b16 %v5056
    %v5199 = vunpack.c.h.b16 %v5056
    %v5200 = vunpack.c.l.b16 %v5057
    %v5201 = vunpack.c.h.b16 %v5057
    %v5202 = vunpack.c.l.b16 %v5058
    %v5203 = vunpack.c.h.b16 %v5058
    %v5204 = vunpack.c.l.b16 %v5059
    %v5205 = vunpack.c.h.b16 %v5059
    %v5206 = vunpack.c.l.b16 %v5060
    %v5207 = vunpack.c.h.b16 %v5060
    %v5208 = vunpack.c.l.b16 %v5061
    %v5209 = vunpack.c.h.b16 %v5061
    %v5210 = vunpack.c.l.b16 %v5062
    %v5211 = vunpack.c.h.b16 %v5062
    %v5212 = vunpack.c.l.b16 %v5063
    %v5213 = vunpack.c.h.b16 %v5063
    %v5214 = vunpack.c.l.b16 %v5064
    %v5215 = vunpack.c.h.b16 %v5064
    %v5216 = vunpack.c.l.b16 %v5065
    %v5217 = vunpack.c.h.b16 %v5065
    %v5218 = vunpack.c.l.b16 %v5066
    %v5219 = vunpack.c.h.b16 %v5066
    %v5220 = vunpack.c.l.b16 %v5067
    %v5221 = vunpack.c.h.b16 %v5067
    %v5222 = vunpack.c.l.b16 %v5068
    %v5223 = vunpack.c.h.b16 %v5068
    %v5224 = vunpack.c.l.b16 %v5069
    %v5225 = vunpack.c.h.b16 %v5069
    %v5226 = vunpack.c.l.b16 %v5070
    %v5227 = vunpack.c.h.b16 %v5070
    %v5228 = vunpack.c.l.b16 %v5071
    %v5229 = vunpack.c.h.b16 %v5071
    %v5230 = vunpack.c.l.b16 %v5072
    %v5231 = vunpack.c.h.b16 %v5072
    %v5232 = vunpack.c.l.b16 %v5073
    %v5233 = vunpack.c.h.b16 %v5073
    %v5234 = vunpack.c.l.b16 %v5074
    %v5235 = vunpack.c.h.b16 %v5074
    %v5236 = vunpack.c.l.b16 %v5075
    %v5237 = vunpack.c.h.b16 %v5075
    %v5238 = vunpack.c.l.b16 %v5076
    %v5239 = vunpack.c.h.b16 %v5076
    %v5240 = vunpack.c.l.b16 %v5077
    %v5241 = vunpack.c.h.b16 %v5077
    %v5242 = vunpack.c.l.b16 %v5078
    %v5243 = vunpack.c.h.b16 %v5078
    %v5244 = vunpack.c.l.b16 %v5079
    %v5245 = vunpack.c.h.b16 %v5079
    %v5246 = vunpack.c.l.b16 %v5080
    %v5247 = vunpack.c.h.b16 %v5080
    %v5248 = vunpack.c.l.b16 %v5081
    %v5249 = vunpack.c.h.b16 %v5081
    %v5250 = vunpack.c.l.b16 %v5082
    %v5251 = vunpack.c.h.b16 %v5082
    %v5252 = vunpack.c.l.b16 %v5083
    %v5253 = vunpack.c.h.b16 %v5083
    %v5254 = vunpack.c.l.b16 %v5084
    %v5255 = vunpack.c.h.b16 %v5084
    %v5256 = vunpack.c.l.b16 %v5085
    %v5257 = vunpack.c.h.b16 %v5085
    %v5258 = vunpack.c.l.b16 %v5086
    %v5259 = vunpack.c.h.b16 %v5086
    %v5260 = vunpack.c.l.b16 %v5087
    %v5261 = vunpack.c.h.b16 %v5087
    %v5262 = vunpack.c.l.b16 %v5088
    %v5263 = vunpack.c.h.b16 %v5088
    %v5264 = vunpack.c.l.b16 %v5089
    %v5265 = vunpack.c.h.b16 %v5089
    %v5266 = vunpack.c.l.b16 %v5090
    %v5267 = vunpack.c.h.b16 %v5090
    %v5268 = vunpack.c.l.b16 %v5091
    %v5269 = vunpack.c.h.b16 %v5091
    %v5270 = vunpack.c.l.b16 %v5092
    %v5271 = vunpack.c.h.b16 %v5092
    %v5272 = vunpack.c.l.b16 %v5093
    %v5273 = vunpack.c.h.b16 %v5093
    %v5274 = vunpack.c.l.b16 %v5094
    %v5275 = vunpack.c.h.b16 %v5094
    %v5276 = vunpack.c.l.b16 %v5095
    %v5277 = vunpack.c.h.b16 %v5095
    %v5278 = vunpack.c.l.b16 %v5096
    %v5279 = vunpack.c.h.b16 %v5096
    %v5280 = vunpack.c.l.b16 %v5097
    %v5281 = vunpack.c.h.b16 %v5097
    %v5282 = vunpack.c.l.b16 %v5098
    %v5283 = vunpack.c.h.b16 %v5098
    %v5284 = vunpack.c.l.b16 %v5099
    %v5285 = vunpack.c.h.b16 %v5099
    %v5286 = vunpack.c.l.b16 %v5100
    %v5287 = vunpack.c.h.b16 %v5100
    %v5288 = vunpack.c.l.b16 %v5101
    %v5289 = vunpack.c.h.b16 %v5101
    %v5290 = vunpack.c.l.b16 %v5102
    %v5291 = vunpack.c.h.b16 %v5102
    %v5292 = vunpack.c.l.b16 %v5103
    %v5293 = vunpack.c.h.b16 %v5103
    %v5294 = vunpack.c.l.b16 %v5104
    %v5295 = vunpack.c.h.b16 %v5104
    %v5296 = vunpack.c.l.b16 %v5105
    %v5297 = vunpack.c.h.b16 %v5105
    %v5298 = vunpack.c.l.b16 %v5106
    %v5299 = vunpack.c.h.b16 %v5106
    %v5300 = vunpack.c.l.b16 %v5107
    %v5301 = vunpack.c.h.b16 %v5107
    %v5302 = vunpack.c.l.b16 %v5108
    %v5303 = vunpack.c.h.b16 %v5108
    %v5304 = vunpack.c.l.b16 %v5109
    %v5305 = vunpack.c.h.b16 %v5109
    %v5306 = vunpack.c.l.b16 %v5110
    %v5307 = vunpack.c.h.b16 %v5110
    %v5308 = vunpack.c.l.b16 %v5111
    %v5309 = vunpack.c.h.b16 %v5111
    %v5310 = vpack.c.b16 %v5184, %v5182
    %v5311 = vpack.c.b16 %v5185, %v5183
    %v5312 = vpack.c.b16 %v5188, %v5186
    %v5313 = vpack.c.b16 %v5189, %v5187
    %v5314 = vpack.c.b16 %v5192, %v5190
    %v5315 = vpack.c.b16 %v5193, %v5191
    %v5316 = vpack.c.b16 %v5196, %v5194
    %v5317 = vpack.c.b16 %v5197, %v5195
    %v5318 = vpack.c.b16 %v5200, %v5198
    %v5319 = vpack.c.b16 %v5201, %v5199
    %v5320 = vpack.c.b16 %v5204, %v5202
    %v5321 = vpack.c.b16 %v5205, %v5203
    %v5322 = vpack.c.b16 %v5208, %v5206
    %v5323 = vpack.c.b16 %v5209, %v5207
    %v5324 = vpack.c.b16 %v5212, %v5210
    %v5325 = vpack.c.b16 %v5213, %v5211
    %v5326 = vpack.c.b16 %v5216, %v5214
    %v5327 = vpack.c.b16 %v5217, %v5215
    %v5328 = vpack.c.b16 %v5220, %v5218
    %v5329 = vpack.c.b16 %v5221, %v5219
    %v5330 = vpack.c.b16 %v5224, %v5222
    %v5331 = vpack.c.b16 %v5225, %v5223
    %v5332 = vpack.c.b16 %v5228, %v5226
    %v5333 = vpack.c.b16 %v5229, %v5227
    %v5334 = vpack.c.b16 %v5232, %v5230
    %v5335 = vpack.c.b16 %v5233, %v5231
    %v5336 = vpack.c.b16 %v5236, %v5234
    %v5337 = vpack.c.b16 %v5237, %v5235
    %v5338 = vpack.c.b16 %v5240, %v5238
    %v5339 = vpack.c.b16 %v5241, %v5239
    %v5340 = vpack.c.b16 %v5244, %v5242
    %v5341 = vpack.c.b16 %v5245, %v5243
    %v5342 = vpack.c.b16 %v5248, %v5246
    %v5343 = vpack.c.b16 %v5249, %v5247
    %v5344 = vpack.c.b16 %v5252, %v5250
    %v5345 = vpack.c.b16 %v5253, %v5251
    %v5346 = vpack.c.b16 %v5256, %v5254
    %v5347 = vpack.c.b16 %v5257, %v5255
    %v5348 = vpack.c.b16 %v5260, %v5258
    %v5349 = vpack.c.b16 %v5261, %v5259
    %v5350 = vpack.c.b16 %v5264, %v5262
    %v5351 = vpack.c.b16 %v5265, %v5263
    %v5352 = vpack.c.b16 %v5268, %v5266
    %v5353 = vpack.c.b16 %v5269, %v5267
    %v5354 = vpack.c.b16 %v5272, %v5270
    %v5355 = vpack.c.b16 %v5273, %v5271
    %v5356 = vpack.c.b16 %v5276, %v5274
    %v5357 = vpack.c.b16 %v5277, %v5275
    %v5358 = vpack.c.b16 %v5280, %v5278
    %v5359 = vpack.c.b16 %v5281, %v5279
    %v5360 = vpack.c.b16 %v5284, %v5282
    %v5361 = vpack.c.b16 %v5285, %v5283
    %v5362 = vpack.c.b16 %v5288, %v5286
    %v5363 = vpack.c.b16 %v5289, %v5287
    %v5364 = vpack.c.b16 %v5292, %v5290
    %v5365 = vpack.c.b16 %v5293, %v5291
    %v5366 = vpack.c.b16 %v5296, %v5294
    %v5367 = vpack.c.b16 %v5297, %v5295
    %v5368 = vpack.c.b16 %v5300, %v5298
    %v5369 = vpack.c.b16 %v5301, %v5299
    %v5370 = vpack.c.b16 %v5304, %v5302
    %v5371 = vpack.c.b16 %v5305, %v5303
    %v5372 = vpack.c.b16 %v5308, %v5306
    %v5373 = vpack.c.b16 %v5309, %v5307
    %5438 = vmatpush.bf16.msra.mxu0 %v5324
    %5439 = vmatpush.bf16.msra.mxu0 %v5322
    %5440 = vmatpush.bf16.msra.mxu0 %v5320
    %5441 = vmatpush.bf16.msra.mxu0 %v5318
    %5442 = vmatpush.bf16.msra.mxu0 %v5316
    %5443 = vmatpush.bf16.msra.mxu0 %v5314
    %5444 = vmatpush.bf16.msra.mxu0 %v5312
    %5445 = vmatpush.bf16.msra.mxu0 %v5310
    %5446 = vmatmul.bf16.gmra.mxu0 %v4984
    %v5447 = vpop.f32.mrf.mxu0
    %v5448 = vadd.f32 %v5114, %v5447
    %v5449 = vpop.f32.mrf.mxu0
    %v5450 = vadd.f32 %v5114, %v5449
    %5451 = vmatmul.bf16.gmra.mxu0 %v4988
    %v5452 = vpop.f32.mrf.mxu0
    %v5453 = vadd.f32 %v5114, %v5452
    %v5454 = vpop.f32.mrf.mxu0
    %v5455 = vadd.f32 %v5114, %v5454
    %5456 = vmatmul.bf16.gmra.mxu0 %v4992
    %v5457 = vpop.f32.mrf.mxu0
    %v5458 = vadd.f32 %v5114, %v5457
    %v5459 = vpop.f32.mrf.mxu0
    %v5460 = vadd.f32 %v5114, %v5459
    %5461 = vmatmul.bf16.gmra.mxu0 %v4996
    %v5462 = vpop.f32.mrf.mxu0
    %v5463 = vadd.f32 %v5114, %v5462
    %v5464 = vpop.f32.mrf.mxu0
    %v5465 = vadd.f32 %v5114, %v5464
    %5466 = vmatmul.bf16.gmra.mxu0 %v5000
    %v5467 = vpop.f32.mrf.mxu0
    %v5468 = vadd.f32 %v5114, %v5467
    %v5469 = vpop.f32.mrf.mxu0
    %v5470 = vadd.f32 %v5114, %v5469
    %5471 = vmatmul.bf16.gmra.mxu0 %v5004
    %v5472 = vpop.f32.mrf.mxu0
    %v5473 = vadd.f32 %v5114, %v5472
    %v5474 = vpop.f32.mrf.mxu0
    %v5475 = vadd.f32 %v5114, %v5474
    %5476 = vmatmul.bf16.gmra.mxu0 %v5008
    %v5477 = vpop.f32.mrf.mxu0
    %v5478 = vadd.f32 %v5114, %v5477
    %v5479 = vpop.f32.mrf.mxu0
    %v5480 = vadd.f32 %v5114, %v5479
    %5481 = vmatmul.bf16.gmra.mxu0 %v5012
    %v5482 = vpop.f32.mrf.mxu0
    %v5483 = vadd.f32 %v5114, %v5482
    %v5484 = vpop.f32.mrf.mxu0
    %v5485 = vadd.f32 %v5114, %v5484
    %5486 = vmatmul.bf16.gmra.mxu0 %v5016
    %v5487 = vpop.f32.mrf.mxu0
    %v5488 = vadd.f32 %v5114, %v5487
    %v5489 = vpop.f32.mrf.mxu0
    %v5490 = vadd.f32 %v5114, %v5489
    %5491 = vmatmul.bf16.gmra.mxu0 %v5020
    %v5492 = vpop.f32.mrf.mxu0
    %v5493 = vadd.f32 %v5114, %v5492
    %v5494 = vpop.f32.mrf.mxu0
    %v5495 = vadd.f32 %v5114, %v5494
    %5496 = vmatmul.bf16.gmra.mxu0 %v5024
    %v5497 = vpop.f32.mrf.mxu0
    %v5498 = vadd.f32 %v5114, %v5497
    %v5499 = vpop.f32.mrf.mxu0
    %v5500 = vadd.f32 %v5114, %v5499
    %5501 = vmatmul.bf16.gmra.mxu0 %v5028
    %v5502 = vpop.f32.mrf.mxu0
    %v5503 = vadd.f32 %v5114, %v5502
    %v5504 = vpop.f32.mrf.mxu0
    %v5505 = vadd.f32 %v5114, %v5504
    %5506 = vmatmul.bf16.gmra.mxu0 %v5032
    %v5507 = vpop.f32.mrf.mxu0
    %v5508 = vadd.f32 %v5114, %v5507
    %v5509 = vpop.f32.mrf.mxu0
    %v5510 = vadd.f32 %v5114, %v5509
    %5511 = vmatmul.bf16.gmra.mxu0 %v5036
    %v5512 = vpop.f32.mrf.mxu0
    %v5513 = vadd.f32 %v5114, %v5512
    %v5514 = vpop.f32.mrf.mxu0
    %v5515 = vadd.f32 %v5114, %v5514
    %5516 = vmatmul.bf16.gmra.mxu0 %v5040
    %v5517 = vpop.f32.mrf.mxu0
    %v5518 = vadd.f32 %v5114, %v5517
    %v5519 = vpop.f32.mrf.mxu0
    %v5520 = vadd.f32 %v5114, %v5519
    %5521 = vmatmul.bf16.gmra.mxu0 %v5044
    %v5522 = vpop.f32.mrf.mxu0
    %v5523 = vadd.f32 %v5114, %v5522
    %v5524 = vpop.f32.mrf.mxu0
    %v5525 = vadd.f32 %v5114, %v5524
    %5526 = vdwg.mxu0
    %5527 = vmatpush.bf16.msra.mxu0 %v5340
    %5528 = vmatpush.bf16.msra.mxu0 %v5338
    %5529 = vmatpush.bf16.msra.mxu0 %v5336
    %5530 = vmatpush.bf16.msra.mxu0 %v5334
    %5531 = vmatpush.bf16.msra.mxu0 %v5332
    %5532 = vmatpush.bf16.msra.mxu0 %v5330
    %5533 = vmatpush.bf16.msra.mxu0 %v5328
    %5534 = vmatpush.bf16.msra.mxu0 %v5326
    %5535 = vmatmul.bf16.gmra.mxu0 %v4985
    %v5536 = vpop.f32.mrf.mxu0
    %v5537 = vadd.f32 %v5448, %v5536
    %v5538 = vpop.f32.mrf.mxu0
    %v5539 = vadd.f32 %v5450, %v5538
    %5540 = vmatmul.bf16.gmra.mxu0 %v4989
    %v5541 = vpop.f32.mrf.mxu0
    %v5542 = vadd.f32 %v5453, %v5541
    %v5543 = vpop.f32.mrf.mxu0
    %v5544 = vadd.f32 %v5455, %v5543
    %5545 = vmatmul.bf16.gmra.mxu0 %v4993
    %v5546 = vpop.f32.mrf.mxu0
    %v5547 = vadd.f32 %v5458, %v5546
    %v5548 = vpop.f32.mrf.mxu0
    %v5549 = vadd.f32 %v5460, %v5548
    %5550 = vmatmul.bf16.gmra.mxu0 %v4997
    %v5551 = vpop.f32.mrf.mxu0
    %v5552 = vadd.f32 %v5463, %v5551
    %v5553 = vpop.f32.mrf.mxu0
    %v5554 = vadd.f32 %v5465, %v5553
    %5555 = vmatmul.bf16.gmra.mxu0 %v5001
    %v5556 = vpop.f32.mrf.mxu0
    %v5557 = vadd.f32 %v5468, %v5556
    %v5558 = vpop.f32.mrf.mxu0
    %v5559 = vadd.f32 %v5470, %v5558
    %5560 = vmatmul.bf16.gmra.mxu0 %v5005
    %v5561 = vpop.f32.mrf.mxu0
    %v5562 = vadd.f32 %v5473, %v5561
    %v5563 = vpop.f32.mrf.mxu0
    %v5564 = vadd.f32 %v5475, %v5563
    %5565 = vmatmul.bf16.gmra.mxu0 %v5009
    %v5566 = vpop.f32.mrf.mxu0
    %v5567 = vadd.f32 %v5478, %v5566
    %v5568 = vpop.f32.mrf.mxu0
    %v5569 = vadd.f32 %v5480, %v5568
    %5570 = vmatmul.bf16.gmra.mxu0 %v5013
    %v5571 = vpop.f32.mrf.mxu0
    %v5572 = vadd.f32 %v5483, %v5571
    %v5573 = vpop.f32.mrf.mxu0
    %v5574 = vadd.f32 %v5485, %v5573
    %5575 = vmatmul.bf16.gmra.mxu0 %v5017
    %v5576 = vpop.f32.mrf.mxu0
    %v5577 = vadd.f32 %v5488, %v5576
    %v5578 = vpop.f32.mrf.mxu0
    %v5579 = vadd.f32 %v5490, %v5578
    %5580 = vmatmul.bf16.gmra.mxu0 %v5021
    %v5581 = vpop.f32.mrf.mxu0
    %v5582 = vadd.f32 %v5493, %v5581
    %v5583 = vpop.f32.mrf.mxu0
    %v5584 = vadd.f32 %v5495, %v5583
    %5585 = vmatmul.bf16.gmra.mxu0 %v5025
    %v5586 = vpop.f32.mrf.mxu0
    %v5587 = vadd.f32 %v5498, %v5586
    %v5588 = vpop.f32.mrf.mxu0
    %v5589 = vadd.f32 %v5500, %v5588
    %5590 = vmatmul.bf16.gmra.mxu0 %v5029
    %v5591 = vpop.f32.mrf.mxu0
    %v5592 = vadd.f32 %v5503, %v5591
    %v5593 = vpop.f32.mrf.mxu0
    %v5594 = vadd.f32 %v5505, %v5593
    %5595 = vmatmul.bf16.gmra.mxu0 %v5033
    %v5596 = vpop.f32.mrf.mxu0
    %v5597 = vadd.f32 %v5508, %v5596
    %v5598 = vpop.f32.mrf.mxu0
    %v5599 = vadd.f32 %v5510, %v5598
    %5600 = vmatmul.bf16.gmra.mxu0 %v5037
    %v5601 = vpop.f32.mrf.mxu0
    %v5602 = vadd.f32 %v5513, %v5601
    %v5603 = vpop.f32.mrf.mxu0
    %v5604 = vadd.f32 %v5515, %v5603
    %5605 = vmatmul.bf16.gmra.mxu0 %v5041
    %v5606 = vpop.f32.mrf.mxu0
    %v5607 = vadd.f32 %v5518, %v5606
    %v5608 = vpop.f32.mrf.mxu0
    %v5609 = vadd.f32 %v5520, %v5608
    %5610 = vmatmul.bf16.gmra.mxu0 %v5045
    %v5611 = vpop.f32.mrf.mxu0
    %v5612 = vadd.f32 %v5523, %v5611
    %v5613 = vpop.f32.mrf.mxu0
    %v5614 = vadd.f32 %v5525, %v5613
    %5615 = vdwg.mxu0
    %5616 = vmatpush.bf16.msra.mxu0 %v5356
    %5617 = vmatpush.bf16.msra.mxu0 %v5354
    %5618 = vmatpush.bf16.msra.mxu0 %v5352
    %5619 = vmatpush.bf16.msra.mxu0 %v5350
    %5620 = vmatpush.bf16.msra.mxu0 %v5348
    %5621 = vmatpush.bf16.msra.mxu0 %v5346
    %5622 = vmatpush.bf16.msra.mxu0 %v5344
    %5623 = vmatpush.bf16.msra.mxu0 %v5342
    %5624 = vmatmul.bf16.gmra.mxu0 %v4986
    %v5625 = vpop.f32.mrf.mxu0
    %v5626 = vadd.f32 %v5537, %v5625
    %v5627 = vpop.f32.mrf.mxu0
    %v5628 = vadd.f32 %v5539, %v5627
    %5629 = vmatmul.bf16.gmra.mxu0 %v4990
    %v5630 = vpop.f32.mrf.mxu0
    %v5631 = vadd.f32 %v5542, %v5630
    %v5632 = vpop.f32.mrf.mxu0
    %v5633 = vadd.f32 %v5544, %v5632
    %5634 = vmatmul.bf16.gmra.mxu0 %v4994
    %v5635 = vpop.f32.mrf.mxu0
    %v5636 = vadd.f32 %v5547, %v5635
    %v5637 = vpop.f32.mrf.mxu0
    %v5638 = vadd.f32 %v5549, %v5637
    %5639 = vmatmul.bf16.gmra.mxu0 %v4998
    %v5640 = vpop.f32.mrf.mxu0
    %v5641 = vadd.f32 %v5552, %v5640
    %v5642 = vpop.f32.mrf.mxu0
    %v5643 = vadd.f32 %v5554, %v5642
    %5644 = vmatmul.bf16.gmra.mxu0 %v5002
    %v5645 = vpop.f32.mrf.mxu0
    %v5646 = vadd.f32 %v5557, %v5645
    %v5647 = vpop.f32.mrf.mxu0
    %v5648 = vadd.f32 %v5559, %v5647
    %5649 = vmatmul.bf16.gmra.mxu0 %v5006
    %v5650 = vpop.f32.mrf.mxu0
    %v5651 = vadd.f32 %v5562, %v5650
    %v5652 = vpop.f32.mrf.mxu0
    %v5653 = vadd.f32 %v5564, %v5652
    %5654 = vmatmul.bf16.gmra.mxu0 %v5010
    %v5655 = vpop.f32.mrf.mxu0
    %v5656 = vadd.f32 %v5567, %v5655
    %v5657 = vpop.f32.mrf.mxu0
    %v5658 = vadd.f32 %v5569, %v5657
    %5659 = vmatmul.bf16.gmra.mxu0 %v5014
    %v5660 = vpop.f32.mrf.mxu0
    %v5661 = vadd.f32 %v5572, %v5660
    %v5662 = vpop.f32.mrf.mxu0
    %v5663 = vadd.f32 %v5574, %v5662
    %5664 = vmatmul.bf16.gmra.mxu0 %v5018
    %v5665 = vpop.f32.mrf.mxu0
    %v5666 = vadd.f32 %v5577, %v5665
    %v5667 = vpop.f32.mrf.mxu0
    %v5668 = vadd.f32 %v5579, %v5667
    %5669 = vmatmul.bf16.gmra.mxu0 %v5022
    %v5670 = vpop.f32.mrf.mxu0
    %v5671 = vadd.f32 %v5582, %v5670
    %v5672 = vpop.f32.mrf.mxu0
    %v5673 = vadd.f32 %v5584, %v5672
    %5674 = vmatmul.bf16.gmra.mxu0 %v5026
    %v5675 = vpop.f32.mrf.mxu0
    %v5676 = vadd.f32 %v5587, %v5675
    %v5677 = vpop.f32.mrf.mxu0
    %v5678 = vadd.f32 %v5589, %v5677
    %5679 = vmatmul.bf16.gmra.mxu0 %v5030
    %v5680 = vpop.f32.mrf.mxu0
    %v5681 = vadd.f32 %v5592, %v5680
    %v5682 = vpop.f32.mrf.mxu0
    %v5683 = vadd.f32 %v5594, %v5682
    %5684 = vmatmul.bf16.gmra.mxu0 %v5034
    %v5685 = vpop.f32.mrf.mxu0
    %v5686 = vadd.f32 %v5597, %v5685
    %v5687 = vpop.f32.mrf.mxu0
    %v5688 = vadd.f32 %v5599, %v5687
    %5689 = vmatmul.bf16.gmra.mxu0 %v5038
    %v5690 = vpop.f32.mrf.mxu0
    %v5691 = vadd.f32 %v5602, %v5690
    %v5692 = vpop.f32.mrf.mxu0
    %v5693 = vadd.f32 %v5604, %v5692
    %5694 = vmatmul.bf16.gmra.mxu0 %v5042
    %v5695 = vpop.f32.mrf.mxu0
    %v5696 = vadd.f32 %v5607, %v5695
    %v5697 = vpop.f32.mrf.mxu0
    %v5698 = vadd.f32 %v5609, %v5697
    %5699 = vmatmul.bf16.gmra.mxu0 %v5046
    %v5700 = vpop.f32.mrf.mxu0
    %v5701 = vadd.f32 %v5612, %v5700
    %v5702 = vpop.f32.mrf.mxu0
    %v5703 = vadd.f32 %v5614, %v5702
    %5704 = vdwg.mxu0
    %5705 = vmatpush.bf16.msra.mxu0 %v5372
    %5706 = vmatpush.bf16.msra.mxu0 %v5370
    %5707 = vmatpush.bf16.msra.mxu0 %v5368
    %5708 = vmatpush.bf16.msra.mxu0 %v5366
    %5709 = vmatpush.bf16.msra.mxu0 %v5364
    %5710 = vmatpush.bf16.msra.mxu0 %v5362
    %5711 = vmatpush.bf16.msra.mxu0 %v5360
    %5712 = vmatpush.bf16.msra.mxu0 %v5358
    %5713 = vmatmul.bf16.gmra.mxu0 %v4987
    %v5714 = vpop.f32.mrf.mxu0
    %v5715 = vadd.f32 %v5626, %v5714
    %v5716 = vpop.f32.mrf.mxu0
    %v5717 = vadd.f32 %v5628, %v5716
    %5718 = vmatmul.bf16.gmra.mxu0 %v4991
    %v5719 = vpop.f32.mrf.mxu0
    %v5720 = vadd.f32 %v5631, %v5719
    %v5721 = vpop.f32.mrf.mxu0
    %v5722 = vadd.f32 %v5633, %v5721
    %5723 = vmatmul.bf16.gmra.mxu0 %v4995
    %v5724 = vpop.f32.mrf.mxu0
    %v5725 = vadd.f32 %v5636, %v5724
    %v5726 = vpop.f32.mrf.mxu0
    %v5727 = vadd.f32 %v5638, %v5726
    %5728 = vmatmul.bf16.gmra.mxu0 %v4999
    %v5729 = vpop.f32.mrf.mxu0
    %v5730 = vadd.f32 %v5641, %v5729
    %v5731 = vpop.f32.mrf.mxu0
    %v5732 = vadd.f32 %v5643, %v5731
    %5733 = vmatmul.bf16.gmra.mxu0 %v5003
    %v5734 = vpop.f32.mrf.mxu0
    %v5735 = vadd.f32 %v5646, %v5734
    %v5736 = vpop.f32.mrf.mxu0
    %v5737 = vadd.f32 %v5648, %v5736
    %5738 = vmatmul.bf16.gmra.mxu0 %v5007
    %v5739 = vpop.f32.mrf.mxu0
    %v5740 = vadd.f32 %v5651, %v5739
    %v5741 = vpop.f32.mrf.mxu0
    %v5742 = vadd.f32 %v5653, %v5741
    %5743 = vmatmul.bf16.gmra.mxu0 %v5011
    %v5744 = vpop.f32.mrf.mxu0
    %v5745 = vadd.f32 %v5656, %v5744
    %v5746 = vpop.f32.mrf.mxu0
    %v5747 = vadd.f32 %v5658, %v5746
    %5748 = vmatmul.bf16.gmra.mxu0 %v5015
    %v5749 = vpop.f32.mrf.mxu0
    %v5750 = vadd.f32 %v5661, %v5749
    %v5751 = vpop.f32.mrf.mxu0
    %v5752 = vadd.f32 %v5663, %v5751
    %5753 = vmatmul.bf16.gmra.mxu0 %v5019
    %v5754 = vpop.f32.mrf.mxu0
    %v5755 = vadd.f32 %v5666, %v5754
    %v5756 = vpop.f32.mrf.mxu0
    %v5757 = vadd.f32 %v5668, %v5756
    %5758 = vmatmul.bf16.gmra.mxu0 %v5023
    %v5759 = vpop.f32.mrf.mxu0
    %v5760 = vadd.f32 %v5671, %v5759
    %v5761 = vpop.f32.mrf.mxu0
    %v5762 = vadd.f32 %v5673, %v5761
    %5763 = vmatmul.bf16.gmra.mxu0 %v5027
    %v5764 = vpop.f32.mrf.mxu0
    %v5765 = vadd.f32 %v5676, %v5764
    %v5766 = vpop.f32.mrf.mxu0
    %v5767 = vadd.f32 %v5678, %v5766
    %5768 = vmatmul.bf16.gmra.mxu0 %v5031
    %v5769 = vpop.f32.mrf.mxu0
    %v5770 = vadd.f32 %v5681, %v5769
    %v5771 = vpop.f32.mrf.mxu0
    %v5772 = vadd.f32 %v5683, %v5771
    %5773 = vmatmul.bf16.gmra.mxu0 %v5035
    %v5774 = vpop.f32.mrf.mxu0
    %v5775 = vadd.f32 %v5686, %v5774
    %v5776 = vpop.f32.mrf.mxu0
    %v5777 = vadd.f32 %v5688, %v5776
    %5778 = vmatmul.bf16.gmra.mxu0 %v5039
    %v5779 = vpop.f32.mrf.mxu0
    %v5780 = vadd.f32 %v5691, %v5779
    %v5781 = vpop.f32.mrf.mxu0
    %v5782 = vadd.f32 %v5693, %v5781
    %5783 = vmatmul.bf16.gmra.mxu0 %v5043
    %v5784 = vpop.f32.mrf.mxu0
    %v5785 = vadd.f32 %v5696, %v5784
    %v5786 = vpop.f32.mrf.mxu0
    %v5787 = vadd.f32 %v5698, %v5786
    %5788 = vmatmul.bf16.gmra.mxu0 %v5047
    %v5789 = vpop.f32.mrf.mxu0
    %v5790 = vadd.f32 %v5701, %v5789
    %v5791 = vpop.f32.mrf.mxu0
    %v5792 = vadd.f32 %v5703, %v5791
    %5793 = vdwg.mxu0
    %5794 = vmatpush.bf16.msra.mxu0 %v5325
    %5795 = vmatpush.bf16.msra.mxu0 %v5323
    %5796 = vmatpush.bf16.msra.mxu0 %v5321
    %5797 = vmatpush.bf16.msra.mxu0 %v5319
    %5798 = vmatpush.bf16.msra.mxu0 %v5317
    %5799 = vmatpush.bf16.msra.mxu0 %v5315
    %5800 = vmatpush.bf16.msra.mxu0 %v5313
    %5801 = vmatpush.bf16.msra.mxu0 %v5311
    %5802 = vmatmul.bf16.gmra.mxu0 %v4984
    %v5803 = vpop.f32.mrf.mxu0
    %v5804 = vadd.f32 %v5115, %v5803
    %v5805 = vpop.f32.mrf.mxu0
    %v5806 = vadd.f32 %v5115, %v5805
    %5807 = vmatmul.bf16.gmra.mxu0 %v4988
    %v5808 = vpop.f32.mrf.mxu0
    %v5809 = vadd.f32 %v5115, %v5808
    %v5810 = vpop.f32.mrf.mxu0
    %v5811 = vadd.f32 %v5115, %v5810
    %5812 = vmatmul.bf16.gmra.mxu0 %v4992
    %v5813 = vpop.f32.mrf.mxu0
    %v5814 = vadd.f32 %v5115, %v5813
    %v5815 = vpop.f32.mrf.mxu0
    %v5816 = vadd.f32 %v5115, %v5815
    %5817 = vmatmul.bf16.gmra.mxu0 %v4996
    %v5818 = vpop.f32.mrf.mxu0
    %v5819 = vadd.f32 %v5115, %v5818
    %v5820 = vpop.f32.mrf.mxu0
    %v5821 = vadd.f32 %v5115, %v5820
    %5822 = vmatmul.bf16.gmra.mxu0 %v5000
    %v5823 = vpop.f32.mrf.mxu0
    %v5824 = vadd.f32 %v5115, %v5823
    %v5825 = vpop.f32.mrf.mxu0
    %v5826 = vadd.f32 %v5115, %v5825
    %5827 = vmatmul.bf16.gmra.mxu0 %v5004
    %v5828 = vpop.f32.mrf.mxu0
    %v5829 = vadd.f32 %v5115, %v5828
    %v5830 = vpop.f32.mrf.mxu0
    %v5831 = vadd.f32 %v5115, %v5830
    %5832 = vmatmul.bf16.gmra.mxu0 %v5008
    %v5833 = vpop.f32.mrf.mxu0
    %v5834 = vadd.f32 %v5115, %v5833
    %v5835 = vpop.f32.mrf.mxu0
    %v5836 = vadd.f32 %v5115, %v5835
    %5837 = vmatmul.bf16.gmra.mxu0 %v5012
    %v5838 = vpop.f32.mrf.mxu0
    %v5839 = vadd.f32 %v5115, %v5838
    %v5840 = vpop.f32.mrf.mxu0
    %v5841 = vadd.f32 %v5115, %v5840
    %5842 = vmatmul.bf16.gmra.mxu0 %v5016
    %v5843 = vpop.f32.mrf.mxu0
    %v5844 = vadd.f32 %v5115, %v5843
    %v5845 = vpop.f32.mrf.mxu0
    %v5846 = vadd.f32 %v5115, %v5845
    %5847 = vmatmul.bf16.gmra.mxu0 %v5020
    %v5848 = vpop.f32.mrf.mxu0
    %v5849 = vadd.f32 %v5115, %v5848
    %v5850 = vpop.f32.mrf.mxu0
    %v5851 = vadd.f32 %v5115, %v5850
    %5852 = vmatmul.bf16.gmra.mxu0 %v5024
    %v5853 = vpop.f32.mrf.mxu0
    %v5854 = vadd.f32 %v5115, %v5853
    %v5855 = vpop.f32.mrf.mxu0
    %v5856 = vadd.f32 %v5115, %v5855
    %5857 = vmatmul.bf16.gmra.mxu0 %v5028
    %v5858 = vpop.f32.mrf.mxu0
    %v5859 = vadd.f32 %v5115, %v5858
    %v5860 = vpop.f32.mrf.mxu0
    %v5861 = vadd.f32 %v5115, %v5860
    %5862 = vmatmul.bf16.gmra.mxu0 %v5032
    %v5863 = vpop.f32.mrf.mxu0
    %v5864 = vadd.f32 %v5115, %v5863
    %v5865 = vpop.f32.mrf.mxu0
    %v5866 = vadd.f32 %v5115, %v5865
    %5867 = vmatmul.bf16.gmra.mxu0 %v5036
    %v5868 = vpop.f32.mrf.mxu0
    %v5869 = vadd.f32 %v5115, %v5868
    %v5870 = vpop.f32.mrf.mxu0
    %v5871 = vadd.f32 %v5115, %v5870
    %5872 = vmatmul.bf16.gmra.mxu0 %v5040
    %v5873 = vpop.f32.mrf.mxu0
    %v5874 = vadd.f32 %v5115, %v5873
    %v5875 = vpop.f32.mrf.mxu0
    %v5876 = vadd.f32 %v5115, %v5875
    %5877 = vmatmul.bf16.gmra.mxu0 %v5044
    %v5878 = vpop.f32.mrf.mxu0
    %v5879 = vadd.f32 %v5115, %v5878
    %v5880 = vpop.f32.mrf.mxu0
    %v5881 = vadd.f32 %v5115, %v5880
    %5882 = vdwg.mxu0
    %5883 = vmatpush.bf16.msra.mxu0 %v5341
    %5884 = vmatpush.bf16.msra.mxu0 %v5339
    %5885 = vmatpush.bf16.msra.mxu0 %v5337
    %5886 = vmatpush.bf16.msra.mxu0 %v5335
    %5887 = vmatpush.bf16.msra.mxu0 %v5333
    %5888 = vmatpush.bf16.msra.mxu0 %v5331
    %5889 = vmatpush.bf16.msra.mxu0 %v5329
    %5890 = vmatpush.bf16.msra.mxu0 %v5327
    %5891 = vmatmul.bf16.gmra.mxu0 %v4985
    %v5892 = vpop.f32.mrf.mxu0
    %v5893 = vadd.f32 %v5804, %v5892
    %v5894 = vpop.f32.mrf.mxu0
    %v5895 = vadd.f32 %v5806, %v5894
    %5896 = vmatmul.bf16.gmra.mxu0 %v4989
    %v5897 = vpop.f32.mrf.mxu0
    %v5898 = vadd.f32 %v5809, %v5897
    %v5899 = vpop.f32.mrf.mxu0
    %v5900 = vadd.f32 %v5811, %v5899
    %5901 = vmatmul.bf16.gmra.mxu0 %v4993
    %v5902 = vpop.f32.mrf.mxu0
    %v5903 = vadd.f32 %v5814, %v5902
    %v5904 = vpop.f32.mrf.mxu0
    %v5905 = vadd.f32 %v5816, %v5904
    %5906 = vmatmul.bf16.gmra.mxu0 %v4997
    %v5907 = vpop.f32.mrf.mxu0
    %v5908 = vadd.f32 %v5819, %v5907
    %v5909 = vpop.f32.mrf.mxu0
    %v5910 = vadd.f32 %v5821, %v5909
    %5911 = vmatmul.bf16.gmra.mxu0 %v5001
    %v5912 = vpop.f32.mrf.mxu0
    %v5913 = vadd.f32 %v5824, %v5912
    %v5914 = vpop.f32.mrf.mxu0
    %v5915 = vadd.f32 %v5826, %v5914
    %5916 = vmatmul.bf16.gmra.mxu0 %v5005
    %v5917 = vpop.f32.mrf.mxu0
    %v5918 = vadd.f32 %v5829, %v5917
    %v5919 = vpop.f32.mrf.mxu0
    %v5920 = vadd.f32 %v5831, %v5919
    %5921 = vmatmul.bf16.gmra.mxu0 %v5009
    %v5922 = vpop.f32.mrf.mxu0
    %v5923 = vadd.f32 %v5834, %v5922
    %v5924 = vpop.f32.mrf.mxu0
    %v5925 = vadd.f32 %v5836, %v5924
    %5926 = vmatmul.bf16.gmra.mxu0 %v5013
    %v5927 = vpop.f32.mrf.mxu0
    %v5928 = vadd.f32 %v5839, %v5927
    %v5929 = vpop.f32.mrf.mxu0
    %v5930 = vadd.f32 %v5841, %v5929
    %5931 = vmatmul.bf16.gmra.mxu0 %v5017
    %v5932 = vpop.f32.mrf.mxu0
    %v5933 = vadd.f32 %v5844, %v5932
    %v5934 = vpop.f32.mrf.mxu0
    %v5935 = vadd.f32 %v5846, %v5934
    %5936 = vmatmul.bf16.gmra.mxu0 %v5021
    %v5937 = vpop.f32.mrf.mxu0
    %v5938 = vadd.f32 %v5849, %v5937
    %v5939 = vpop.f32.mrf.mxu0
    %v5940 = vadd.f32 %v5851, %v5939
    %5941 = vmatmul.bf16.gmra.mxu0 %v5025
    %v5942 = vpop.f32.mrf.mxu0
    %v5943 = vadd.f32 %v5854, %v5942
    %v5944 = vpop.f32.mrf.mxu0
    %v5945 = vadd.f32 %v5856, %v5944
    %5946 = vmatmul.bf16.gmra.mxu0 %v5029
    %v5947 = vpop.f32.mrf.mxu0
    %v5948 = vadd.f32 %v5859, %v5947
    %v5949 = vpop.f32.mrf.mxu0
    %v5950 = vadd.f32 %v5861, %v5949
    %5951 = vmatmul.bf16.gmra.mxu0 %v5033
    %v5952 = vpop.f32.mrf.mxu0
    %v5953 = vadd.f32 %v5864, %v5952
    %v5954 = vpop.f32.mrf.mxu0
    %v5955 = vadd.f32 %v5866, %v5954
    %5956 = vmatmul.bf16.gmra.mxu0 %v5037
    %v5957 = vpop.f32.mrf.mxu0
    %v5958 = vadd.f32 %v5869, %v5957
    %v5959 = vpop.f32.mrf.mxu0
    %v5960 = vadd.f32 %v5871, %v5959
    %5961 = vmatmul.bf16.gmra.mxu0 %v5041
    %v5962 = vpop.f32.mrf.mxu0
    %v5963 = vadd.f32 %v5874, %v5962
    %v5964 = vpop.f32.mrf.mxu0
    %v5965 = vadd.f32 %v5876, %v5964
    %5966 = vmatmul.bf16.gmra.mxu0 %v5045
    %v5967 = vpop.f32.mrf.mxu0
    %v5968 = vadd.f32 %v5879, %v5967
    %v5969 = vpop.f32.mrf.mxu0
    %v5970 = vadd.f32 %v5881, %v5969
    %5971 = vdwg.mxu0
    %5972 = vmatpush.bf16.msra.mxu0 %v5357
    %5973 = vmatpush.bf16.msra.mxu0 %v5355
    %5974 = vmatpush.bf16.msra.mxu0 %v5353
    %5975 = vmatpush.bf16.msra.mxu0 %v5351
    %5976 = vmatpush.bf16.msra.mxu0 %v5349
    %5977 = vmatpush.bf16.msra.mxu0 %v5347
    %5978 = vmatpush.bf16.msra.mxu0 %v5345
    %5979 = vmatpush.bf16.msra.mxu0 %v5343
    %5980 = vmatmul.bf16.gmra.mxu0 %v4986
    %v5981 = vpop.f32.mrf.mxu0
    %v5982 = vadd.f32 %v5893, %v5981
    %v5983 = vpop.f32.mrf.mxu0
    %v5984 = vadd.f32 %v5895, %v5983
    %5985 = vmatmul.bf16.gmra.mxu0 %v4990
    %v5986 = vpop.f32.mrf.mxu0
    %v5987 = vadd.f32 %v5898, %v5986
    %v5988 = vpop.f32.mrf.mxu0
    %v5989 = vadd.f32 %v5900, %v5988
    %5990 = vmatmul.bf16.gmra.mxu0 %v4994
    %v5991 = vpop.f32.mrf.mxu0
    %v5992 = vadd.f32 %v5903, %v5991
    %v5993 = vpop.f32.mrf.mxu0
    %v5994 = vadd.f32 %v5905, %v5993
    %5995 = vmatmul.bf16.gmra.mxu0 %v4998
    %v5996 = vpop.f32.mrf.mxu0
    %v5997 = vadd.f32 %v5908, %v5996
    %v5998 = vpop.f32.mrf.mxu0
    %v5999 = vadd.f32 %v5910, %v5998
    %6000 = vmatmul.bf16.gmra.mxu0 %v5002
    %v6001 = vpop.f32.mrf.mxu0
    %v6002 = vadd.f32 %v5913, %v6001
    %v6003 = vpop.f32.mrf.mxu0
    %v6004 = vadd.f32 %v5915, %v6003
    %6005 = vmatmul.bf16.gmra.mxu0 %v5006
    %v6006 = vpop.f32.mrf.mxu0
    %v6007 = vadd.f32 %v5918, %v6006
    %v6008 = vpop.f32.mrf.mxu0
    %v6009 = vadd.f32 %v5920, %v6008
    %6010 = vmatmul.bf16.gmra.mxu0 %v5010
    %v6011 = vpop.f32.mrf.mxu0
    %v6012 = vadd.f32 %v5923, %v6011
    %v6013 = vpop.f32.mrf.mxu0
    %v6014 = vadd.f32 %v5925, %v6013
    %6015 = vmatmul.bf16.gmra.mxu0 %v5014
    %v6016 = vpop.f32.mrf.mxu0
    %v6017 = vadd.f32 %v5928, %v6016
    %v6018 = vpop.f32.mrf.mxu0
    %v6019 = vadd.f32 %v5930, %v6018
    %6020 = vmatmul.bf16.gmra.mxu0 %v5018
    %v6021 = vpop.f32.mrf.mxu0
    %v6022 = vadd.f32 %v5933, %v6021
    %v6023 = vpop.f32.mrf.mxu0
    %v6024 = vadd.f32 %v5935, %v6023
    %6025 = vmatmul.bf16.gmra.mxu0 %v5022
    %v6026 = vpop.f32.mrf.mxu0
    %v6027 = vadd.f32 %v5938, %v6026
    %v6028 = vpop.f32.mrf.mxu0
    %v6029 = vadd.f32 %v5940, %v6028
    %6030 = vmatmul.bf16.gmra.mxu0 %v5026
    %v6031 = vpop.f32.mrf.mxu0
    %v6032 = vadd.f32 %v5943, %v6031
    %v6033 = vpop.f32.mrf.mxu0
    %v6034 = vadd.f32 %v5945, %v6033
    %6035 = vmatmul.bf16.gmra.mxu0 %v5030
    %v6036 = vpop.f32.mrf.mxu0
    %v6037 = vadd.f32 %v5948, %v6036
    %v6038 = vpop.f32.mrf.mxu0
    %v6039 = vadd.f32 %v5950, %v6038
    %6040 = vmatmul.bf16.gmra.mxu0 %v5034
    %v6041 = vpop.f32.mrf.mxu0
    %v6042 = vadd.f32 %v5953, %v6041
    %v6043 = vpop.f32.mrf.mxu0
    %v6044 = vadd.f32 %v5955, %v6043
    %6045 = vmatmul.bf16.gmra.mxu0 %v5038
    %v6046 = vpop.f32.mrf.mxu0
    %v6047 = vadd.f32 %v5958, %v6046
    %v6048 = vpop.f32.mrf.mxu0
    %v6049 = vadd.f32 %v5960, %v6048
    %6050 = vmatmul.bf16.gmra.mxu0 %v5042
    %v6051 = vpop.f32.mrf.mxu0
    %v6052 = vadd.f32 %v5963, %v6051
    %v6053 = vpop.f32.mrf.mxu0
    %v6054 = vadd.f32 %v5965, %v6053
    %6055 = vmatmul.bf16.gmra.mxu0 %v5046
    %v6056 = vpop.f32.mrf.mxu0
    %v6057 = vadd.f32 %v5968, %v6056
    %v6058 = vpop.f32.mrf.mxu0
    %v6059 = vadd.f32 %v5970, %v6058
    %6060 = vdwg.mxu0
    %6061 = vmatpush.bf16.msra.mxu0 %v5373
    %6062 = vmatpush.bf16.msra.mxu0 %v5371
    %6063 = vmatpush.bf16.msra.mxu0 %v5369
    %6064 = vmatpush.bf16.msra.mxu0 %v5367
    %6065 = vmatpush.bf16.msra.mxu0 %v5365
    %6066 = vmatpush.bf16.msra.mxu0 %v5363
    %6067 = vmatpush.bf16.msra.mxu0 %v5361
    %6068 = vmatpush.bf16.msra.mxu0 %v5359
    %6069 = vmatmul.bf16.gmra.mxu0 %v4987
    %v6070 = vpop.f32.mrf.mxu0
    %v6071 = vadd.f32 %v5982, %v6070
    %v6072 = vpop.f32.mrf.mxu0
    %v6073 = vadd.f32 %v5984, %v6072
    %6074 = vmatmul.bf16.gmra.mxu0 %v4991
    %v6075 = vpop.f32.mrf.mxu0
    %v6076 = vadd.f32 %v5987, %v6075
    %v6077 = vpop.f32.mrf.mxu0
    %v6078 = vadd.f32 %v5989, %v6077
    %6079 = vmatmul.bf16.gmra.mxu0 %v4995
    %v6080 = vpop.f32.mrf.mxu0
    %v6081 = vadd.f32 %v5992, %v6080
    %v6082 = vpop.f32.mrf.mxu0
    %v6083 = vadd.f32 %v5994, %v6082
    %6084 = vmatmul.bf16.gmra.mxu0 %v4999
    %v6085 = vpop.f32.mrf.mxu0
    %v6086 = vadd.f32 %v5997, %v6085
    %v6087 = vpop.f32.mrf.mxu0
    %v6088 = vadd.f32 %v5999, %v6087
    %6089 = vmatmul.bf16.gmra.mxu0 %v5003
    %v6090 = vpop.f32.mrf.mxu0
    %v6091 = vadd.f32 %v6002, %v6090
    %v6092 = vpop.f32.mrf.mxu0
    %v6093 = vadd.f32 %v6004, %v6092
    %6094 = vmatmul.bf16.gmra.mxu0 %v5007
    %v6095 = vpop.f32.mrf.mxu0
    %v6096 = vadd.f32 %v6007, %v6095
    %v6097 = vpop.f32.mrf.mxu0
    %v6098 = vadd.f32 %v6009, %v6097
    %6099 = vmatmul.bf16.gmra.mxu0 %v5011
    %v6100 = vpop.f32.mrf.mxu0
    %v6101 = vadd.f32 %v6012, %v6100
    %v6102 = vpop.f32.mrf.mxu0
    %v6103 = vadd.f32 %v6014, %v6102
    %6104 = vmatmul.bf16.gmra.mxu0 %v5015
    %v6105 = vpop.f32.mrf.mxu0
    %v6106 = vadd.f32 %v6017, %v6105
    %v6107 = vpop.f32.mrf.mxu0
    %v6108 = vadd.f32 %v6019, %v6107
    %6109 = vmatmul.bf16.gmra.mxu0 %v5019
    %v6110 = vpop.f32.mrf.mxu0
    %v6111 = vadd.f32 %v6022, %v6110
    %v6112 = vpop.f32.mrf.mxu0
    %v6113 = vadd.f32 %v6024, %v6112
    %6114 = vmatmul.bf16.gmra.mxu0 %v5023
    %v6115 = vpop.f32.mrf.mxu0
    %v6116 = vadd.f32 %v6027, %v6115
    %v6117 = vpop.f32.mrf.mxu0
    %v6118 = vadd.f32 %v6029, %v6117
    %6119 = vmatmul.bf16.gmra.mxu0 %v5027
    %v6120 = vpop.f32.mrf.mxu0
    %v6121 = vadd.f32 %v6032, %v6120
    %v6122 = vpop.f32.mrf.mxu0
    %v6123 = vadd.f32 %v6034, %v6122
    %6124 = vmatmul.bf16.gmra.mxu0 %v5031
    %v6125 = vpop.f32.mrf.mxu0
    %v6126 = vadd.f32 %v6037, %v6125
    %v6127 = vpop.f32.mrf.mxu0
    %v6128 = vadd.f32 %v6039, %v6127
    %6129 = vmatmul.bf16.gmra.mxu0 %v5035
    %v6130 = vpop.f32.mrf.mxu0
    %v6131 = vadd.f32 %v6042, %v6130
    %v6132 = vpop.f32.mrf.mxu0
    %v6133 = vadd.f32 %v6044, %v6132
    %6134 = vmatmul.bf16.gmra.mxu0 %v5039
    %v6135 = vpop.f32.mrf.mxu0
    %v6136 = vadd.f32 %v6047, %v6135
    %v6137 = vpop.f32.mrf.mxu0
    %v6138 = vadd.f32 %v6049, %v6137
    %6139 = vmatmul.bf16.gmra.mxu0 %v5043
    %v6140 = vpop.f32.mrf.mxu0
    %v6141 = vadd.f32 %v6052, %v6140
    %v6142 = vpop.f32.mrf.mxu0
    %v6143 = vadd.f32 %v6054, %v6142
    %6144 = vmatmul.bf16.gmra.mxu0 %v5047
    %v6145 = vpop.f32.mrf.mxu0
    %v6146 = vadd.f32 %v6057, %v6145
    %v6147 = vpop.f32.mrf.mxu0
    %v6148 = vadd.f32 %v6059, %v6147
    %6149 = vdwg.mxu0
    %vm6150 = vcmp.gt.f32.partialorder %v5715, 0.0
    %vm6151 = vcmp.gt.f32.partialorder %v6071, 0.0
    %vm6152 = vcmp.gt.f32.partialorder %v5717, 0.0
    %vm6153 = vcmp.gt.f32.partialorder %v6073, 0.0
    %vm6154 = vcmp.gt.f32.partialorder %v5720, 0.0
    %vm6155 = vcmp.gt.f32.partialorder %v6076, 0.0
    %vm6156 = vcmp.gt.f32.partialorder %v5722, 0.0
    %vm6157 = vcmp.gt.f32.partialorder %v6078, 0.0
    %vm6158 = vcmp.gt.f32.partialorder %v5725, 0.0
    %vm6159 = vcmp.gt.f32.partialorder %v6081, 0.0
    %vm6160 = vcmp.gt.f32.partialorder %v5727, 0.0
    %vm6161 = vcmp.gt.f32.partialorder %v6083, 0.0
    %vm6162 = vcmp.gt.f32.partialorder %v5730, 0.0
    %vm6163 = vcmp.gt.f32.partialorder %v6086, 0.0
    %vm6164 = vcmp.gt.f32.partialorder %v5732, 0.0
    %vm6165 = vcmp.gt.f32.partialorder %v6088, 0.0
    %vm6166 = vcmp.gt.f32.partialorder %v5735, 0.0
    %vm6167 = vcmp.gt.f32.partialorder %v6091, 0.0
    %vm6168 = vcmp.gt.f32.partialorder %v5737, 0.0
    %vm6169 = vcmp.gt.f32.partialorder %v6093, 0.0
    %vm6170 = vcmp.gt.f32.partialorder %v5740, 0.0
    %vm6171 = vcmp.gt.f32.partialorder %v6096, 0.0
    %vm6172 = vcmp.gt.f32.partialorder %v5742, 0.0
    %vm6173 = vcmp.gt.f32.partialorder %v6098, 0.0
    %vm6174 = vcmp.gt.f32.partialorder %v5745, 0.0
    %vm6175 = vcmp.gt.f32.partialorder %v6101, 0.0
    %vm6176 = vcmp.gt.f32.partialorder %v5747, 0.0
    %vm6177 = vcmp.gt.f32.partialorder %v6103, 0.0
    %vm6178 = vcmp.gt.f32.partialorder %v5750, 0.0
    %vm6179 = vcmp.gt.f32.partialorder %v6106, 0.0
    %vm6180 = vcmp.gt.f32.partialorder %v5752, 0.0
    %vm6181 = vcmp.gt.f32.partialorder %v6108, 0.0
    %vm6182 = vcmp.gt.f32.partialorder %v5755, 0.0
    %vm6183 = vcmp.gt.f32.partialorder %v6111, 0.0
    %vm6184 = vcmp.gt.f32.partialorder %v5757, 0.0
    %vm6185 = vcmp.gt.f32.partialorder %v6113, 0.0
    %vm6186 = vcmp.gt.f32.partialorder %v5760, 0.0
    %vm6187 = vcmp.gt.f32.partialorder %v6116, 0.0
    %vm6188 = vcmp.gt.f32.partialorder %v5762, 0.0
    %vm6189 = vcmp.gt.f32.partialorder %v6118, 0.0
    %vm6190 = vcmp.gt.f32.partialorder %v5765, 0.0
    %vm6191 = vcmp.gt.f32.partialorder %v6121, 0.0
    %vm6192 = vcmp.gt.f32.partialorder %v5767, 0.0
    %vm6193 = vcmp.gt.f32.partialorder %v6123, 0.0
    %vm6194 = vcmp.gt.f32.partialorder %v5770, 0.0
    %vm6195 = vcmp.gt.f32.partialorder %v6126, 0.0
    %vm6196 = vcmp.gt.f32.partialorder %v5772, 0.0
    %vm6197 = vcmp.gt.f32.partialorder %v6128, 0.0
    %vm6198 = vcmp.gt.f32.partialorder %v5775, 0.0
    %vm6199 = vcmp.gt.f32.partialorder %v6131, 0.0
    %vm6200 = vcmp.gt.f32.partialorder %v5777, 0.0
    %vm6201 = vcmp.gt.f32.partialorder %v6133, 0.0
    %vm6202 = vcmp.gt.f32.partialorder %v5780, 0.0
    %vm6203 = vcmp.gt.f32.partialorder %v6136, 0.0
    %vm6204 = vcmp.gt.f32.partialorder %v5782, 0.0
    %vm6205 = vcmp.gt.f32.partialorder %v6138, 0.0
    %vm6206 = vcmp.gt.f32.partialorder %v5785, 0.0
    %vm6207 = vcmp.gt.f32.partialorder %v6141, 0.0
    %vm6208 = vcmp.gt.f32.partialorder %v5787, 0.0
    %vm6209 = vcmp.gt.f32.partialorder %v6143, 0.0
    %vm6210 = vcmp.gt.f32.partialorder %v5790, 0.0
    %vm6211 = vcmp.gt.f32.partialorder %v6146, 0.0
    %vm6212 = vcmp.gt.f32.partialorder %v5792, 0.0
    %vm6213 = vcmp.gt.f32.partialorder %v6148, 0.0
    %v6214 = vmul.f32 %v5715, 0.2
    %v6215 = vmul.f32 %v6071, 0.2
    %v6216 = vmul.f32 %v5717, 0.2
    %v6217 = vmul.f32 %v6073, 0.2
    %v6218 = vmul.f32 %v5720, 0.2
    %v6219 = vmul.f32 %v6076, 0.2
    %v6220 = vmul.f32 %v5722, 0.2
    %v6221 = vmul.f32 %v6078, 0.2
    %v6222 = vmul.f32 %v5725, 0.2
    %v6223 = vmul.f32 %v6081, 0.2
    %v6224 = vmul.f32 %v5727, 0.2
    %v6225 = vmul.f32 %v6083, 0.2
    %v6226 = vmul.f32 %v5730, 0.2
    %v6227 = vmul.f32 %v6086, 0.2
    %v6228 = vmul.f32 %v5732, 0.2
    %v6229 = vmul.f32 %v6088, 0.2
    %v6230 = vmul.f32 %v5735, 0.2
    %v6231 = vmul.f32 %v6091, 0.2
    %v6232 = vmul.f32 %v5737, 0.2
    %v6233 = vmul.f32 %v6093, 0.2
    %v6234 = vmul.f32 %v5740, 0.2
    %v6235 = vmul.f32 %v6096, 0.2
    %v6236 = vmul.f32 %v5742, 0.2
    %v6237 = vmul.f32 %v6098, 0.2
    %v6238 = vmul.f32 %v5745, 0.2
    %v6239 = vmul.f32 %v6101, 0.2
    %v6240 = vmul.f32 %v5747, 0.2
    %v6241 = vmul.f32 %v6103, 0.2
    %v6242 = vmul.f32 %v5750, 0.2
    %v6243 = vmul.f32 %v6106, 0.2
    %v6244 = vmul.f32 %v5752, 0.2
    %v6245 = vmul.f32 %v6108, 0.2
    %v6246 = vmul.f32 %v5755, 0.2
    %v6247 = vmul.f32 %v6111, 0.2
    %v6248 = vmul.f32 %v5757, 0.2
    %v6249 = vmul.f32 %v6113, 0.2
    %v6250 = vmul.f32 %v5760, 0.2
    %v6251 = vmul.f32 %v6116, 0.2
    %v6252 = vmul.f32 %v5762, 0.2
    %v6253 = vmul.f32 %v6118, 0.2
    %v6254 = vmul.f32 %v5765, 0.2
    %v6255 = vmul.f32 %v6121, 0.2
    %v6256 = vmul.f32 %v5767, 0.2
    %v6257 = vmul.f32 %v6123, 0.2
    %v6258 = vmul.f32 %v5770, 0.2
    %v6259 = vmul.f32 %v6126, 0.2
    %v6260 = vmul.f32 %v5772, 0.2
    %v6261 = vmul.f32 %v6128, 0.2
    %v6262 = vmul.f32 %v5775, 0.2
    %v6263 = vmul.f32 %v6131, 0.2
    %v6264 = vmul.f32 %v5777, 0.2
    %v6265 = vmul.f32 %v6133, 0.2
    %v6266 = vmul.f32 %v5780, 0.2
    %v6267 = vmul.f32 %v6136, 0.2
    %v6268 = vmul.f32 %v5782, 0.2
    %v6269 = vmul.f32 %v6138, 0.2
    %v6270 = vmul.f32 %v5785, 0.2
    %v6271 = vmul.f32 %v6141, 0.2
    %v6272 = vmul.f32 %v5787, 0.2
    %v6273 = vmul.f32 %v6143, 0.2
    %v6274 = vmul.f32 %v5790, 0.2
    %v6275 = vmul.f32 %v6146, 0.2
    %v6276 = vmul.f32 %v5792, 0.2
    %v6277 = vmul.f32 %v6148, 0.2
    %v6278 = vsel %vm6150, %v5715, %v6214
    %v6279 = vsel %vm6151, %v6071, %v6215
    %v6280 = vsel %vm6152, %v5717, %v6216
    %v6281 = vsel %vm6153, %v6073, %v6217
    %v6282 = vsel %vm6154, %v5720, %v6218
    %v6283 = vsel %vm6155, %v6076, %v6219
    %v6284 = vsel %vm6156, %v5722, %v6220
    %v6285 = vsel %vm6157, %v6078, %v6221
    %v6286 = vsel %vm6158, %v5725, %v6222
    %v6287 = vsel %vm6159, %v6081, %v6223
    %v6288 = vsel %vm6160, %v5727, %v6224
    %v6289 = vsel %vm6161, %v6083, %v6225
    %v6290 = vsel %vm6162, %v5730, %v6226
    %v6291 = vsel %vm6163, %v6086, %v6227
    %v6292 = vsel %vm6164, %v5732, %v6228
    %v6293 = vsel %vm6165, %v6088, %v6229
    %v6294 = vsel %vm6166, %v5735, %v6230
    %v6295 = vsel %vm6167, %v6091, %v6231
    %v6296 = vsel %vm6168, %v5737, %v6232
    %v6297 = vsel %vm6169, %v6093, %v6233
    %v6298 = vsel %vm6170, %v5740, %v6234
    %v6299 = vsel %vm6171, %v6096, %v6235
    %v6300 = vsel %vm6172, %v5742, %v6236
    %v6301 = vsel %vm6173, %v6098, %v6237
    %v6302 = vsel %vm6174, %v5745, %v6238
    %v6303 = vsel %vm6175, %v6101, %v6239
    %v6304 = vsel %vm6176, %v5747, %v6240
    %v6305 = vsel %vm6177, %v6103, %v6241
    %v6306 = vsel %vm6178, %v5750, %v6242
    %v6307 = vsel %vm6179, %v6106, %v6243
    %v6308 = vsel %vm6180, %v5752, %v6244
    %v6309 = vsel %vm6181, %v6108, %v6245
    %v6310 = vsel %vm6182, %v5755, %v6246
    %v6311 = vsel %vm6183, %v6111, %v6247
    %v6312 = vsel %vm6184, %v5757, %v6248
    %v6313 = vsel %vm6185, %v6113, %v6249
    %v6314 = vsel %vm6186, %v5760, %v6250
    %v6315 = vsel %vm6187, %v6116, %v6251
    %v6316 = vsel %vm6188, %v5762, %v6252
    %v6317 = vsel %vm6189, %v6118, %v6253
    %v6318 = vsel %vm6190, %v5765, %v6254
    %v6319 = vsel %vm6191, %v6121, %v6255
    %v6320 = vsel %vm6192, %v5767, %v6256
    %v6321 = vsel %vm6193, %v6123, %v6257
    %v6322 = vsel %vm6194, %v5770, %v6258
    %v6323 = vsel %vm6195, %v6126, %v6259
    %v6324 = vsel %vm6196, %v5772, %v6260
    %v6325 = vsel %vm6197, %v6128, %v6261
    %v6326 = vsel %vm6198, %v5775, %v6262
    %v6327 = vsel %vm6199, %v6131, %v6263
    %v6328 = vsel %vm6200, %v5777, %v6264
    %v6329 = vsel %vm6201, %v6133, %v6265
    %v6330 = vsel %vm6202, %v5780, %v6266
    %v6331 = vsel %vm6203, %v6136, %v6267
    %v6332 = vsel %vm6204, %v5782, %v6268
    %v6333 = vsel %vm6205, %v6138, %v6269
    %v6334 = vsel %vm6206, %v5785, %v6270
    %v6335 = vsel %vm6207, %v6141, %v6271
    %v6336 = vsel %vm6208, %v5787, %v6272
    %v6337 = vsel %vm6209, %v6143, %v6273
    %v6338 = vsel %vm6210, %v5790, %v6274
    %v6339 = vsel %vm6211, %v6146, %v6275
    %v6340 = vsel %vm6212, %v5792, %v6276
    %v6341 = vsel %vm6213, %v6148, %v6277
    %v6342 = vpack.c.bf16 %v6280, %v6278
    %v6343 = vpack.c.bf16 %v6281, %v6279
    %v6344 = vpack.c.bf16 %v6284, %v6282
    %v6345 = vpack.c.bf16 %v6285, %v6283
    %v6346 = vpack.c.bf16 %v6288, %v6286
    %v6347 = vpack.c.bf16 %v6289, %v6287
    %v6348 = vpack.c.bf16 %v6292, %v6290
    %v6349 = vpack.c.bf16 %v6293, %v6291
    %v6350 = vpack.c.bf16 %v6296, %v6294
    %v6351 = vpack.c.bf16 %v6297, %v6295
    %v6352 = vpack.c.bf16 %v6300, %v6298
    %v6353 = vpack.c.bf16 %v6301, %v6299
    %v6354 = vpack.c.bf16 %v6304, %v6302
    %v6355 = vpack.c.bf16 %v6305, %v6303
    %v6356 = vpack.c.bf16 %v6308, %v6306
    %v6357 = vpack.c.bf16 %v6309, %v6307
    %v6358 = vpack.c.bf16 %v6312, %v6310
    %v6359 = vpack.c.bf16 %v6313, %v6311
    %v6360 = vpack.c.bf16 %v6316, %v6314
    %v6361 = vpack.c.bf16 %v6317, %v6315
    %v6362 = vpack.c.bf16 %v6320, %v6318
    %v6363 = vpack.c.bf16 %v6321, %v6319
    %v6364 = vpack.c.bf16 %v6324, %v6322
    %v6365 = vpack.c.bf16 %v6325, %v6323
    %v6366 = vpack.c.bf16 %v6328, %v6326
    %v6367 = vpack.c.bf16 %v6329, %v6327
    %v6368 = vpack.c.bf16 %v6332, %v6330
    %v6369 = vpack.c.bf16 %v6333, %v6331
    %v6370 = vpack.c.bf16 %v6336, %v6334
    %v6371 = vpack.c.bf16 %v6337, %v6335
    %v6372 = vpack.c.bf16 %v6340, %v6338
    %v6373 = vpack.c.bf16 %v6341, %v6339
    %v6374 = vld [vmem:[%s5] sm:$0xf]
    %v6375 = vld [vmem:[%s5 + $0x4] sm:$0xf]
    %v6376 = vld [vmem:[%s5 + $0x8] sm:$0xf]
    %v6377 = vld [vmem:[%s5 + $0xc] sm:$0xf]
    %v6378 = vld [vmem:[%s5 + $0x10] sm:$0xf]
    %v6379 = vld [vmem:[%s5 + $0x14] sm:$0xf]
    %v6380 = vld [vmem:[%s5 + $0x18] sm:$0xf]
    %v6381 = vld [vmem:[%s5 + $0x1c] sm:$0xf]
    %v6382 = vld [vmem:[%s5 + $0x20] sm:$0xf]
    %v6383 = vld [vmem:[%s5 + $0x24] sm:$0xf]
    %v6384 = vld [vmem:[%s5 + $0x28] sm:$0xf]
    %v6385 = vld [vmem:[%s5 + $0x2c] sm:$0xf]
    %v6386 = vld [vmem:[%s5 + $0x30] sm:$0xf]
    %v6387 = vld [vmem:[%s5 + $0x34] sm:$0xf]
    %v6388 = vld [vmem:[%s5 + $0x38] sm:$0xf]
    %v6389 = vld [vmem:[%s5 + $0x3c] sm:$0xf]
    %v6390 = vld [vmem:[%s5 + $0x40] sm:$0xf]
    %v6391 = vld [vmem:[%s5 + $0x44] sm:$0xf]
    %v6392 = vld [vmem:[%s5 + $0x48] sm:$0xf]
    %v6393 = vld [vmem:[%s5 + $0x4c] sm:$0xf]
    %v6394 = vld [vmem:[%s5 + $0x50] sm:$0xf]
    %v6395 = vld [vmem:[%s5 + $0x54] sm:$0xf]
    %v6396 = vld [vmem:[%s5 + $0x58] sm:$0xf]
    %v6397 = vld [vmem:[%s5 + $0x5c] sm:$0xf]
    %v6398 = vld [vmem:[%s5 + $0x60] sm:$0xf]
    %v6399 = vld [vmem:[%s5 + $0x64] sm:$0xf]
    %v6400 = vld [vmem:[%s5 + $0x68] sm:$0xf]
    %v6401 = vld [vmem:[%s5 + $0x6c] sm:$0xf]
    %v6402 = vld [vmem:[%s5 + $0x70] sm:$0xf]
    %v6403 = vld [vmem:[%s5 + $0x74] sm:$0xf]
    %v6404 = vld [vmem:[%s5 + $0x78] sm:$0xf]
    %v6405 = vld [vmem:[%s5 + $0x7c] sm:$0xf]
    %v6406 = vld [vmem:[%s6] sm:$0x1]
    %v6408 = vperm.slane %v6406, 0
    %v6442 = vunpack.c.l.b16 %v6374
    %v6443 = vunpack.c.l.b16 %v6375
    %v6444 = vunpack.c.l.b16 %v6376
    %v6445 = vunpack.c.l.b16 %v6377
    %v6446 = vunpack.c.l.b16 %v6378
    %v6447 = vunpack.c.l.b16 %v6379
    %v6448 = vunpack.c.l.b16 %v6380
    %v6449 = vunpack.c.l.b16 %v6381
    %v6450 = vunpack.c.l.b16 %v6382
    %v6451 = vunpack.c.l.b16 %v6383
    %v6452 = vunpack.c.l.b16 %v6384
    %v6453 = vunpack.c.l.b16 %v6385
    %v6454 = vunpack.c.l.b16 %v6386
    %v6455 = vunpack.c.l.b16 %v6387
    %v6456 = vunpack.c.l.b16 %v6388
    %v6457 = vunpack.c.l.b16 %v6389
    %v6458 = vunpack.c.l.b16 %v6390
    %v6459 = vunpack.c.l.b16 %v6391
    %v6460 = vunpack.c.l.b16 %v6392
    %v6461 = vunpack.c.l.b16 %v6393
    %v6462 = vunpack.c.l.b16 %v6394
    %v6463 = vunpack.c.l.b16 %v6395
    %v6464 = vunpack.c.l.b16 %v6396
    %v6465 = vunpack.c.l.b16 %v6397
    %v6466 = vunpack.c.l.b16 %v6398
    %v6467 = vunpack.c.l.b16 %v6399
    %v6468 = vunpack.c.l.b16 %v6400
    %v6469 = vunpack.c.l.b16 %v6401
    %v6470 = vunpack.c.l.b16 %v6402
    %v6471 = vunpack.c.l.b16 %v6403
    %v6472 = vunpack.c.l.b16 %v6404
    %v6473 = vunpack.c.l.b16 %v6405
    %v6474 = vpack.c.b16 %v6443, %v6442
    %v6475 = vpack.c.b16 %v6445, %v6444
    %v6476 = vpack.c.b16 %v6447, %v6446
    %v6477 = vpack.c.b16 %v6449, %v6448
    %v6478 = vpack.c.b16 %v6451, %v6450
    %v6479 = vpack.c.b16 %v6453, %v6452
    %v6480 = vpack.c.b16 %v6455, %v6454
    %v6481 = vpack.c.b16 %v6457, %v6456
    %v6482 = vpack.c.b16 %v6459, %v6458
    %v6483 = vpack.c.b16 %v6461, %v6460
    %v6484 = vpack.c.b16 %v6463, %v6462
    %v6485 = vpack.c.b16 %v6465, %v6464
    %v6486 = vpack.c.b16 %v6467, %v6466
    %v6487 = vpack.c.b16 %v6469, %v6468
    %v6488 = vpack.c.b16 %v6471, %v6470
    %v6489 = vpack.c.b16 %v6473, %v6472
    %6506 = vmatpush.bf16.msra.mxu0 %v6481
    %6507 = vmatpush.bf16.msra.mxu0 %v6480
    %6508 = vmatpush.bf16.msra.mxu0 %v6479
    %6509 = vmatpush.bf16.msra.mxu0 %v6478
    %6510 = vmatpush.bf16.msra.mxu0 %v6477
    %6511 = vmatpush.bf16.msra.mxu0 %v6476
    %6512 = vmatpush.bf16.msra.mxu0 %v6475
    %6513 = vmatpush.bf16.msra.mxu0 %v6474
    %6514 = vmatmul.bf16.gmra.mxu0 %v6342
    %v6515 = vpop.f32.mrf.mxu0
    %v6516 = vadd.f32 %v6408, %v6515
    %v6517 = vpop.f32.mrf.mxu0
    %v6518 = vadd.f32 %v6408, %v6517
    %6519 = vmatmul.bf16.gmra.mxu0 %v6344
    %v6520 = vpop.f32.mrf.mxu0
    %v6521 = vadd.f32 %v6408, %v6520
    %v6522 = vpop.f32.mrf.mxu0
    %v6523 = vadd.f32 %v6408, %v6522
    %6524 = vmatmul.bf16.gmra.mxu0 %v6346
    %v6525 = vpop.f32.mrf.mxu0
    %v6526 = vadd.f32 %v6408, %v6525
    %v6527 = vpop.f32.mrf.mxu0
    %v6528 = vadd.f32 %v6408, %v6527
    %6529 = vmatmul.bf16.gmra.mxu0 %v6348
    %v6530 = vpop.f32.mrf.mxu0
    %v6531 = vadd.f32 %v6408, %v6530
    %v6532 = vpop.f32.mrf.mxu0
    %v6533 = vadd.f32 %v6408, %v6532
    %6534 = vmatmul.bf16.gmra.mxu0 %v6350
    %v6535 = vpop.f32.mrf.mxu0
    %v6536 = vadd.f32 %v6408, %v6535
    %v6537 = vpop.f32.mrf.mxu0
    %v6538 = vadd.f32 %v6408, %v6537
    %6539 = vmatmul.bf16.gmra.mxu0 %v6352
    %v6540 = vpop.f32.mrf.mxu0
    %v6541 = vadd.f32 %v6408, %v6540
    %v6542 = vpop.f32.mrf.mxu0
    %v6543 = vadd.f32 %v6408, %v6542
    %6544 = vmatmul.bf16.gmra.mxu0 %v6354
    %v6545 = vpop.f32.mrf.mxu0
    %v6546 = vadd.f32 %v6408, %v6545
    %v6547 = vpop.f32.mrf.mxu0
    %v6548 = vadd.f32 %v6408, %v6547
    %6549 = vmatmul.bf16.gmra.mxu0 %v6356
    %v6550 = vpop.f32.mrf.mxu0
    %v6551 = vadd.f32 %v6408, %v6550
    %v6552 = vpop.f32.mrf.mxu0
    %v6553 = vadd.f32 %v6408, %v6552
    %6554 = vmatmul.bf16.gmra.mxu0 %v6358
    %v6555 = vpop.f32.mrf.mxu0
    %v6556 = vadd.f32 %v6408, %v6555
    %v6557 = vpop.f32.mrf.mxu0
    %v6558 = vadd.f32 %v6408, %v6557
    %6559 = vmatmul.bf16.gmra.mxu0 %v6360
    %v6560 = vpop.f32.mrf.mxu0
    %v6561 = vadd.f32 %v6408, %v6560
    %v6562 = vpop.f32.mrf.mxu0
    %v6563 = vadd.f32 %v6408, %v6562
    %6564 = vmatmul.bf16.gmra.mxu0 %v6362
    %v6565 = vpop.f32.mrf.mxu0
    %v6566 = vadd.f32 %v6408, %v6565
    %v6567 = vpop.f32.mrf.mxu0
    %v6568 = vadd.f32 %v6408, %v6567
    %6569 = vmatmul.bf16.gmra.mxu0 %v6364
    %v6570 = vpop.f32.mrf.mxu0
    %v6571 = vadd.f32 %v6408, %v6570
    %v6572 = vpop.f32.mrf.mxu0
    %v6573 = vadd.f32 %v6408, %v6572
    %6574 = vmatmul.bf16.gmra.mxu0 %v6366
    %v6575 = vpop.f32.mrf.mxu0
    %v6576 = vadd.f32 %v6408, %v6575
    %v6577 = vpop.f32.mrf.mxu0
    %v6578 = vadd.f32 %v6408, %v6577
    %6579 = vmatmul.bf16.gmra.mxu0 %v6368
    %v6580 = vpop.f32.mrf.mxu0
    %v6581 = vadd.f32 %v6408, %v6580
    %v6582 = vpop.f32.mrf.mxu0
    %v6583 = vadd.f32 %v6408, %v6582
    %6584 = vmatmul.bf16.gmra.mxu0 %v6370
    %v6585 = vpop.f32.mrf.mxu0
    %v6586 = vadd.f32 %v6408, %v6585
    %v6587 = vpop.f32.mrf.mxu0
    %v6588 = vadd.f32 %v6408, %v6587
    %6589 = vmatmul.bf16.gmra.mxu0 %v6372
    %v6590 = vpop.f32.mrf.mxu0
    %v6591 = vadd.f32 %v6408, %v6590
    %v6592 = vpop.f32.mrf.mxu0
    %v6593 = vadd.f32 %v6408, %v6592
    %6594 = vdwg.mxu0
    %6595 = vmatpush.bf16.msra.mxu0 %v6489
    %6596 = vmatpush.bf16.msra.mxu0 %v6488
    %6597 = vmatpush.bf16.msra.mxu0 %v6487
    %6598 = vmatpush.bf16.msra.mxu0 %v6486
    %6599 = vmatpush.bf16.msra.mxu0 %v6485
    %6600 = vmatpush.bf16.msra.mxu0 %v6484
    %6601 = vmatpush.bf16.msra.mxu0 %v6483
    %6602 = vmatpush.bf16.msra.mxu0 %v6482
    %6603 = vmatmul.bf16.gmra.mxu0 %v6343
    %v6604 = vpop.f32.mrf.mxu0
    %v6605 = vadd.f32 %v6516, %v6604
    %v6606 = vpop.f32.mrf.mxu0
    %v6607 = vadd.f32 %v6518, %v6606
    %6608 = vmatmul.bf16.gmra.mxu0 %v6345
    %v6609 = vpop.f32.mrf.mxu0
    %v6610 = vadd.f32 %v6521, %v6609
    %v6611 = vpop.f32.mrf.mxu0
    %v6612 = vadd.f32 %v6523, %v6611
    %6613 = vmatmul.bf16.gmra.mxu0 %v6347
    %v6614 = vpop.f32.mrf.mxu0
    %v6615 = vadd.f32 %v6526, %v6614
    %v6616 = vpop.f32.mrf.mxu0
    %v6617 = vadd.f32 %v6528, %v6616
    %6618 = vmatmul.bf16.gmra.mxu0 %v6349
    %v6619 = vpop.f32.mrf.mxu0
    %v6620 = vadd.f32 %v6531, %v6619
    %v6621 = vpop.f32.mrf.mxu0
    %v6622 = vadd.f32 %v6533, %v6621
    %6623 = vmatmul.bf16.gmra.mxu0 %v6351
    %v6624 = vpop.f32.mrf.mxu0
    %v6625 = vadd.f32 %v6536, %v6624
    %v6626 = vpop.f32.mrf.mxu0
    %v6627 = vadd.f32 %v6538, %v6626
    %6628 = vmatmul.bf16.gmra.mxu0 %v6353
    %v6629 = vpop.f32.mrf.mxu0
    %v6630 = vadd.f32 %v6541, %v6629
    %v6631 = vpop.f32.mrf.mxu0
    %v6632 = vadd.f32 %v6543, %v6631
    %6633 = vmatmul.bf16.gmra.mxu0 %v6355
    %v6634 = vpop.f32.mrf.mxu0
    %v6635 = vadd.f32 %v6546, %v6634
    %v6636 = vpop.f32.mrf.mxu0
    %v6637 = vadd.f32 %v6548, %v6636
    %6638 = vmatmul.bf16.gmra.mxu0 %v6357
    %v6639 = vpop.f32.mrf.mxu0
    %v6640 = vadd.f32 %v6551, %v6639
    %v6641 = vpop.f32.mrf.mxu0
    %v6642 = vadd.f32 %v6553, %v6641
    %6643 = vmatmul.bf16.gmra.mxu0 %v6359
    %v6644 = vpop.f32.mrf.mxu0
    %v6645 = vadd.f32 %v6556, %v6644
    %v6646 = vpop.f32.mrf.mxu0
    %v6647 = vadd.f32 %v6558, %v6646
    %6648 = vmatmul.bf16.gmra.mxu0 %v6361
    %v6649 = vpop.f32.mrf.mxu0
    %v6650 = vadd.f32 %v6561, %v6649
    %v6651 = vpop.f32.mrf.mxu0
    %v6652 = vadd.f32 %v6563, %v6651
    %6653 = vmatmul.bf16.gmra.mxu0 %v6363
    %v6654 = vpop.f32.mrf.mxu0
    %v6655 = vadd.f32 %v6566, %v6654
    %v6656 = vpop.f32.mrf.mxu0
    %v6657 = vadd.f32 %v6568, %v6656
    %6658 = vmatmul.bf16.gmra.mxu0 %v6365
    %v6659 = vpop.f32.mrf.mxu0
    %v6660 = vadd.f32 %v6571, %v6659
    %v6661 = vpop.f32.mrf.mxu0
    %v6662 = vadd.f32 %v6573, %v6661
    %6663 = vmatmul.bf16.gmra.mxu0 %v6367
    %v6664 = vpop.f32.mrf.mxu0
    %v6665 = vadd.f32 %v6576, %v6664
    %v6666 = vpop.f32.mrf.mxu0
    %v6667 = vadd.f32 %v6578, %v6666
    %6668 = vmatmul.bf16.gmra.mxu0 %v6369
    %v6669 = vpop.f32.mrf.mxu0
    %v6670 = vadd.f32 %v6581, %v6669
    %v6671 = vpop.f32.mrf.mxu0
    %v6672 = vadd.f32 %v6583, %v6671
    %6673 = vmatmul.bf16.gmra.mxu0 %v6371
    %v6674 = vpop.f32.mrf.mxu0
    %v6675 = vadd.f32 %v6586, %v6674
    %v6676 = vpop.f32.mrf.mxu0
    %v6677 = vadd.f32 %v6588, %v6676
    %6678 = vmatmul.bf16.gmra.mxu0 %v6373
    %v6679 = vpop.f32.mrf.mxu0
    %v6680 = vadd.f32 %v6591, %v6679
    %v6681 = vpop.f32.mrf.mxu0
    %v6682 = vadd.f32 %v6593, %v6681
    %6683 = vdwg.mxu0
    %vm6684 = vcmp.gt.f32.partialorder %v6605, 0.0
    %vm6685 = vcmp.gt.f32.partialorder %v6607, 0.0
    %vm6686 = vcmp.gt.f32.partialorder %v6610, 0.0
    %vm6687 = vcmp.gt.f32.partialorder %v6612, 0.0
    %vm6688 = vcmp.gt.f32.partialorder %v6615, 0.0
    %vm6689 = vcmp.gt.f32.partialorder %v6617, 0.0
    %vm6690 = vcmp.gt.f32.partialorder %v6620, 0.0
    %vm6691 = vcmp.gt.f32.partialorder %v6622, 0.0
    %vm6692 = vcmp.gt.f32.partialorder %v6625, 0.0
    %vm6693 = vcmp.gt.f32.partialorder %v6627, 0.0
    %vm6694 = vcmp.gt.f32.partialorder %v6630, 0.0
    %vm6695 = vcmp.gt.f32.partialorder %v6632, 0.0
    %vm6696 = vcmp.gt.f32.partialorder %v6635, 0.0
    %vm6697 = vcmp.gt.f32.partialorder %v6637, 0.0
    %vm6698 = vcmp.gt.f32.partialorder %v6640, 0.0
    %vm6699 = vcmp.gt.f32.partialorder %v6642, 0.0
    %vm6700 = vcmp.gt.f32.partialorder %v6645, 0.0
    %vm6701 = vcmp.gt.f32.partialorder %v6647, 0.0
    %vm6702 = vcmp.gt.f32.partialorder %v6650, 0.0
    %vm6703 = vcmp.gt.f32.partialorder %v6652, 0.0
    %vm6704 = vcmp.gt.f32.partialorder %v6655, 0.0
    %vm6705 = vcmp.gt.f32.partialorder %v6657, 0.0
    %vm6706 = vcmp.gt.f32.partialorder %v6660, 0.0
    %vm6707 = vcmp.gt.f32.partialorder %v6662, 0.0
    %vm6708 = vcmp.gt.f32.partialorder %v6665, 0.0
    %vm6709 = vcmp.gt.f32.partialorder %v6667, 0.0
    %vm6710 = vcmp.gt.f32.partialorder %v6670, 0.0
    %vm6711 = vcmp.gt.f32.partialorder %v6672, 0.0
    %vm6712 = vcmp.gt.f32.partialorder %v6675, 0.0
    %vm6713 = vcmp.gt.f32.partialorder %v6677, 0.0
    %vm6714 = vcmp.gt.f32.partialorder %v6680, 0.0
    %vm6715 = vcmp.gt.f32.partialorder %v6682, 0.0
    %v6716 = vmul.f32 %v6605, 0.2
    %v6717 = vmul.f32 %v6607, 0.2
    %v6718 = vmul.f32 %v6610, 0.2
    %v6719 = vmul.f32 %v6612, 0.2
    %v6720 = vmul.f32 %v6615, 0.2
    %v6721 = vmul.f32 %v6617, 0.2
    %v6722 = vmul.f32 %v6620, 0.2
    %v6723 = vmul.f32 %v6622, 0.2
    %v6724 = vmul.f32 %v6625, 0.2
    %v6725 = vmul.f32 %v6627, 0.2
    %v6726 = vmul.f32 %v6630, 0.2
    %v6727 = vmul.f32 %v6632, 0.2
    %v6728 = vmul.f32 %v6635, 0.2
    %v6729 = vmul.f32 %v6637, 0.2
    %v6730 = vmul.f32 %v6640, 0.2
    %v6731 = vmul.f32 %v6642, 0.2
    %v6732 = vmul.f32 %v6645, 0.2
    %v6733 = vmul.f32 %v6647, 0.2
    %v6734 = vmul.f32 %v6650, 0.2
    %v6735 = vmul.f32 %v6652, 0.2
    %v6736 = vmul.f32 %v6655, 0.2
    %v6737 = vmul.f32 %v6657, 0.2
    %v6738 = vmul.f32 %v6660, 0.2
    %v6739 = vmul.f32 %v6662, 0.2
    %v6740 = vmul.f32 %v6665, 0.2
    %v6741 = vmul.f32 %v6667, 0.2
    %v6742 = vmul.f32 %v6670, 0.2
    %v6743 = vmul.f32 %v6672, 0.2
    %v6744 = vmul.f32 %v6675, 0.2
    %v6745 = vmul.f32 %v6677, 0.2
    %v6746 = vmul.f32 %v6680, 0.2
    %v6747 = vmul.f32 %v6682, 0.2
    %v6748 = vsel %vm6684, %v6605, %v6716
    %v6749 = vsel %vm6685, %v6607, %v6717
    %v6750 = vsel %vm6686, %v6610, %v6718
    %v6751 = vsel %vm6687, %v6612, %v6719
    %v6752 = vsel %vm6688, %v6615, %v6720
    %v6753 = vsel %vm6689, %v6617, %v6721
    %v6754 = vsel %vm6690, %v6620, %v6722
    %v6755 = vsel %vm6691, %v6622, %v6723
    %v6756 = vsel %vm6692, %v6625, %v6724
    %v6757 = vsel %vm6693, %v6627, %v6725
    %v6758 = vsel %vm6694, %v6630, %v6726
    %v6759 = vsel %vm6695, %v6632, %v6727
    %v6760 = vsel %vm6696, %v6635, %v6728
    %v6761 = vsel %vm6697, %v6637, %v6729
    %v6762 = vsel %vm6698, %v6640, %v6730
    %v6763 = vsel %vm6699, %v6642, %v6731
    %v6764 = vsel %vm6700, %v6645, %v6732
    %v6765 = vsel %vm6701, %v6647, %v6733
    %v6766 = vsel %vm6702, %v6650, %v6734
    %v6767 = vsel %vm6703, %v6652, %v6735
    %v6768 = vsel %vm6704, %v6655, %v6736
    %v6769 = vsel %vm6705, %v6657, %v6737
    %v6770 = vsel %vm6706, %v6660, %v6738
    %v6771 = vsel %vm6707, %v6662, %v6739
    %v6772 = vsel %vm6708, %v6665, %v6740
    %v6773 = vsel %vm6709, %v6667, %v6741
    %v6774 = vsel %vm6710, %v6670, %v6742
    %v6775 = vsel %vm6711, %v6672, %v6743
    %v6776 = vsel %vm6712, %v6675, %v6744
    %v6777 = vsel %vm6713, %v6677, %v6745
    %v6778 = vsel %vm6714, %v6680, %v6746
    %v6779 = vsel %vm6715, %v6682, %v6747
    %6780 = vxpose.xlu0.b32.start [1/16] %v6748, 128
    %6781 = vxpose.xlu0.b32.cont [2/16] %v6749, 128
    %6782 = vxpose.xlu0.b32.cont [3/16] %v6750, 128
    %6783 = vxpose.xlu0.b32.cont [4/16] %v6751, 128
    %6784 = vxpose.xlu0.b32.cont [5/16] %v6752, 128
    %6785 = vxpose.xlu0.b32.cont [6/16] %v6753, 128
    %6786 = vxpose.xlu0.b32.cont [7/16] %v6754, 128
    %6787 = vxpose.xlu0.b32.cont [8/16] %v6755, 128
    %6788 = vxpose.xlu0.b32.cont [9/16] %v6756, 128
    %6789 = vxpose.xlu0.b32.cont [10/16] %v6757, 128
    %6790 = vxpose.xlu0.b32.cont [11/16] %v6758, 128
    %6791 = vxpose.xlu0.b32.cont [12/16] %v6759, 128
    %6792 = vxpose.xlu0.b32.cont [13/16] %v6760, 128
    %6793 = vxpose.xlu0.b32.cont [14/16] %v6761, 128
    %6794 = vxpose.xlu0.b32.cont [15/16] %v6762, 128
    %6795 = vxpose.xlu0.b32.end [16/16] %v6763, 128
    %v6796 = vpop.trf.xlu0
    %v6797 = vpop.trf.xlu0
    %v6798 = vpop.trf.xlu0
    %v6799 = vpop.trf.xlu0
    %v6800 = vpop.trf.xlu0
    %v6801 = vpop.trf.xlu0
    %v6802 = vpop.trf.xlu0
    %v6803 = vpop.trf.xlu0
    %v6804 = vpop.trf.xlu0
    %v6805 = vpop.trf.xlu0
    %v6806 = vpop.trf.xlu0
    %v6807 = vpop.trf.xlu0
    %v6808 = vpop.trf.xlu0
    %v6809 = vpop.trf.xlu0
    %v6810 = vpop.trf.xlu0
    %v6811 = vpop.trf.xlu0
    %6812 = vxpose.xlu0.b32.start [1/16] %v6764, 128
    %6813 = vxpose.xlu0.b32.cont [2/16] %v6765, 128
    %6814 = vxpose.xlu0.b32.cont [3/16] %v6766, 128
    %6815 = vxpose.xlu0.b32.cont [4/16] %v6767, 128
    %6816 = vxpose.xlu0.b32.cont [5/16] %v6768, 128
    %6817 = vxpose.xlu0.b32.cont [6/16] %v6769, 128
    %6818 = vxpose.xlu0.b32.cont [7/16] %v6770, 128
    %6819 = vxpose.xlu0.b32.cont [8/16] %v6771, 128
    %6820 = vxpose.xlu0.b32.cont [9/16] %v6772, 128
    %6821 = vxpose.xlu0.b32.cont [10/16] %v6773, 128
    %6822 = vxpose.xlu0.b32.cont [11/16] %v6774, 128
    %6823 = vxpose.xlu0.b32.cont [12/16] %v6775, 128
    %6824 = vxpose.xlu0.b32.cont [13/16] %v6776, 128
    %6825 = vxpose.xlu0.b32.cont [14/16] %v6777, 128
    %6826 = vxpose.xlu0.b32.cont [15/16] %v6778, 128
    %6827 = vxpose.xlu0.b32.end [16/16] %v6779, 128
    %v6828 = vpop.trf.xlu0
    %v6829 = vpop.trf.xlu0
    %v6830 = vpop.trf.xlu0
    %v6831 = vpop.trf.xlu0
    %v6832 = vpop.trf.xlu0
    %v6833 = vpop.trf.xlu0
    %v6834 = vpop.trf.xlu0
    %v6835 = vpop.trf.xlu0
    %v6836 = vpop.trf.xlu0
    %v6837 = vpop.trf.xlu0
    %v6838 = vpop.trf.xlu0
    %v6839 = vpop.trf.xlu0
    %v6840 = vpop.trf.xlu0
    %v6841 = vpop.trf.xlu0
    %v6842 = vpop.trf.xlu0
    %v6843 = vpop.trf.xlu0
    %v6844 = vld [vmem:[%s7] sm:$0xff]
    %v6845 = vld [vmem:[%s7 + $0x8] sm:$0xff]
    %v6846 = vld [vmem:[%s7 + $0x10] sm:$0xff]
    %v6847 = vld [vmem:[%s7 + $0x18] sm:$0xff]
    %v6848 = vld [vmem:[%s7 + $0x20] sm:$0xff]
    %v6849 = vld [vmem:[%s7 + $0x28] sm:$0xff]
    %v6850 = vld [vmem:[%s7 + $0x30] sm:$0xff]
    %v6851 = vld [vmem:[%s7 + $0x38] sm:$0xff]
    %v6852 = vld [vmem:[%s7 + $0x40] sm:$0xff]
    %v6853 = vld [vmem:[%s7 + $0x48] sm:$0xff]
    %v6854 = vld [vmem:[%s7 + $0x50] sm:$0xff]
    %v6855 = vld [vmem:[%s7 + $0x58] sm:$0xff]
    %v6856 = vld [vmem:[%s7 + $0x60] sm:$0xff]
    %v6857 = vld [vmem:[%s7 + $0x68] sm:$0xff]
    %v6858 = vld [vmem:[%s7 + $0x70] sm:$0xff]
    %v6859 = vld [vmem:[%s7 + $0x78] sm:$0xff]
    %6861 = vset.pattern.permute.xlu0 0
    %6862 = vperm.xlu0 %6861, %v6844
    %v6863 = vpop.permute.xlu0 %6862
    %6866 = vset.pattern.permute.xlu0 0
    %6867 = vperm.xlu0 %6866, %v6845
    %v6868 = vpop.permute.xlu0 %6867
    %6871 = vset.pattern.permute.xlu0 0
    %6872 = vperm.xlu0 %6871, %v6846
    %v6873 = vpop.permute.xlu0 %6872
    %6876 = vset.pattern.permute.xlu0 0
    %6877 = vperm.xlu0 %6876, %v6847
    %v6878 = vpop.permute.xlu0 %6877
    %6881 = vset.pattern.permute.xlu0 0
    %6882 = vperm.xlu0 %6881, %v6848
    %v6883 = vpop.permute.xlu0 %6882
    %6886 = vset.pattern.permute.xlu0 0
    %6887 = vperm.xlu0 %6886, %v6849
    %v6888 = vpop.permute.xlu0 %6887
    %6891 = vset.pattern.permute.xlu0 0
    %6892 = vperm.xlu0 %6891, %v6850
    %v6893 = vpop.permute.xlu0 %6892
    %6896 = vset.pattern.permute.xlu0 0
    %6897 = vperm.xlu0 %6896, %v6851
    %v6898 = vpop.permute.xlu0 %6897
    %6901 = vset.pattern.permute.xlu0 0
    %6902 = vperm.xlu0 %6901, %v6852
    %v6903 = vpop.permute.xlu0 %6902
    %6906 = vset.pattern.permute.xlu0 0
    %6907 = vperm.xlu0 %6906, %v6853
    %v6908 = vpop.permute.xlu0 %6907
    %6911 = vset.pattern.permute.xlu0 0
    %6912 = vperm.xlu0 %6911, %v6854
    %v6913 = vpop.permute.xlu0 %6912
    %6916 = vset.pattern.permute.xlu0 0
    %6917 = vperm.xlu0 %6916, %v6855
    %v6918 = vpop.permute.xlu0 %6917
    %6921 = vset.pattern.permute.xlu0 0
    %6922 = vperm.xlu0 %6921, %v6856
    %v6923 = vpop.permute.xlu0 %6922
    %6926 = vset.pattern.permute.xlu0 0
    %6927 = vperm.xlu0 %6926, %v6857
    %v6928 = vpop.permute.xlu0 %6927
    %6931 = vset.pattern.permute.xlu0 0
    %6932 = vperm.xlu0 %6931, %v6858
    %v6933 = vpop.permute.xlu0 %6932
    %6936 = vset.pattern.permute.xlu0 0
    %6937 = vperm.xlu0 %6936, %v6859
    %v6938 = vpop.permute.xlu0 %6937
    %v6940 = vmul.f32 %v6796, %v6863
    %v6941 = vmul.f32 %v6828, %v6863
    %v6942 = vmul.f32 %v6797, %v6868
    %v6943 = vmul.f32 %v6829, %v6868
    %v6944 = vmul.f32 %v6798, %v6873
    %v6945 = vmul.f32 %v6830, %v6873
    %v6946 = vmul.f32 %v6799, %v6878
    %v6947 = vmul.f32 %v6831, %v6878
    %v6948 = vmul.f32 %v6800, %v6883
    %v6949 = vmul.f32 %v6832, %v6883
    %v6950 = vmul.f32 %v6801, %v6888
    %v6951 = vmul.f32 %v6833, %v6888
    %v6952 = vmul.f32 %v6802, %v6893
    %v6953 = vmul.f32 %v6834, %v6893
    %v6954 = vmul.f32 %v6803, %v6898
    %v6955 = vmul.f32 %v6835, %v6898
    %v6956 = vmul.f32 %v6804, %v6903
    %v6957 = vmul.f32 %v6836, %v6903
    %v6958 = vmul.f32 %v6805, %v6908
    %v6959 = vmul.f32 %v6837, %v6908
    %v6960 = vmul.f32 %v6806, %v6913
    %v6961 = vmul.f32 %v6838, %v6913
    %v6962 = vmul.f32 %v6807, %v6918
    %v6963 = vmul.f32 %v6839, %v6918
    %v6964 = vmul.f32 %v6808, %v6923
    %v6965 = vmul.f32 %v6840, %v6923
    %v6966 = vmul.f32 %v6809, %v6928
    %v6967 = vmul.f32 %v6841, %v6928
    %v6968 = vmul.f32 %v6810, %v6933
    %v6969 = vmul.f32 %v6842, %v6933
    %v6970 = vmul.f32 %v6811, %v6938
    %v6971 = vmul.f32 %v6843, %v6938
    %v6972 = vadd.f32 %v6940, %v6942
    %v6973 = vadd.f32 %v6972, %v6944
    %v6974 = vadd.f32 %v6973, %v6946
    %v6975 = vadd.f32 %v6974, %v6948
    %v6976 = vadd.f32 %v6975, %v6950
    %v6977 = vadd.f32 %v6976, %v6952
    %v6978 = vadd.f32 %v6977, %v6954
    %v6979 = vadd.f32 %v6978, %v6956
    %v6980 = vadd.f32 %v6979, %v6958
    %v6981 = vadd.f32 %v6980, %v6960
    %v6982 = vadd.f32 %v6981, %v6962
    %v6983 = vadd.f32 %v6982, %v6964
    %v6984 = vadd.f32 %v6983, %v6966
    %v6985 = vadd.f32 %v6984, %v6968
    %v6986 = vadd.f32 %v6985, %v6970
    %v6987 = vrot.slane %v6986, 4
    %v6988 = vadd.f32 %v6986, %v6987
    %v6989 = vrot.slane %v6988, 2
    %v6990 = vadd.f32 %v6988, %v6989
    %v6991 = vrot.slane %v6990, 1
    %v6992 = vadd.f32 %v6990, %v6991
    %v6993 = vadd.f32 %v6941, %v6943
    %v6994 = vadd.f32 %v6993, %v6945
    %v6995 = vadd.f32 %v6994, %v6947
    %v6996 = vadd.f32 %v6995, %v6949
    %v6997 = vadd.f32 %v6996, %v6951
    %v6998 = vadd.f32 %v6997, %v6953
    %v6999 = vadd.f32 %v6998, %v6955
    %v7000 = vadd.f32 %v6999, %v6957
    %v7001 = vadd.f32 %v7000, %v6959
    %v7002 = vadd.f32 %v7001, %v6961
    %v7003 = vadd.f32 %v7002, %v6963
    %v7004 = vadd.f32 %v7003, %v6965
    %v7005 = vadd.f32 %v7004, %v6967
    %v7006 = vadd.f32 %v7005, %v6969
    %v7007 = vadd.f32 %v7006, %v6971
    %v7008 = vrot.slane %v7007, 4
    %v7009 = vadd.f32 %v7007, %v7008
    %v7010 = vrot.slane %v7009, 2
    %v7011 = vadd.f32 %v7009, %v7010
    %v7012 = vrot.slane %v7011, 1
    %v7013 = vadd.f32 %v7011, %v7012
    %v7014 = vld [vmem:[#allocation2] sm:$0x1]
    %7016 = vset.pattern.permute.xlu0 0
    %7017 = vperm.xlu0 %7016, %v7014
    %v7018 = vpop.permute.xlu0 %7017
    %v7020 = vperm.slane %v7018, 0
    %v7021 = vadd.f32 %v6992, %v7020
    %v7022 = vadd.f32 %v7013, %v7020
    %v7025 = vrot.slane %v7022, 7
    %vm7026 = vcmask 1040384
    %v7027 = vsel %vm7026, %v7021, %v7025
    %v7029 = vlaneseq
    %vm7030 = vcmp.ge.s32.totalorder %v7029, 0
    %vm7031 = vcmp.lt.s32.totalorder %v7029, 256
    %vm7032 = vmand %vm7030, %vm7031
    %7033 = vst.msk [vmem:[%s9] sm:$0x3] %vm7032, %v7027
    // Predicated region
    $region42: #{linear_discriminator.1} parent=1 // pred_check
      _
    $region43: #{linear_discriminator.1} parent=1 // pred_check_branch
      %7035 = sbr.rel (0) target = $region45
    $region44: #{linear_discriminator.1} parent=1 // pred_region
      _
    $region45: #{linear_discriminator.1} parent=1 // pred_fallthru
      _
    // Predicated region
    $region46: #{linear_discriminator.1} parent=1 // pred_check
      _
    $region47: #{linear_discriminator.1} parent=1 // pred_check_branch
      %7037 = sbr.rel (0) target = $region49
    $region48: #{linear_discriminator.1} parent=1 // pred_region
      _
    $region49: #{linear_discriminator.1} parent=1 // pred_fallthru
      _
    %7038 = vsyncpa [#allocation4], 1

</llo_original>
